<compile_context>
chip_gen: v6e
topology: v6e:2x2x1
jax: 0.10.0
libtpu: 0.0.40
codegen_flags: <defaults>
</compile_context>

<pallas_src>
import functools

import jax
import jax.numpy as jnp
from jax import lax
from jax.experimental import pallas as pl
from jax.experimental.pallas import tpu as pltpu


# ------------------------------ fused kernel --------------------------------

def _bottleneck_kernel(x_ref, w1_ref, b1_ref, w2_ref, b2_ref, w3_ref, b3_ref,
                       o_ref, n1pad_ref, *, tr, wdim, compute_dtype):
    # x_ref     : (1, H, W, Cin)       whole input image (block index constant
    #                                  over the row axis -> DMA'd once/image)
    # w1_ref    : (Cin, Cmid)          conv1 1x1 weight, BN1 folded
    # b1_ref    : (1, Cmid)
    # w2_ref    : (3, 3, Cmid, Cmid)   conv2 3x3 weight (HWIO), BN2 folded
    # b2_ref    : (1, Cmid)
    # w3_ref    : (Cmid, Cout)         conv3 1x1 weight, BN3 folded
    # b3_ref    : (1, Cout)
    # o_ref     : (1, tr, W, Cout)     output row band
    # n1pad_ref : (tr+2, W+2, Cmid)    zero-padded conv1 output (VMEM scratch)
    W = wdim
    r = pl.program_id(1)
    n_row_tiles = pl.num_programs(1)
    cin = x_ref.shape[-1]
    cmid = w1_ref.shape[-1]
    cout = w3_ref.shape[-1]
    row0 = r * tr

    w1 = w1_ref[...].astype(compute_dtype)
    b1 = b1_ref[...]

    def conv1(start, n):
        # rows [start, start+n) of the image -> ReLU(x @ w1 + b1)
        xs = x_ref[0, pl.ds(start, n), :, :].reshape(n * W, cin)
        y = jnp.dot(xs.astype(compute_dtype), w1,
                    preferred_element_type=jnp.float32)
        return jnp.maximum(y + b1, 0.0), xs

    # ---- stage 1: conv1 + BN1 + ReLU into the zero-padded VMEM slab --------
    # Zero only the SAME-pad border; every other slab element is overwritten
    # below, so there is no dependence on stale scratch contents.
    zcol = jnp.zeros((tr + 2, 1, cmid), n1pad_ref.dtype)
    n1pad_ref[:, 0:1, :] = zcol
    n1pad_ref[:, W + 1:W + 2, :] = zcol

    y1, x_band = conv1(row0, tr)                      # (tr*W, Cmid), (tr*W, Cin)
    n1pad_ref[1:tr + 1, 1:W + 1, :] = y1.reshape(tr, W, cmid)

    zrow = jnp.zeros((1, W, cmid), n1pad_ref.dtype)

    @pl.when(r == 0)
    def _():  # image top edge -> zero pad row
        n1pad_ref[0:1, 1:W + 1, :] = zrow

    @pl.when(r > 0)
    def _():  # top halo row comes from the previous band
        y, _ = conv1(row0 - 1, 1)
        n1pad_ref[0:1, 1:W + 1, :] = y.reshape(1, W, cmid)

    @pl.when(r == n_row_tiles - 1)
    def _():  # image bottom edge -> zero pad row
        n1pad_ref[tr + 1:tr + 2, 1:W + 1, :] = zrow

    @pl.when(r < n_row_tiles - 1)
    def _():  # bottom halo row comes from the next band
        y, _ = conv1(row0 + tr, 1)
        n1pad_ref[tr + 1:tr + 2, 1:W + 1, :] = y.reshape(1, W, cmid)

    # ---- stage 2: conv2 (3x3, pad=1, stride=1) + BN2 + ReLU -----------------
    # Three column-shifted slabs (only 3 sublane relayouts); the ky shift is a
    # free leading-axis slice, so each of the 9 taps is a contiguous matmul.
    slabs = [n1pad_ref[:, kx:kx + W, :].astype(compute_dtype)
             for kx in range(3)]                      # each (tr+2, W, Cmid)
    acc = jnp.zeros((tr * W, cmid), jnp.float32)
    for ky in range(3):
        for kx in range(3):
            lhs = slabs[kx][ky:ky + tr].reshape(tr * W, cmid)
            acc = acc + jnp.dot(lhs, w2_ref[ky, kx].astype(compute_dtype),
                                preferred_element_type=jnp.float32)
    net2 = jnp.maximum(acc + b2_ref[...], 0.0)        # (tr*W, Cmid) f32

    # ---- stage 3: conv3 (1x1) + BN3 + residual add + final ReLU -------------
    y3 = jnp.dot(net2.astype(compute_dtype), w3_ref[...].astype(compute_dtype),
                 preferred_element_type=jnp.float32)
    out = jnp.maximum(y3 + b3_ref[...] + x_band.astype(jnp.float32), 0.0)
    o_ref[...] = out.reshape(1, tr, W, cout).astype(o_ref.dtype)


# ------------------------------ host wrapper ---------------------------------

def _pick_tile_rows(H, target=8):
    for tr in range(min(target, H), 0, -1):
        if H % tr == 0:
            return tr
    return 1


def bottleneck_forward(x_nchw, params, *, compute_dtype=jnp.float32,
                       tile_rows=None):
    """Fused Bottleneck forward. Input/output are NCHW (PyTorch convention)."""
    # TODO(synk): the NCHW<->NHWC boundary transposes could be folded into the
    # kernel's first/last DMAs to save two more HBM passes.
    x = jnp.transpose(x_nchw, (0, 2, 3, 1)).astype(jnp.float32)   # NHWC
    N, H, W, cin = x.shape

    w1, b1 = params["conv1"]
    w2, b2 = params["conv2"]
    w3, b3 = params["conv3"]
    cmid = w1.shape[1]
    cout = w3.shape[1]
    assert cout == cin, "identity residual requires inplanes == planes*4"

    tr = tile_rows if tile_rows is not None else _pick_tile_rows(H)
    assert H % tr == 0
    grid = (N, H // tr)

    kern = functools.partial(_bottleneck_kernel, tr=tr, wdim=W,
                             compute_dtype=compute_dtype)

    out = pl.pallas_call(
        kern,
        out_shape=jax.ShapeDtypeStruct((N, H, W, cout), jnp.float32),
        grid=grid,
        in_specs=[
            # whole image per step; block index constant over r => DMA'd once
            pl.BlockSpec((1, H, W, cin), lambda n, r: (n, 0, 0, 0)),
            pl.BlockSpec((cin, cmid), lambda n, r: (0, 0)),
            pl.BlockSpec((1, cmid), lambda n, r: (0, 0)),
            pl.BlockSpec((3, 3, cmid, cmid), lambda n, r: (0, 0, 0, 0)),
            pl.BlockSpec((1, cmid), lambda n, r: (0, 0)),
            pl.BlockSpec((cmid, cout), lambda n, r: (0, 0)),
            pl.BlockSpec((1, cout), lambda n, r: (0, 0)),
        ],
        out_specs=pl.BlockSpec((1, tr, W, cout), lambda n, r: (n, r, 0, 0)),
        scratch_shapes=[pltpu.VMEM((tr + 2, W + 2, cmid), jnp.float32)],
        compiler_params=pltpu.CompilerParams(
            dimension_semantics=("parallel", "parallel"),
            vmem_limit_bytes=64 * 1024 * 1024),
    )(x,
      w1.astype(compute_dtype), b1.astype(jnp.float32),
      w2.astype(compute_dtype), b2.astype(jnp.float32),
      w3.astype(compute_dtype), b3.astype(jnp.float32))

    return jnp.transpose(out, (0, 3, 1, 2))  # back to NCHW


# ----------------------------- parameter setup ------------------------------

def _fold_bn(w, gamma, beta, mean, var, eps=1e-5):
    """Fold eval-mode BatchNorm into conv weight (last dim = Cout) and bias."""
    scale = gamma / jnp.sqrt(var + eps)
    w_f = w * scale                         # broadcast over Cout (last axis)
    b_f = (beta - mean * scale).reshape(1, -1)
    return w_f.astype(jnp.float32), b_f.astype(jnp.float32)


def make_params(key, inplanes, planes, base_width=64, groups=1):
    width = int(base_width / 64 * planes) * groups
    outplanes = planes * 4  # Bottleneck.expansion
    ks = jax.random.split(key, 15)

    def bn_params(k, c):
        k1, k2, k3, k4 = jax.random.split(k, 4)
        gamma = jax.random.uniform(k1, (c,), minval=0.5, maxval=1.5)
        beta = 0.1 * jax.random.normal(k2, (c,))
        mean = 0.1 * jax.random.normal(k3, (c,))
        var = jax.random.uniform(k4, (c,), minval=0.5, maxval=1.5)
        return gamma, beta, mean, var

    w1 = 0.2 * jax.random.normal(ks[0], (inplanes, width))           # 1x1
    w1, b1 = _fold_bn(w1, *bn_params(ks[1], width))
    w2 = 0.2 * jax.random.normal(ks[2], (3, 3, width, width))        # 3x3 HWIO
    w2, b2 = _fold_bn(w2, *bn_params(ks[3], width))
    w3 = 0.2 * jax.random.normal(ks[4], (width, outplanes))          # 1x1
    w3, b3 = _fold_bn(w3, *bn_params(ks[5], outplanes))

    return {"conv1": (w1, b1), "conv2": (w2, b2), "conv3": (w3, b3)}


# ------------------------------ pure-JAX reference ---------------------------

def bottleneck_reference(x_nchw, params, *, compute_dtype=jnp.float32):
    cd = compute_dtype
    x = jnp.transpose(x_nchw, (0, 2, 3, 1)).astype(jnp.float32)
    w1, b1 = params["conv1"]
    w2, b2 = params["conv2"]
    w3, b3 = params["conv3"]
    net = jnp.einsum("nhwc,co->nhwo", x.astype(cd), w1.astype(cd),
                     preferred_element_type=jnp.float32)
    net = jnp.maximum(net + b1.reshape(-1), 0.0)
    net = lax.conv_general_dilated(net.astype(cd), w2.astype(cd), (1, 1),
                                   "SAME",
                                   dimension_numbers=("NHWC", "HWIO", "NHWC"),
                                   preferred_element_type=jnp.float32)
    net = jnp.maximum(net + b2.reshape(-1), 0.0)
    net = jnp.einsum("nhwc,co->nhwo", net.astype(cd), w3.astype(cd),
                     preferred_element_type=jnp.float32) + b3.reshape(-1)
    out = jnp.maximum(net + x, 0.0)
    return jnp.transpose(out, (0, 3, 1, 2))


# ----------------------------------- main ------------------------------------

if __name__ == "__main__":
    key = jax.random.PRNGKey(0)
    k_x, k_p = jax.random.split(key)

    inplanes, planes = 16, 4        # width = 4, out channels = 16 = inplanes
    N, H, W = 2, 16, 16
    x = jax.random.normal(k_x, (N, inplanes, H, W), dtype=jnp.float32)  # NCHW
    params = make_params(k_p, inplanes, planes)

    # f32 path (exact check against the XLA reference).
    out = jax.block_until_ready(bottleneck_forward(x, params))
    ref = jax.block_until_ready(bottleneck_reference(x, params))
    assert out.shape == (N, planes * 4, H, W), out.shape
    assert jnp.allclose(out, ref, atol=1e-4, rtol=1e-4), \
        float(jnp.max(jnp.abs(out - ref)))

    # bf16 MXU-operand path (v6e/v7x optimization); compare vs bf16 reference.
    out_bf = jax.block_until_ready(
        bottleneck_forward(x, params, compute_dtype=jnp.bfloat16))
    ref_bf = jax.block_until_ready(
        bottleneck_reference(x, params, compute_dtype=jnp.bfloat16))
    assert jnp.allclose(out_bf, ref_bf, atol=5e-2, rtol=5e-2), \
        float(jnp.max(jnp.abs(out_bf - ref_bf)))

    print("KERNEL_OK")
</pallas_src>

<mosaic_0001>
module attributes {stable_mosaic.version = 11 : i64} {
  func.func @_bottleneck_kernel(%arg0: i32, %arg1: i32, %arg2: memref<1x16x16x16xf32, #tpu.memory_space<vmem>>, %arg3: memref<16x4xf32, #tpu.memory_space<vmem>>, %arg4: memref<1x4xf32, #tpu.memory_space<vmem>>, %arg5: memref<3x3x4x4xf32, #tpu.memory_space<vmem>>, %arg6: memref<1x4xf32, #tpu.memory_space<vmem>>, %arg7: memref<4x16xf32, #tpu.memory_space<vmem>>, %arg8: memref<1x16xf32, #tpu.memory_space<vmem>>, %arg9: memref<1x8x16x16xf32, #tpu.memory_space<vmem>>, %arg10: memref<10x18x4xf32, #tpu.memory_space<vmem>>) attributes {dimension_semantics = [#tpu.dimension_semantics<parallel>, #tpu.dimension_semantics<parallel>], iteration_bounds = array<i64: 2, 2>, scalar_prefetch = 0 : i64, scratch_operands = 1 : i64, tpu.core_type = #tpu.core_type<tc>, window_params = [{transform_indices = @transform_0, window_bounds = array<i64: 1, 16, 16, 16>}, {pipeline_mode = #tpu.pipeline_mode<synchronous>, transform_indices = @transform_1, window_bounds = array<i64: 16, 4>}, {pipeline_mode = #tpu.pipeline_mode<synchronous>, transform_indices = @transform_2, window_bounds = array<i64: 1, 4>}, {pipeline_mode = #tpu.pipeline_mode<synchronous>, transform_indices = @transform_3, window_bounds = array<i64: 3, 3, 4, 4>}, {pipeline_mode = #tpu.pipeline_mode<synchronous>, transform_indices = @transform_4, window_bounds = array<i64: 1, 4>}, {pipeline_mode = #tpu.pipeline_mode<synchronous>, transform_indices = @transform_5, window_bounds = array<i64: 4, 16>}, {pipeline_mode = #tpu.pipeline_mode<synchronous>, transform_indices = @transform_6, window_bounds = array<i64: 1, 16>}, {transform_indices = @transform_7, window_bounds = array<i64: 1, 8, 16, 16>}]} {
    %c8_i32 = arith.constant 8 : i32
    %0 = arith.muli %arg1, %c8_i32 : i32
    %c0 = arith.constant 0 : index
    %c0_0 = arith.constant 0 : index
    %1 = vector.load %arg3[%c0, %c0_0] : memref<16x4xf32, #tpu.memory_space<vmem>>, vector<16x4xf32>
    %c0_1 = arith.constant 0 : index
    %c0_2 = arith.constant 0 : index
    %2 = vector.load %arg4[%c0_1, %c0_2] : memref<1x4xf32, #tpu.memory_space<vmem>>, vector<1x4xf32>
    %cst = arith.constant 0.000000e+00 : f32
    %3 = vector.broadcast %cst : f32 to vector<10x1x4xf32>
    %c0_3 = arith.constant 0 : index
    %c0_4 = arith.constant 0 : index
    %c0_5 = arith.constant 0 : index
    %4 = vector.load %arg10[%c0_3, %c0_4, %c0_5] : memref<10x18x4xf32, #tpu.memory_space<vmem>>, vector<10x1x4xf32>
    tpu.vector_store %arg10[%c0_3, %c0_4, %c0_5], %3 {strides = array<i32>} : memref<10x18x4xf32, #tpu.memory_space<vmem>>, vector<10x1x4xf32>,
    %c0_6 = arith.constant 0 : index
    %c17 = arith.constant 17 : index
    %c0_7 = arith.constant 0 : index
    %5 = vector.load %arg10[%c0_6, %c17, %c0_7] : memref<10x18x4xf32, #tpu.memory_space<vmem>>, vector<10x1x4xf32>
    tpu.vector_store %arg10[%c0_6, %c17, %c0_7], %3 {strides = array<i32>} : memref<10x18x4xf32, #tpu.memory_space<vmem>>, vector<10x1x4xf32>,
    %c0_8 = arith.constant 0 : index
    %6 = arith.index_cast %0 : i32 to index
    %c0_9 = arith.constant 0 : index
    %c0_10 = arith.constant 0 : index
    %7 = vector.load %arg2[%c0_8, %6, %c0_9, %c0_10] : memref<1x16x16x16xf32, #tpu.memory_space<vmem>>, vector<1x8x16x16xf32>
    %8 = vector.shape_cast %7 : vector<1x8x16x16xf32> to vector<8x16x16xf32>
    %9 = vector.shape_cast %8 : vector<8x16x16xf32> to vector<128x16xf32>
    %cst_11 = arith.constant dense<0.000000e+00> : vector<128x4xf32>
    %10 = tpu.matmul %9, %1, %cst_11 {dimension_numbers = #tpu.dot_dimension_numbers<[1], [0], [0], [1], [0, 0, 1, 1], [], []>} : vector<128x16xf32>, vector<16x4xf32>, vector<128x4xf32> -> vector<128x4xf32>
    %11 = vector.broadcast %2 : vector<1x4xf32> to vector<128x4xf32>
    %12 = arith.addf %10, %11 : vector<128x4xf32>
    %cst_12 = arith.constant 0.000000e+00 : f32
    %13 = vector.broadcast %cst_12 : f32 to vector<128x4xf32>
    %14 = arith.maximumf %12, %13 : vector<128x4xf32>
    %15 = vector.shape_cast %14 : vector<128x4xf32> to vector<8x16x4xf32>
    %c1 = arith.constant 1 : index
    %c1_13 = arith.constant 1 : index
    %c0_14 = arith.constant 0 : index
    %16 = vector.load %arg10[%c1, %c1_13, %c0_14] : memref<10x18x4xf32, #tpu.memory_space<vmem>>, vector<8x16x4xf32>
    tpu.vector_store %arg10[%c1, %c1_13, %c0_14], %15 {strides = array<i32>} : memref<10x18x4xf32, #tpu.memory_space<vmem>>, vector<8x16x4xf32>,
    %cst_15 = arith.constant 0.000000e+00 : f32
    %17 = vector.broadcast %cst_15 : f32 to vector<1x16x4xf32>
    %c0_i32 = arith.constant 0 : i32
    %18 = arith.cmpi eq, %arg1, %c0_i32 : i32
    %19 = arith.extui %18 : i1 to i32
    %c0_i32_16 = arith.constant 0 : i32
    %20 = arith.cmpi ne, %19, %c0_i32_16 : i32
    scf.if %20 {
      %c0_89 = arith.constant 0 : index
      %c1_90 = arith.constant 1 : index
      %c0_91 = arith.constant 0 : index
      %103 = vector.load %arg10[%c0_89, %c1_90, %c0_91] : memref<10x18x4xf32, #tpu.memory_space<vmem>>, vector<1x16x4xf32>
      tpu.vector_store %arg10[%c0_89, %c1_90, %c0_91], %17 {strides = array<i32>} : memref<10x18x4xf32, #tpu.memory_space<vmem>>, vector<1x16x4xf32>,
    } else {
    }
    %c0_i32_17 = arith.constant 0 : i32
    %21 = arith.cmpi sgt, %arg1, %c0_i32_17 : i32
    %22 = arith.extui %21 : i1 to i32
    %c0_i32_18 = arith.constant 0 : i32
    %23 = arith.cmpi ne, %22, %c0_i32_18 : i32
    scf.if %23 {
      %c1_i32_89 = arith.constant 1 : i32
      %103 = arith.subi %0, %c1_i32_89 : i32
      %c0_90 = arith.constant 0 : index
      %104 = arith.index_cast %103 : i32 to index
      %c0_91 = arith.constant 0 : index
      %c0_92 = arith.constant 0 : index
      %105 = vector.load %arg2[%c0_90, %104, %c0_91, %c0_92] : memref<1x16x16x16xf32, #tpu.memory_space<vmem>>, vector<1x1x16x16xf32>
      %106 = vector.shape_cast %105 : vector<1x1x16x16xf32> to vector<1x16x16xf32>
      %107 = vector.shape_cast %106 : vector<1x16x16xf32> to vector<16x16xf32>
      %cst_93 = arith.constant dense<0.000000e+00> : vector<16x4xf32>
      %108 = tpu.matmul %107, %1, %cst_93 {dimension_numbers = #tpu.dot_dimension_numbers<[1], [0], [0], [1], [0, 0, 1, 1], [], []>} : vector<16x16xf32>, vector<16x4xf32>, vector<16x4xf32> -> vector<16x4xf32>
      %109 = vector.broadcast %2 : vector<1x4xf32> to vector<16x4xf32>
      %110 = arith.addf %108, %109 : vector<16x4xf32>
      %cst_94 = arith.constant 0.000000e+00 : f32
      %111 = vector.broadcast %cst_94 : f32 to vector<16x4xf32>
      %112 = arith.maximumf %110, %111 : vector<16x4xf32>
      %113 = vector.shape_cast %112 : vector<16x4xf32> to vector<1x16x4xf32>
      %c0_95 = arith.constant 0 : index
      %c1_96 = arith.constant 1 : index
      %c0_97 = arith.constant 0 : index
      %114 = vector.load %arg10[%c0_95, %c1_96, %c0_97] : memref<10x18x4xf32, #tpu.memory_space<vmem>>, vector<1x16x4xf32>
      tpu.vector_store %arg10[%c0_95, %c1_96, %c0_97], %113 {strides = array<i32>} : memref<10x18x4xf32, #tpu.memory_space<vmem>>, vector<1x16x4xf32>,
    } else {
    }
    %c1_i32 = arith.constant 1 : i32
    %24 = arith.cmpi eq, %arg1, %c1_i32 : i32
    %25 = arith.extui %24 : i1 to i32
    %c0_i32_19 = arith.constant 0 : i32
    %26 = arith.cmpi ne, %25, %c0_i32_19 : i32
    scf.if %26 {
      %c9 = arith.constant 9 : index
      %c1_89 = arith.constant 1 : index
      %c0_90 = arith.constant 0 : index
      %103 = vector.load %arg10[%c9, %c1_89, %c0_90] : memref<10x18x4xf32, #tpu.memory_space<vmem>>, vector<1x16x4xf32>
      tpu.vector_store %arg10[%c9, %c1_89, %c0_90], %17 {strides = array<i32>} : memref<10x18x4xf32, #tpu.memory_space<vmem>>, vector<1x16x4xf32>,
    } else {
    }
    %c1_i32_20 = arith.constant 1 : i32
    %27 = arith.cmpi slt, %arg1, %c1_i32_20 : i32
    %28 = arith.extui %27 : i1 to i32
    %c0_i32_21 = arith.constant 0 : i32
    %29 = arith.cmpi ne, %28, %c0_i32_21 : i32
    scf.if %29 {
      %c8_i32_89 = arith.constant 8 : i32
      %103 = arith.addi %0, %c8_i32_89 : i32
      %c0_90 = arith.constant 0 : index
      %104 = arith.index_cast %103 : i32 to index
      %c0_91 = arith.constant 0 : index
      %c0_92 = arith.constant 0 : index
      %105 = vector.load %arg2[%c0_90, %104, %c0_91, %c0_92] : memref<1x16x16x16xf32, #tpu.memory_space<vmem>>, vector<1x1x16x16xf32>
      %106 = vector.shape_cast %105 : vector<1x1x16x16xf32> to vector<1x16x16xf32>
      %107 = vector.shape_cast %106 : vector<1x16x16xf32> to vector<16x16xf32>
      %cst_93 = arith.constant dense<0.000000e+00> : vector<16x4xf32>
      %108 = tpu.matmul %107, %1, %cst_93 {dimension_numbers = #tpu.dot_dimension_numbers<[1], [0], [0], [1], [0, 0, 1, 1], [], []>} : vector<16x16xf32>, vector<16x4xf32>, vector<16x4xf32> -> vector<16x4xf32>
      %109 = vector.broadcast %2 : vector<1x4xf32> to vector<16x4xf32>
      %110 = arith.addf %108, %109 : vector<16x4xf32>
      %cst_94 = arith.constant 0.000000e+00 : f32
      %111 = vector.broadcast %cst_94 : f32 to vector<16x4xf32>
      %112 = arith.maximumf %110, %111 : vector<16x4xf32>
      %113 = vector.shape_cast %112 : vector<16x4xf32> to vector<1x16x4xf32>
      %c9 = arith.constant 9 : index
      %c1_95 = arith.constant 1 : index
      %c0_96 = arith.constant 0 : index
      %114 = vector.load %arg10[%c9, %c1_95, %c0_96] : memref<10x18x4xf32, #tpu.memory_space<vmem>>, vector<1x16x4xf32>
      tpu.vector_store %arg10[%c9, %c1_95, %c0_96], %113 {strides = array<i32>} : memref<10x18x4xf32, #tpu.memory_space<vmem>>, vector<1x16x4xf32>,
    } else {
    }
    %c0_22 = arith.constant 0 : index
    %c0_23 = arith.constant 0 : index
    %c0_24 = arith.constant 0 : index
    %30 = vector.load %arg10[%c0_22, %c0_23, %c0_24] : memref<10x18x4xf32, #tpu.memory_space<vmem>>, vector<10x16x4xf32>
    %c0_25 = arith.constant 0 : index
    %c1_26 = arith.constant 1 : index
    %c0_27 = arith.constant 0 : index
    %31 = vector.load %arg10[%c0_25, %c1_26, %c0_27] : memref<10x18x4xf32, #tpu.memory_space<vmem>>, vector<10x16x4xf32>
    %c0_28 = arith.constant 0 : index
    %c2 = arith.constant 2 : index
    %c0_29 = arith.constant 0 : index
    %32 = vector.load %arg10[%c0_28, %c2, %c0_29] : memref<10x18x4xf32, #tpu.memory_space<vmem>>, vector<10x16x4xf32>
    %cst_30 = arith.constant 0.000000e+00 : f32
    %33 = vector.broadcast %cst_30 : f32 to vector<128x4xf32>
    %34 = vector.extract_strided_slice %30 {offsets = [0, 0, 0], sizes = [8, 16, 4], strides = [1, 1, 1]} : vector<10x16x4xf32> to vector<8x16x4xf32>
    %35 = vector.shape_cast %34 : vector<8x16x4xf32> to vector<128x4xf32>
    %c0_31 = arith.constant 0 : index
    %c0_32 = arith.constant 0 : index
    %c0_33 = arith.constant 0 : index
    %c0_34 = arith.constant 0 : index
    %36 = vector.load %arg5[%c0_31, %c0_32, %c0_33, %c0_34] : memref<3x3x4x4xf32, #tpu.memory_space<vmem>>, vector<1x1x4x4xf32>
    %37 = vector.shape_cast %36 : vector<1x1x4x4xf32> to vector<4x4xf32>
    %cst_35 = arith.constant dense<0.000000e+00> : vector<128x4xf32>
    %38 = tpu.matmul %35, %37, %cst_35 {dimension_numbers = #tpu.dot_dimension_numbers<[1], [0], [0], [1], [0, 0, 1, 1], [], []>} : vector<128x4xf32>, vector<4x4xf32>, vector<128x4xf32> -> vector<128x4xf32>
    %39 = arith.addf %33, %38 : vector<128x4xf32>
    %40 = vector.extract_strided_slice %31 {offsets = [0, 0, 0], sizes = [8, 16, 4], strides = [1, 1, 1]} : vector<10x16x4xf32> to vector<8x16x4xf32>
    %41 = vector.shape_cast %40 : vector<8x16x4xf32> to vector<128x4xf32>
    %c0_36 = arith.constant 0 : index
    %c1_37 = arith.constant 1 : index
    %c0_38 = arith.constant 0 : index
    %c0_39 = arith.constant 0 : index
    %42 = vector.load %arg5[%c0_36, %c1_37, %c0_38, %c0_39] : memref<3x3x4x4xf32, #tpu.memory_space<vmem>>, vector<1x1x4x4xf32>
    %43 = vector.shape_cast %42 : vector<1x1x4x4xf32> to vector<4x4xf32>
    %cst_40 = arith.constant dense<0.000000e+00> : vector<128x4xf32>
    %44 = tpu.matmul %41, %43, %cst_40 {dimension_numbers = #tpu.dot_dimension_numbers<[1], [0], [0], [1], [0, 0, 1, 1], [], []>} : vector<128x4xf32>, vector<4x4xf32>, vector<128x4xf32> -> vector<128x4xf32>
    %45 = arith.addf %39, %44 : vector<128x4xf32>
    %46 = vector.extract_strided_slice %32 {offsets = [0, 0, 0], sizes = [8, 16, 4], strides = [1, 1, 1]} : vector<10x16x4xf32> to vector<8x16x4xf32>
    %47 = vector.shape_cast %46 : vector<8x16x4xf32> to vector<128x4xf32>
    %c0_41 = arith.constant 0 : index
    %c2_42 = arith.constant 2 : index
    %c0_43 = arith.constant 0 : index
    %c0_44 = arith.constant 0 : index
    %48 = vector.load %arg5[%c0_41, %c2_42, %c0_43, %c0_44] : memref<3x3x4x4xf32, #tpu.memory_space<vmem>>, vector<1x1x4x4xf32>
    %49 = vector.shape_cast %48 : vector<1x1x4x4xf32> to vector<4x4xf32>
    %cst_45 = arith.constant dense<0.000000e+00> : vector<128x4xf32>
    %50 = tpu.matmul %47, %49, %cst_45 {dimension_numbers = #tpu.dot_dimension_numbers<[1], [0], [0], [1], [0, 0, 1, 1], [], []>} : vector<128x4xf32>, vector<4x4xf32>, vector<128x4xf32> -> vector<128x4xf32>
    %51 = arith.addf %45, %50 : vector<128x4xf32>
    %52 = vector.extract_strided_slice %30 {offsets = [1, 0, 0], sizes = [8, 16, 4], strides = [1, 1, 1]} : vector<10x16x4xf32> to vector<8x16x4xf32>
    %53 = vector.shape_cast %52 : vector<8x16x4xf32> to vector<128x4xf32>
    %c1_46 = arith.constant 1 : index
    %c0_47 = arith.constant 0 : index
    %c0_48 = arith.constant 0 : index
    %c0_49 = arith.constant 0 : index
    %54 = vector.load %arg5[%c1_46, %c0_47, %c0_48, %c0_49] : memref<3x3x4x4xf32, #tpu.memory_space<vmem>>, vector<1x1x4x4xf32>
    %55 = vector.shape_cast %54 : vector<1x1x4x4xf32> to vector<4x4xf32>
    %cst_50 = arith.constant dense<0.000000e+00> : vector<128x4xf32>
    %56 = tpu.matmul %53, %55, %cst_50 {dimension_numbers = #tpu.dot_dimension_numbers<[1], [0], [0], [1], [0, 0, 1, 1], [], []>} : vector<128x4xf32>, vector<4x4xf32>, vector<128x4xf32> -> vector<128x4xf32>
    %57 = arith.addf %51, %56 : vector<128x4xf32>
    %58 = vector.extract_strided_slice %31 {offsets = [1, 0, 0], sizes = [8, 16, 4], strides = [1, 1, 1]} : vector<10x16x4xf32> to vector<8x16x4xf32>
    %59 = vector.shape_cast %58 : vector<8x16x4xf32> to vector<128x4xf32>
    %c1_51 = arith.constant 1 : index
    %c1_52 = arith.constant 1 : index
    %c0_53 = arith.constant 0 : index
    %c0_54 = arith.constant 0 : index
    %60 = vector.load %arg5[%c1_51, %c1_52, %c0_53, %c0_54] : memref<3x3x4x4xf32, #tpu.memory_space<vmem>>, vector<1x1x4x4xf32>
    %61 = vector.shape_cast %60 : vector<1x1x4x4xf32> to vector<4x4xf32>
    %cst_55 = arith.constant dense<0.000000e+00> : vector<128x4xf32>
    %62 = tpu.matmul %59, %61, %cst_55 {dimension_numbers = #tpu.dot_dimension_numbers<[1], [0], [0], [1], [0, 0, 1, 1], [], []>} : vector<128x4xf32>, vector<4x4xf32>, vector<128x4xf32> -> vector<128x4xf32>
    %63 = arith.addf %57, %62 : vector<128x4xf32>
    %64 = vector.extract_strided_slice %32 {offsets = [1, 0, 0], sizes = [8, 16, 4], strides = [1, 1, 1]} : vector<10x16x4xf32> to vector<8x16x4xf32>
    %65 = vector.shape_cast %64 : vector<8x16x4xf32> to vector<128x4xf32>
    %c1_56 = arith.constant 1 : index
    %c2_57 = arith.constant 2 : index
    %c0_58 = arith.constant 0 : index
    %c0_59 = arith.constant 0 : index
    %66 = vector.load %arg5[%c1_56, %c2_57, %c0_58, %c0_59] : memref<3x3x4x4xf32, #tpu.memory_space<vmem>>, vector<1x1x4x4xf32>
    %67 = vector.shape_cast %66 : vector<1x1x4x4xf32> to vector<4x4xf32>
    %cst_60 = arith.constant dense<0.000000e+00> : vector<128x4xf32>
    %68 = tpu.matmul %65, %67, %cst_60 {dimension_numbers = #tpu.dot_dimension_numbers<[1], [0], [0], [1], [0, 0, 1, 1], [], []>} : vector<128x4xf32>, vector<4x4xf32>, vector<128x4xf32> -> vector<128x4xf32>
    %69 = arith.addf %63, %68 : vector<128x4xf32>
    %70 = vector.extract_strided_slice %30 {offsets = [2, 0, 0], sizes = [8, 16, 4], strides = [1, 1, 1]} : vector<10x16x4xf32> to vector<8x16x4xf32>
    %71 = vector.shape_cast %70 : vector<8x16x4xf32> to vector<128x4xf32>
    %c2_61 = arith.constant 2 : index
    %c0_62 = arith.constant 0 : index
    %c0_63 = arith.constant 0 : index
    %c0_64 = arith.constant 0 : index
    %72 = vector.load %arg5[%c2_61, %c0_62, %c0_63, %c0_64] : memref<3x3x4x4xf32, #tpu.memory_space<vmem>>, vector<1x1x4x4xf32>
    %73 = vector.shape_cast %72 : vector<1x1x4x4xf32> to vector<4x4xf32>
    %cst_65 = arith.constant dense<0.000000e+00> : vector<128x4xf32>
    %74 = tpu.matmul %71, %73, %cst_65 {dimension_numbers = #tpu.dot_dimension_numbers<[1], [0], [0], [1], [0, 0, 1, 1], [], []>} : vector<128x4xf32>, vector<4x4xf32>, vector<128x4xf32> -> vector<128x4xf32>
    %75 = arith.addf %69, %74 : vector<128x4xf32>
    %76 = vector.extract_strided_slice %31 {offsets = [2, 0, 0], sizes = [8, 16, 4], strides = [1, 1, 1]} : vector<10x16x4xf32> to vector<8x16x4xf32>
    %77 = vector.shape_cast %76 : vector<8x16x4xf32> to vector<128x4xf32>
    %c2_66 = arith.constant 2 : index
    %c1_67 = arith.constant 1 : index
    %c0_68 = arith.constant 0 : index
    %c0_69 = arith.constant 0 : index
    %78 = vector.load %arg5[%c2_66, %c1_67, %c0_68, %c0_69] : memref<3x3x4x4xf32, #tpu.memory_space<vmem>>, vector<1x1x4x4xf32>
    %79 = vector.shape_cast %78 : vector<1x1x4x4xf32> to vector<4x4xf32>
    %cst_70 = arith.constant dense<0.000000e+00> : vector<128x4xf32>
    %80 = tpu.matmul %77, %79, %cst_70 {dimension_numbers = #tpu.dot_dimension_numbers<[1], [0], [0], [1], [0, 0, 1, 1], [], []>} : vector<128x4xf32>, vector<4x4xf32>, vector<128x4xf32> -> vector<128x4xf32>
    %81 = arith.addf %75, %80 : vector<128x4xf32>
    %82 = vector.extract_strided_slice %32 {offsets = [2, 0, 0], sizes = [8, 16, 4], strides = [1, 1, 1]} : vector<10x16x4xf32> to vector<8x16x4xf32>
    %83 = vector.shape_cast %82 : vector<8x16x4xf32> to vector<128x4xf32>
    %c2_71 = arith.constant 2 : index
    %c2_72 = arith.constant 2 : index
    %c0_73 = arith.constant 0 : index
    %c0_74 = arith.constant 0 : index
    %84 = vector.load %arg5[%c2_71, %c2_72, %c0_73, %c0_74] : memref<3x3x4x4xf32, #tpu.memory_space<vmem>>, vector<1x1x4x4xf32>
    %85 = vector.shape_cast %84 : vector<1x1x4x4xf32> to vector<4x4xf32>
    %cst_75 = arith.constant dense<0.000000e+00> : vector<128x4xf32>
    %86 = tpu.matmul %83, %85, %cst_75 {dimension_numbers = #tpu.dot_dimension_numbers<[1], [0], [0], [1], [0, 0, 1, 1], [], []>} : vector<128x4xf32>, vector<4x4xf32>, vector<128x4xf32> -> vector<128x4xf32>
    %87 = arith.addf %81, %86 : vector<128x4xf32>
    %c0_76 = arith.constant 0 : index
    %c0_77 = arith.constant 0 : index
    %88 = vector.load %arg6[%c0_76, %c0_77] : memref<1x4xf32, #tpu.memory_space<vmem>>, vector<1x4xf32>
    %89 = vector.broadcast %88 : vector<1x4xf32> to vector<128x4xf32>
    %90 = arith.addf %87, %89 : vector<128x4xf32>
    %cst_78 = arith.constant 0.000000e+00 : f32
    %91 = vector.broadcast %cst_78 : f32 to vector<128x4xf32>
    %92 = arith.maximumf %90, %91 : vector<128x4xf32>
    %c0_79 = arith.constant 0 : index
    %c0_80 = arith.constant 0 : index
    %93 = vector.load %arg7[%c0_79, %c0_80] : memref<4x16xf32, #tpu.memory_space<vmem>>, vector<4x16xf32>
    %cst_81 = arith.constant dense<0.000000e+00> : vector<128x16xf32>
    %94 = tpu.matmul %92, %93, %cst_81 {dimension_numbers = #tpu.dot_dimension_numbers<[1], [0], [0], [1], [0, 0, 1, 1], [], []>} : vector<128x4xf32>, vector<4x16xf32>, vector<128x16xf32> -> vector<128x16xf32>
    %c0_82 = arith.constant 0 : index
    %c0_83 = arith.constant 0 : index
    %95 = vector.load %arg8[%c0_82, %c0_83] : memref<1x16xf32, #tpu.memory_space<vmem>>, vector<1x16xf32>
    %96 = vector.broadcast %95 : vector<1x16xf32> to vector<128x16xf32>
    %97 = arith.addf %94, %96 : vector<128x16xf32>
    %98 = arith.addf %97, %9 : vector<128x16xf32>
    %cst_84 = arith.constant 0.000000e+00 : f32
    %99 = vector.broadcast %cst_84 : f32 to vector<128x16xf32>
    %100 = arith.maximumf %98, %99 : vector<128x16xf32>
    %101 = vector.shape_cast %100 : vector<128x16xf32> to vector<1x8x16x16xf32>
    %c0_85 = arith.constant 0 : index
    %c0_86 = arith.constant 0 : index
    %c0_87 = arith.constant 0 : index
    %c0_88 = arith.constant 0 : index
    %102 = vector.load %arg9[%c0_85, %c0_86, %c0_87, %c0_88] : memref<1x8x16x16xf32, #tpu.memory_space<vmem>>, vector<1x8x16x16xf32>
    tpu.vector_store %arg9[%c0_85, %c0_86, %c0_87, %c0_88], %101 {strides = array<i32>} : memref<1x8x16x16xf32, #tpu.memory_space<vmem>>, vector<1x8x16x16xf32>,
    return
  }
  func.func @transform_0(%arg0: i32, %arg1: i32) -> (i32, i32, i32, i32) {
    %c0_i32 = arith.constant 0 : i32
    %c0_i32_0 = arith.constant 0 : i32
    %c0_i32_1 = arith.constant 0 : i32
    %c0_i32_2 = arith.constant 0 : i32
    return %arg0, %c0_i32, %c0_i32_0, %c0_i32_1 : i32, i32, i32, i32
  }
  func.func @transform_1(%arg0: i32, %arg1: i32) -> (i32, i32) {
    %c0_i32 = arith.constant 0 : i32
    %c0_i32_0 = arith.constant 0 : i32
    %c0_i32_1 = arith.constant 0 : i32
    return %c0_i32, %c0_i32_0 : i32, i32
  }
  func.func @transform_2(%arg0: i32, %arg1: i32) -> (i32, i32) {
    %c0_i32 = arith.constant 0 : i32
    %c0_i32_0 = arith.constant 0 : i32
    %c0_i32_1 = arith.constant 0 : i32
    return %c0_i32, %c0_i32_0 : i32, i32
  }
  func.func @transform_3(%arg0: i32, %arg1: i32) -> (i32, i32, i32, i32) {
    %c0_i32 = arith.constant 0 : i32
    %c0_i32_0 = arith.constant 0 : i32
    %c0_i32_1 = arith.constant 0 : i32
    %c0_i32_2 = arith.constant 0 : i32
    %c0_i32_3 = arith.constant 0 : i32
    return %c0_i32, %c0_i32_0, %c0_i32_1, %c0_i32_2 : i32, i32, i32, i32
  }
  func.func @transform_4(%arg0: i32, %arg1: i32) -> (i32, i32) {
    %c0_i32 = arith.constant 0 : i32
    %c0_i32_0 = arith.constant 0 : i32
    %c0_i32_1 = arith.constant 0 : i32
    return %c0_i32, %c0_i32_0 : i32, i32
  }
  func.func @transform_5(%arg0: i32, %arg1: i32) -> (i32, i32) {
    %c0_i32 = arith.constant 0 : i32
    %c0_i32_0 = arith.constant 0 : i32
    %c0_i32_1 = arith.constant 0 : i32
    return %c0_i32, %c0_i32_0 : i32, i32
  }
  func.func @transform_6(%arg0: i32, %arg1: i32) -> (i32, i32) {
    %c0_i32 = arith.constant 0 : i32
    %c0_i32_0 = arith.constant 0 : i32
    %c0_i32_1 = arith.constant 0 : i32
    return %c0_i32, %c0_i32_0 : i32, i32
  }
  func.func @transform_7(%arg0: i32, %arg1: i32) -> (i32, i32, i32, i32) {
    %c0_i32 = arith.constant 0 : i32
    %c0_i32_0 = arith.constant 0 : i32
    %c0_i32_1 = arith.constant 0 : i32
    return %arg0, %arg1, %c0_i32, %c0_i32_0 : i32, i32, i32, i32
  }
}

</mosaic_0001>

<llo_original>
// kernel: tpu_custom_call.1
$region0: #{tpu_custom_call.1}
  #allocation0 [shape = 'u32[]', space=smem, size = 0x4, offset = 0x4, fixed_abs, tag = 'smem constant byte address 0x4 - core index']
  #allocation1 [shape = 'u32[144,128]{1,0:T(1,128)}', space=vmem, size = 0x12000, scoped, tag = 'internal scratch']
  #allocation2 [shape = 'f32[10,18,4]{2,1,0:T(8,128)}', space=vmem, size = 0x1e000, scoped, tag = 'scratch operand']
  %s0 = inlined_call_operand.hbm [shape: f32[2,16,16,16], index: 0, kind: input, shape index: {}]
  %s1 = inlined_call_operand.vmem [shape: f32[16,4], index: 1, kind: input, shape index: {}]
  %s2 = inlined_call_operand.vmem [shape: f32[1,4], index: 2, kind: input, shape index: {}]
  %s3 = inlined_call_operand.hbm [shape: f32[3,3,4,4], index: 3, kind: input, shape index: {}]
  %s4 = inlined_call_operand.vmem [shape: f32[1,4], index: 4, kind: input, shape index: {}]
  %s5 = inlined_call_operand.vmem [shape: f32[4,16], index: 5, kind: input, shape index: {}]
  %s6 = inlined_call_operand.vmem [shape: f32[1,16], index: 6, kind: input, shape index: {}]
  %s7 = inlined_call_operand.hbm [shape: f32[2,16,16,16], index: 7, kind: output, shape index: {}]
  %s8 = sld [smem:[#allocation0]]
  $region85: #{tpu_custom_call.1} parent=0
    _
  %s10 = ssub.s32 1, %s8
  %s11 = scalar_select 0, %s10, %s8
  $region1: #{tpu_custom_call.1} parent=0
    #allocation3 [shape = 'u8[262144]{0}', space=vmem, size = 0x40000, scoped, tag = 'input window, operand 0']
    #allocation4 [shape = 's32[2]{0}', space=sflag, size = 0x8, scoped, tag = 'scoped memory for tpu_custom_call.1']
    #allocation5 [shape = 's32[2]{0}', space=sflag, size = 0x8, scoped, tag = 'scoped memory for tpu_custom_call.1']
    #allocation6 [shape = 'u8[18432]{0}', space=vmem, size = 0x4800, scoped, tag = 'input window, operand 3, single buffered']
    #allocation7 [shape = 's32[1]{0}', space=sflag, size = 0x4, scoped, tag = 'scoped memory for tpu_custom_call.1']
    #allocation8 [shape = 'u8[131072]{0}', space=vmem, size = 0x20000, scoped, tag = 'output window, operand 0']
    %12 = vsyncpa [#allocation4], 0
    %s13 = scalar_lea.sflag [#allocation4], 1
    %14 = vsyncpa %s13, 0
    %15 = vsyncpa [#allocation7], 0
    %16 = vsyncpa [#allocation5], 0
    %s17 = scalar_lea.sflag [#allocation5], 1
    %18 = vsyncpa %s17, 0
    loop: start=0, step=1, limit=6
    $region2: #{tpu_custom_call.1} parent=1 // loop_pre_header
      _
    $region3: #{tpu_custom_call.1} parent=1 // loop_header
      %s20 = sphi 0, %s24
      %p21 = scmp.ge.s32.totalorder %s20, 6
      %s27 = sphi 0, %s39
      %s28 = sphi 0, %s35
      %s29 = sphi 0, %s27
      %s30 = sphi 0, %s28
      %s31 = sphi 0, %s29
      %s32 = sphi 0, %s30
      %s42 = sphi 0, %s44
      %s45 = sphi 0, %s42
      %s46 = sphi 0, %s45
      %s62 = sphi 0, %s46
      %s66 = sphi 0, %s66
      %s68 = sphi 0, %s66
      %s69 = sphi 0, %s68
      %s83 = sphi 0, %s69
      %s87 = sphi 0, %s87
      %s89 = sphi 0, %s87
      %s90 = sphi 0, %s89
      %s104 = sphi 0, %s90
      %s108 = sphi 0, %s108
      %s110 = sphi 0, %s108
      %s111 = sphi 0, %s110
      %s125 = sphi 0, %s111
      %s129 = sphi 0, %s129
      %s131 = sphi 0, %s129
      %s132 = sphi 0, %s131
      %s146 = sphi 0, %s132
      %s150 = sphi 0, %s150
      %s152 = sphi 0, %s150
      %s153 = sphi 0, %s152
      %s167 = sphi 0, %s153
      %s171 = sphi 0, %s171
      %s173 = sphi 0, %s171
      %s174 = sphi 0, %s173
      %s188 = sphi 0, %s174
      %s196 = sphi 0, %s198
      %s199 = sphi 0, %s196
      %s200 = sphi 0, %s199
      %s216 = sphi 0, %s200
    $region4: #{tpu_custom_call.1} parent=1 // loop_header_branch
      %23 = sbr.rel (%p21) target = $region8
    $region5: #{tpu_custom_call.1} parent=1 // loop_body
      %s25 = ssub.s32 %s20, 1
      %s26 = ssub.s32 %s20, 2
      %s33 = sadd.s32 1, %s28
      %p34 = scmp.ge.s32.totalorder %s33, 2
      %s35 = scalar_select %p34, 0, %s33
      %s36 = sadd.s32 1, %s27
      %s37 = scalar_select %p34, %s36, %s27
      %p38 = scmp.ge.s32.totalorder %s37, 2
      %s39 = scalar_select %p38, 0, %s37
      %s40 = ssub.s32 %s27, %s39
      %p41 = scmp.eq.s32.totalorder %s40, 0
      %s43 = sadd.s32 %s42, 1
      %s44 = scalar_select %p41, %s42, %s43
      %p47 = pneg %p41
      %p48 = scmp.eq.s32.totalorder %s20, 3
      %p49 = por %p47, %p48
      %p50 = scmp.ne.s32.totalorder %s42, %s45
      %p51 = scmp.eq.s32.totalorder %s20, 0
      %p52 = por %p50, %p51
      %p53 = scmp.ne.s32.totalorder %s42, %s45
      %p54 = scmp.eq.s32.totalorder %s25, 3
      %p55 = por %p53, %p54
      %p56 = scmp.ne.s32.totalorder %s45, %s46
      %p57 = scmp.eq.s32.totalorder %s25, 0
      %p58 = por %p56, %p57
      %p59 = scmp.ne.s32.totalorder %s45, %s46
      %p60 = scmp.eq.s32.totalorder %s26, 3
      %p61 = por %p59, %p60
      %p63 = scmp.ne.s32.totalorder %s46, %s62
      %p64 = scmp.eq.s32.totalorder %s26, 0
      %p65 = por %p63, %p64
      %s67 = sadd.s32 %s66, 1
      %p70 = scmp.eq.s32.totalorder %s20, 3
      %p71 = scmp.ne.s32.totalorder %s66, %s68
      %p72 = scmp.eq.s32.totalorder %s20, 0
      %p73 = por %p71, %p72
      %p74 = scmp.ne.s32.totalorder %s66, %s68
      %p75 = scmp.eq.s32.totalorder %s25, 3
      %p76 = por %p74, %p75
      %p77 = scmp.ne.s32.totalorder %s68, %s69
      %p78 = scmp.eq.s32.totalorder %s25, 0
      %p79 = por %p77, %p78
      %p80 = scmp.ne.s32.totalorder %s68, %s69
      %p81 = scmp.eq.s32.totalorder %s26, 3
      %p82 = por %p80, %p81
      %p84 = scmp.ne.s32.totalorder %s69, %s83
      %p85 = scmp.eq.s32.totalorder %s26, 0
      %p86 = por %p84, %p85
      %s88 = sadd.s32 %s87, 1
      %p91 = scmp.eq.s32.totalorder %s20, 3
      %p92 = scmp.ne.s32.totalorder %s87, %s89
      %p93 = scmp.eq.s32.totalorder %s20, 0
      %p94 = por %p92, %p93
      %p95 = scmp.ne.s32.totalorder %s87, %s89
      %p96 = scmp.eq.s32.totalorder %s25, 3
      %p97 = por %p95, %p96
      %p98 = scmp.ne.s32.totalorder %s89, %s90
      %p99 = scmp.eq.s32.totalorder %s25, 0
      %p100 = por %p98, %p99
      %p101 = scmp.ne.s32.totalorder %s89, %s90
      %p102 = scmp.eq.s32.totalorder %s26, 3
      %p103 = por %p101, %p102
      %p105 = scmp.ne.s32.totalorder %s90, %s104
      %p106 = scmp.eq.s32.totalorder %s26, 0
      %p107 = por %p105, %p106
      %s109 = sadd.s32 %s108, 1
      %p112 = scmp.eq.s32.totalorder %s20, 3
      %p113 = scmp.ne.s32.totalorder %s108, %s110
      %p114 = scmp.eq.s32.totalorder %s20, 0
      %p115 = por %p113, %p114
      %p116 = scmp.ne.s32.totalorder %s108, %s110
      %p117 = scmp.eq.s32.totalorder %s25, 3
      %p118 = por %p116, %p117
      %p119 = scmp.ne.s32.totalorder %s110, %s111
      %p120 = scmp.eq.s32.totalorder %s25, 0
      %p121 = por %p119, %p120
      %p122 = scmp.ne.s32.totalorder %s110, %s111
      %p123 = scmp.eq.s32.totalorder %s26, 3
      %p124 = por %p122, %p123
      %p126 = scmp.ne.s32.totalorder %s111, %s125
      %p127 = scmp.eq.s32.totalorder %s26, 0
      %p128 = por %p126, %p127
      %s130 = sadd.s32 %s129, 1
      %p133 = scmp.eq.s32.totalorder %s20, 3
      %p134 = scmp.ne.s32.totalorder %s129, %s131
      %p135 = scmp.eq.s32.totalorder %s20, 0
      %p136 = por %p134, %p135
      %p137 = scmp.ne.s32.totalorder %s129, %s131
      %p138 = scmp.eq.s32.totalorder %s25, 3
      %p139 = por %p137, %p138
      %p140 = scmp.ne.s32.totalorder %s131, %s132
      %p141 = scmp.eq.s32.totalorder %s25, 0
      %p142 = por %p140, %p141
      %p143 = scmp.ne.s32.totalorder %s131, %s132
      %p144 = scmp.eq.s32.totalorder %s26, 3
      %p145 = por %p143, %p144
      %p147 = scmp.ne.s32.totalorder %s132, %s146
      %p148 = scmp.eq.s32.totalorder %s26, 0
      %p149 = por %p147, %p148
      %s151 = sadd.s32 %s150, 1
      %p154 = scmp.eq.s32.totalorder %s20, 3
      %p155 = scmp.ne.s32.totalorder %s150, %s152
      %p156 = scmp.eq.s32.totalorder %s20, 0
      %p157 = por %p155, %p156
      %p158 = scmp.ne.s32.totalorder %s150, %s152
      %p159 = scmp.eq.s32.totalorder %s25, 3
      %p160 = por %p158, %p159
      %p161 = scmp.ne.s32.totalorder %s152, %s153
      %p162 = scmp.eq.s32.totalorder %s25, 0
      %p163 = por %p161, %p162
      %p164 = scmp.ne.s32.totalorder %s152, %s153
      %p165 = scmp.eq.s32.totalorder %s26, 3
      %p166 = por %p164, %p165
      %p168 = scmp.ne.s32.totalorder %s153, %s167
      %p169 = scmp.eq.s32.totalorder %s26, 0
      %p170 = por %p168, %p169
      %s172 = sadd.s32 %s171, 1
      %p175 = scmp.eq.s32.totalorder %s20, 3
      %p176 = scmp.ne.s32.totalorder %s171, %s173
      %p177 = scmp.eq.s32.totalorder %s20, 0
      %p178 = por %p176, %p177
      %p179 = scmp.ne.s32.totalorder %s171, %s173
      %p180 = scmp.eq.s32.totalorder %s25, 3
      %p181 = por %p179, %p180
      %p182 = scmp.ne.s32.totalorder %s173, %s174
      %p183 = scmp.eq.s32.totalorder %s25, 0
      %p184 = por %p182, %p183
      %p185 = scmp.ne.s32.totalorder %s173, %s174
      %p186 = scmp.eq.s32.totalorder %s26, 3
      %p187 = por %p185, %p186
      %p189 = scmp.ne.s32.totalorder %s174, %s188
      %p190 = scmp.eq.s32.totalorder %s26, 0
      %p191 = por %p189, %p190
      %s192 = ssub.s32 %s27, %s39
      %s193 = ssub.s32 %s28, %s35
      %s194 = sor.u32 %s192, %s193
      %p195 = scmp.eq.s32.totalorder %s194, 0
      %s197 = sadd.s32 %s196, 1
      %s198 = scalar_select %p195, %s196, %s197
      %p201 = pneg %p195
      %p202 = scmp.eq.s32.totalorder %s20, 3
      %p203 = por %p201, %p202
      %p204 = scmp.ne.s32.totalorder %s196, %s199
      %p205 = scmp.eq.s32.totalorder %s20, 0
      %p206 = por %p204, %p205
      %p207 = scmp.ne.s32.totalorder %s196, %s199
      %p208 = scmp.eq.s32.totalorder %s25, 3
      %p209 = por %p207, %p208
      %p210 = scmp.ne.s32.totalorder %s199, %s200
      %p211 = scmp.eq.s32.totalorder %s25, 0
      %p212 = por %p210, %p211
      %p213 = scmp.ne.s32.totalorder %s199, %s200
      %p214 = scmp.eq.s32.totalorder %s26, 3
      %p215 = por %p213, %p214
      %p217 = scmp.ne.s32.totalorder %s200, %s216
      %p218 = scmp.eq.s32.totalorder %s26, 0
      %p219 = por %p217, %p218
      %p220 = scmp.le.s32.totalorder 1, %s20
      %p221 = scmp.lt.s32.totalorder %s20, 5
      %p222 = pnand %p220, %p221
      %p223 = pneg %p222
      // Predicated region
      $region9: #{tpu_custom_call.1} parent=5 // pred_check
        _
      $region10: #{tpu_custom_call.1} parent=5 // pred_check_branch
        %225 = sbr.rel (%p222) target = $region12
      $region11: #{tpu_custom_call.1} parent=5 // pred_region
        %s226 = ssub.s32 %s20, 1
        // Predicated region
        $region13: #{tpu_custom_call.1} parent=11 // pred_check
          %p227 = pneg %p79
        $region14: #{tpu_custom_call.1} parent=11 // pred_check_branch
          %229 = sbr.rel (%p227) target = $region16
        $region15: #{tpu_custom_call.1} parent=11 // pred_region
          _
        $region16: #{tpu_custom_call.1} parent=11 // pred_fallthru
          _
        // Predicated region
        $region17: #{tpu_custom_call.1} parent=11 // pred_check
          %p230 = pneg %p100
        $region18: #{tpu_custom_call.1} parent=11 // pred_check_branch
          %232 = sbr.rel (%p230) target = $region20
        $region19: #{tpu_custom_call.1} parent=11 // pred_region
          _
        $region20: #{tpu_custom_call.1} parent=11 // pred_fallthru
          _
        // Predicated region
        $region21: #{tpu_custom_call.1} parent=11 // pred_check
          %p233 = pneg %p121
        $region22: #{tpu_custom_call.1} parent=11 // pred_check_branch
          %235 = sbr.rel (%p233) target = $region24
        $region23: #{tpu_custom_call.1} parent=11 // pred_region
          %s237 = ssub.s32 576, 576
          %238 = vsyncadd [#allocation7], %s237
          %s239 = sshll.u32 [#allocation6], 4
          %s240 = int_to_ptr.vmem [resolvable:$true] %s239
          %245 = dma.hbm_to_vmem [thread:$0]  %s3, 576, %s240, [#allocation7], 64, 64, 4
        $region24: #{tpu_custom_call.1} parent=11 // pred_fallthru
          _
        // Predicated region
        $region25: #{tpu_custom_call.1} parent=11 // pred_check
          %p246 = pneg %p142
        $region26: #{tpu_custom_call.1} parent=11 // pred_check_branch
          %248 = sbr.rel (%p246) target = $region28
        $region27: #{tpu_custom_call.1} parent=11 // pred_region
          _
        $region28: #{tpu_custom_call.1} parent=11 // pred_fallthru
          _
        // Predicated region
        $region29: #{tpu_custom_call.1} parent=11 // pred_check
          %p249 = pneg %p163
        $region30: #{tpu_custom_call.1} parent=11 // pred_check_branch
          %251 = sbr.rel (%p249) target = $region32
        $region31: #{tpu_custom_call.1} parent=11 // pred_region
          _
        $region32: #{tpu_custom_call.1} parent=11 // pred_fallthru
          _
        // Predicated region
        $region33: #{tpu_custom_call.1} parent=11 // pred_check
          %p252 = pneg %p184
        $region34: #{tpu_custom_call.1} parent=11 // pred_check_branch
          %254 = sbr.rel (%p252) target = $region36
        $region35: #{tpu_custom_call.1} parent=11 // pred_region
          _
        $region36: #{tpu_custom_call.1} parent=11 // pred_fallthru
          _
      $region12: #{tpu_custom_call.1} parent=5 // pred_fallthru
        _
      %p255 = scmp.lt.s32.totalorder %s20, 4
      // Predicated region
      $region37: #{tpu_custom_call.1} parent=5 // pred_check
        %p256 = pneg %p255
      $region38: #{tpu_custom_call.1} parent=5 // pred_check_branch
        %258 = sbr.rel (%p256) target = $region40
      $region39: #{tpu_custom_call.1} parent=5 // pred_region
        // Predicated region
        $region41: #{tpu_custom_call.1} parent=39 // pred_check
          %p259 = pneg %p52
        $region42: #{tpu_custom_call.1} parent=39 // pred_check_branch
          %261 = sbr.rel (%p259) target = $region44
        $region43: #{tpu_custom_call.1} parent=39 // pred_region
          %s262 = sand.u32 %s42, 1
          %s263 = scalar_lea.sflag [#allocation4], %s262
          %s264 = sand.u32 %s42, 1
          %s265 = smul.addr %s264, 256
          %s266 = scalar_lea.vmem [#allocation3], %s265
          %s268 = ssub.s32 4096, 4096
          %269 = vsyncadd %s263, %s268
          %s270 = smul.addr %s27, 32
          %s271 = smul.addr %s270, 128
          %s272 = scalar_lea.hbm %s0, %s271
          %s273 = sshll.u32 %s266, 4
          %s274 = int_to_ptr.vmem [resolvable:$true] %s273
          %279 = dma.hbm_to_vmem [thread:$0]  %s272, 4096, %s274, %s263, 128, 128, 8
        $region44: #{tpu_custom_call.1} parent=39 // pred_fallthru
          _
      $region40: #{tpu_custom_call.1} parent=5 // pred_fallthru
        _
      %p280 = scmp.le.s32.totalorder 1, %s20
      %p281 = scmp.lt.s32.totalorder %s20, 5
      %p282 = pnand %p280, %p281
      %p283 = pneg %p282
      // Predicated region
      $region45: #{tpu_custom_call.1} parent=5 // pred_check
        _
      $region46: #{tpu_custom_call.1} parent=5 // pred_check_branch
        %285 = sbr.rel (%p282) target = $region48
      $region47: #{tpu_custom_call.1} parent=5 // pred_region
        %s286 = ssub.s32 %s20, 1
        %s287 = sand.u32 %s45, 1
        %s288 = scalar_lea.sflag [#allocation4], %s287
        %s289 = sand.u32 %s45, 1
        %s290 = smul.addr %s289, 256
        %s291 = scalar_lea.vmem [#allocation3], %s290
        // Predicated region
        $region49: #{tpu_custom_call.1} parent=47 // pred_check
          %p292 = pneg %p58
        $region50: #{tpu_custom_call.1} parent=47 // pred_check_branch
          %294 = sbr.rel (%p292) target = $region52
        $region51: #{tpu_custom_call.1} parent=47 // pred_region
          %295 = dma.done %s288, 4096
        $region52: #{tpu_custom_call.1} parent=47 // pred_fallthru
          _
        // Predicated region
        $region53: #{tpu_custom_call.1} parent=47 // pred_check
          %p296 = pneg %p121
        $region54: #{tpu_custom_call.1} parent=47 // pred_check_branch
          %298 = sbr.rel (%p296) target = $region56
        $region55: #{tpu_custom_call.1} parent=47 // pred_region
          %299 = dma.done [#allocation7], 576
        $region56: #{tpu_custom_call.1} parent=47 // pred_fallthru
          _
        %s300 = sand.u32 %s45, 1
        %s301 = scalar_lea.sflag [#allocation4], %s300
        %s302 = sand.u32 %s45, 1
        %s303 = smul.addr %s302, 256
        %s304 = scalar_lea.vmem [#allocation3], %s303
        %p305 = pneg %p58
        %p306 = pneg %p55
        %p307 = pneg %p79
        %p308 = pneg %p76
        %p309 = pneg %p100
        %p310 = pneg %p97
        %p311 = pneg %p121
        %p312 = pneg %p118
        %p313 = pneg %p142
        %p314 = pneg %p139
        %p315 = pneg %p163
        %p316 = pneg %p160
        %p317 = pneg %p184
        %p318 = pneg %p181
        %p319 = pneg %p212
        %p320 = pneg %p209
        %s321 = sand.u32 %s199, 1
        %s322 = scalar_lea.sflag [#allocation5], %s321
        %s323 = sand.u32 %s199, 1
        %s324 = smul.addr %s323, 128
        %s325 = scalar_lea.vmem [#allocation8], %s324
        %s326 = smul.u32 8, %s30
        %s327 = smul.u32 %s30, 8
        %v328 = vld [vmem:[%s1] sm:$0xff]
        %v329 = vld [vmem:[%s1 + $0x8] sm:$0xff]
        %v330 = vld [vmem:[%s2] sm:$0x1]
        %vm331 = vcmask 24576
        %332 = vst.msk [vmem:[#allocation2] sm:$0x1] %vm331, 0.0
        %333 = vst.msk [vmem:[#allocation2 + $0x18] sm:$0x1] %vm331, 0.0
        %334 = vst.msk [vmem:[#allocation2 + $0x30] sm:$0x1] %vm331, 0.0
        %335 = vst.msk [vmem:[#allocation2 + $0x48] sm:$0x1] %vm331, 0.0
        %336 = vst.msk [vmem:[#allocation2 + $0x60] sm:$0x1] %vm331, 0.0
        %337 = vst.msk [vmem:[#allocation2 + $0x78] sm:$0x1] %vm331, 0.0
        %338 = vst.msk [vmem:[#allocation2 + $0x90] sm:$0x1] %vm331, 0.0
        %339 = vst.msk [vmem:[#allocation2 + $0xa8] sm:$0x1] %vm331, 0.0
        %340 = vst.msk [vmem:[#allocation2 + $0xc0] sm:$0x1] %vm331, 0.0
        %341 = vst.msk [vmem:[#allocation2 + $0xd8] sm:$0x1] %vm331, 0.0
        %342 = vst.msk [vmem:[#allocation2 + $0x11] sm:$0x1] %vm331, 0.0
        %343 = vst.msk [vmem:[#allocation2 + $0x29] sm:$0x1] %vm331, 0.0
        %344 = vst.msk [vmem:[#allocation2 + $0x41] sm:$0x1] %vm331, 0.0
        %345 = vst.msk [vmem:[#allocation2 + $0x59] sm:$0x1] %vm331, 0.0
        %346 = vst.msk [vmem:[#allocation2 + $0x71] sm:$0x1] %vm331, 0.0
        %347 = vst.msk [vmem:[#allocation2 + $0x89] sm:$0x1] %vm331, 0.0
        %348 = vst.msk [vmem:[#allocation2 + $0xa1] sm:$0x1] %vm331, 0.0
        %349 = vst.msk [vmem:[#allocation2 + $0xb9] sm:$0x1] %vm331, 0.0
        %350 = vst.msk [vmem:[#allocation2 + $0xd1] sm:$0x1] %vm331, 0.0
        %351 = vst.msk [vmem:[#allocation2 + $0xe9] sm:$0x1] %vm331, 0.0
        %s352 = smul.u32 %s327, 16
        %s353 = scalar_lea.vmem %s291, %s352 [#allocation3]
        %v354 = vld [vmem:[%s353] sm:$0xff]
        %v355 = vld [vmem:[%s353 + $0x8] sm:$0xff]
        %v356 = vld [vmem:[%s353 + $0x10] sm:$0xff]
        %v357 = vld [vmem:[%s353 + $0x18] sm:$0xff]
        %v358 = vld [vmem:[%s353 + $0x20] sm:$0xff]
        %v359 = vld [vmem:[%s353 + $0x28] sm:$0xff]
        %v360 = vld [vmem:[%s353 + $0x30] sm:$0xff]
        %v361 = vld [vmem:[%s353 + $0x38] sm:$0xff]
        %v362 = vld [vmem:[%s353 + $0x40] sm:$0xff]
        %v363 = vld [vmem:[%s353 + $0x48] sm:$0xff]
        %v364 = vld [vmem:[%s353 + $0x50] sm:$0xff]
        %v365 = vld [vmem:[%s353 + $0x58] sm:$0xff]
        %v366 = vld [vmem:[%s353 + $0x60] sm:$0xff]
        %v367 = vld [vmem:[%s353 + $0x68] sm:$0xff]
        %v368 = vld [vmem:[%s353 + $0x70] sm:$0xff]
        %v369 = vld [vmem:[%s353 + $0x78] sm:$0xff]
        %v371 = vlaneseq
        %v372 = vshrl.u32 %v371, 7
        %v373 = vsub.s32 0, %v372
        %v374 = vrot.slane %v330, %v373
        %vm376 = vcmask 130048
        %v378 = vsel %vm376, %v354, 0
        %v381 = vsel %vm376, %v355, 0
        %v384 = vsel %vm376, %v356, 0
        %v387 = vsel %vm376, %v357, 0
        %v390 = vsel %vm376, %v358, 0
        %v393 = vsel %vm376, %v359, 0
        %v396 = vsel %vm376, %v360, 0
        %v399 = vsel %vm376, %v361, 0
        %v402 = vsel %vm376, %v362, 0
        %v405 = vsel %vm376, %v363, 0
        %v408 = vsel %vm376, %v364, 0
        %v411 = vsel %vm376, %v365, 0
        %v414 = vsel %vm376, %v366, 0
        %v417 = vsel %vm376, %v367, 0
        %v420 = vsel %vm376, %v368, 0
        %v423 = vsel %vm376, %v369, 0
        %425 = vmatprep.subr.mxu0 0.0
        %426 = vmatpush1.msra.mxu0 0.0
        %427 = vmatprep.subr.mxu0 0.0
        %428 = vmatpush1.msra.mxu0 0.0
        %429 = vmatprep.subr.mxu0 0.0
        %430 = vmatpush1.msra.mxu0 0.0
        %431 = vmatprep.subr.mxu0 0.0
        %432 = vmatpush1.msra.mxu0 0.0
        %433 = vmatprep.subr.mxu0 0.0
        %434 = vmatpush1.msra.mxu0 0.0
        %435 = vmatprep.subr.mxu0 0.0
        %436 = vmatpush1.msra.mxu0 0.0
        %437 = vmatprep.subr.mxu0 0.0
        %438 = vmatpush1.msra.mxu0 0.0
        %439 = vmatprep.subr.mxu0 0.0
        %440 = vmatpush1.msra.mxu0 0.0
        %441 = vmatprep.subr.mxu0 0.0
        %442 = vmatpush1.msra.mxu0 0.0
        %443 = vmatprep.subr.mxu0 0.0
        %444 = vmatpush1.msra.mxu0 0.0
        %445 = vmatprep.subr.mxu0 0.0
        %446 = vmatpush1.msra.mxu0 0.0
        %447 = vmatprep.subr.mxu0 0.0
        %448 = vmatpush1.msra.mxu0 0.0
        %449 = vmatprep.subr.mxu0 0.0
        %450 = vmatpush1.msra.mxu0 0.0
        %451 = vmatprep.subr.mxu0 0.0
        %452 = vmatpush1.msra.mxu0 0.0
        %453 = vmatprep.subr.mxu0 0.0
        %454 = vmatpush1.msra.mxu0 %v329
        %455 = vmatprep.subr.mxu0 0.0
        %456 = vmatpush1.msra.mxu0 %v328
        %457 = vmatprep.subr.mxu0 0.0
        %458 = vmatpush2.msra.mxu0 0.0
        %459 = vmatprep.subr.mxu0 0.0
        %460 = vmatpush2.msra.mxu0 0.0
        %461 = vmatprep.subr.mxu0 0.0
        %462 = vmatpush2.msra.mxu0 0.0
        %463 = vmatprep.subr.mxu0 0.0
        %464 = vmatpush2.msra.mxu0 0.0
        %465 = vmatprep.subr.mxu0 0.0
        %466 = vmatpush2.msra.mxu0 0.0
        %467 = vmatprep.subr.mxu0 0.0
        %468 = vmatpush2.msra.mxu0 0.0
        %469 = vmatprep.subr.mxu0 0.0
        %470 = vmatpush2.msra.mxu0 0.0
        %471 = vmatprep.subr.mxu0 0.0
        %472 = vmatpush2.msra.mxu0 0.0
        %473 = vmatprep.subr.mxu0 0.0
        %474 = vmatpush2.msra.mxu0 0.0
        %475 = vmatprep.subr.mxu0 0.0
        %476 = vmatpush2.msra.mxu0 0.0
        %477 = vmatprep.subr.mxu0 0.0
        %478 = vmatpush2.msra.mxu0 0.0
        %479 = vmatprep.subr.mxu0 0.0
        %480 = vmatpush2.msra.mxu0 0.0
        %481 = vmatprep.subr.mxu0 0.0
        %482 = vmatpush2.msra.mxu0 0.0
        %483 = vmatprep.subr.mxu0 0.0
        %484 = vmatpush2.msra.mxu0 0.0
        %485 = vmatprep.subr.mxu0 0.0
        %486 = vmatpush2.msra.mxu0 0.0
        %487 = vmatprep.subr.mxu0 0.0
        %488 = vmatpush2.msra.mxu0 0.0
        %489 = vmatprep.mubr.f32.mxu0 0.0
        %490 = vmatmul.mubr.f32.gmra.mxu0 %v378
        %v491 = vpop.f32.mrf.mxu0
        %v492 = vadd.f32 %v374, %v491
        %v493 = vpop.f32.mrf.mxu0
        %494 = vmatprep.mubr.f32.mxu0 0.0
        %495 = vmatmul.mubr.f32.gmra.mxu0 %v381
        %v496 = vpop.f32.mrf.mxu0
        %v497 = vadd.f32 %v374, %v496
        %v498 = vpop.f32.mrf.mxu0
        %499 = vmatprep.mubr.f32.mxu0 0.0
        %500 = vmatmul.mubr.f32.gmra.mxu0 %v384
        %v501 = vpop.f32.mrf.mxu0
        %v502 = vadd.f32 %v374, %v501
        %v503 = vpop.f32.mrf.mxu0
        %504 = vmatprep.mubr.f32.mxu0 0.0
        %505 = vmatmul.mubr.f32.gmra.mxu0 %v387
        %v506 = vpop.f32.mrf.mxu0
        %v507 = vadd.f32 %v374, %v506
        %v508 = vpop.f32.mrf.mxu0
        %509 = vmatprep.mubr.f32.mxu0 0.0
        %510 = vmatmul.mubr.f32.gmra.mxu0 %v390
        %v511 = vpop.f32.mrf.mxu0
        %v512 = vadd.f32 %v374, %v511
        %v513 = vpop.f32.mrf.mxu0
        %514 = vmatprep.mubr.f32.mxu0 0.0
        %515 = vmatmul.mubr.f32.gmra.mxu0 %v393
        %v516 = vpop.f32.mrf.mxu0
        %v517 = vadd.f32 %v374, %v516
        %v518 = vpop.f32.mrf.mxu0
        %519 = vmatprep.mubr.f32.mxu0 0.0
        %520 = vmatmul.mubr.f32.gmra.mxu0 %v396
        %v521 = vpop.f32.mrf.mxu0
        %v522 = vadd.f32 %v374, %v521
        %v523 = vpop.f32.mrf.mxu0
        %524 = vmatprep.mubr.f32.mxu0 0.0
        %525 = vmatmul.mubr.f32.gmra.mxu0 %v399
        %v526 = vpop.f32.mrf.mxu0
        %v527 = vadd.f32 %v374, %v526
        %v528 = vpop.f32.mrf.mxu0
        %529 = vmatprep.mubr.f32.mxu0 0.0
        %530 = vmatmul.mubr.f32.gmra.mxu0 %v402
        %v531 = vpop.f32.mrf.mxu0
        %v532 = vadd.f32 %v374, %v531
        %v533 = vpop.f32.mrf.mxu0
        %534 = vmatprep.mubr.f32.mxu0 0.0
        %535 = vmatmul.mubr.f32.gmra.mxu0 %v405
        %v536 = vpop.f32.mrf.mxu0
        %v537 = vadd.f32 %v374, %v536
        %v538 = vpop.f32.mrf.mxu0
        %539 = vmatprep.mubr.f32.mxu0 0.0
        %540 = vmatmul.mubr.f32.gmra.mxu0 %v408
        %v541 = vpop.f32.mrf.mxu0
        %v542 = vadd.f32 %v374, %v541
        %v543 = vpop.f32.mrf.mxu0
        %544 = vmatprep.mubr.f32.mxu0 0.0
        %545 = vmatmul.mubr.f32.gmra.mxu0 %v411
        %v546 = vpop.f32.mrf.mxu0
        %v547 = vadd.f32 %v374, %v546
        %v548 = vpop.f32.mrf.mxu0
        %549 = vmatprep.mubr.f32.mxu0 0.0
        %550 = vmatmul.mubr.f32.gmra.mxu0 %v414
        %v551 = vpop.f32.mrf.mxu0
        %v552 = vadd.f32 %v374, %v551
        %v553 = vpop.f32.mrf.mxu0
        %554 = vmatprep.mubr.f32.mxu0 0.0
        %555 = vmatmul.mubr.f32.gmra.mxu0 %v417
        %v556 = vpop.f32.mrf.mxu0
        %v557 = vadd.f32 %v374, %v556
        %v558 = vpop.f32.mrf.mxu0
        %559 = vmatprep.mubr.f32.mxu0 0.0
        %560 = vmatmul.mubr.f32.gmra.mxu0 %v420
        %v561 = vpop.f32.mrf.mxu0
        %v562 = vadd.f32 %v374, %v561
        %v563 = vpop.f32.mrf.mxu0
        %564 = vmatprep.mubr.f32.mxu0 0.0
        %565 = vmatmul.mubr.f32.gmra.mxu0 %v423
        %v566 = vpop.f32.mrf.mxu0
        %v567 = vadd.f32 %v374, %v566
        %v568 = vpop.f32.mrf.mxu0
        %569 = vdwg.mxu0
        %v570 = vmax.f32 %v492, 0.0
        %v571 = vmax.f32 %v497, 0.0
        %v572 = vmax.f32 %v502, 0.0
        %v573 = vmax.f32 %v507, 0.0
        %v574 = vmax.f32 %v512, 0.0
        %v575 = vmax.f32 %v517, 0.0
        %v576 = vmax.f32 %v522, 0.0
        %v577 = vmax.f32 %v527, 0.0
        %v578 = vmax.f32 %v532, 0.0
        %v579 = vmax.f32 %v537, 0.0
        %v580 = vmax.f32 %v542, 0.0
        %v581 = vmax.f32 %v547, 0.0
        %v582 = vmax.f32 %v552, 0.0
        %v583 = vmax.f32 %v557, 0.0
        %v584 = vmax.f32 %v562, 0.0
        %v585 = vmax.f32 %v567, 0.0
        %s586 = scalar_lea.vmem [#allocation2], 24
        %vm587 = vcmask 31744
        %588 = vst.msk [vmem:[%s586 + $0x1] sm:$0xff] %vm587, %v570
        %589 = vst.msk [vmem:[%s586 + $0x9] sm:$0xff] %vm587, %v571
        %590 = vst.msk [vmem:[%s586 + $0x19] sm:$0xff] %vm587, %v572
        %591 = vst.msk [vmem:[%s586 + $0x21] sm:$0xff] %vm587, %v573
        %592 = vst.msk [vmem:[%s586 + $0x31] sm:$0xff] %vm587, %v574
        %593 = vst.msk [vmem:[%s586 + $0x39] sm:$0xff] %vm587, %v575
        %594 = vst.msk [vmem:[%s586 + $0x49] sm:$0xff] %vm587, %v576
        %595 = vst.msk [vmem:[%s586 + $0x51] sm:$0xff] %vm587, %v577
        %596 = vst.msk [vmem:[%s586 + $0x61] sm:$0xff] %vm587, %v578
        %597 = vst.msk [vmem:[%s586 + $0x69] sm:$0xff] %vm587, %v579
        %598 = vst.msk [vmem:[%s586 + $0x79] sm:$0xff] %vm587, %v580
        %599 = vst.msk [vmem:[%s586 + $0x81] sm:$0xff] %vm587, %v581
        %600 = vst.msk [vmem:[%s586 + $0x91] sm:$0xff] %vm587, %v582
        %601 = vst.msk [vmem:[%s586 + $0x99] sm:$0xff] %vm587, %v583
        %602 = vst.msk [vmem:[%s586 + $0xa9] sm:$0xff] %vm587, %v584
        %603 = vst.msk [vmem:[%s586 + $0xb1] sm:$0xff] %vm587, %v585
        %p604 = scmp.eq.s32.totalorder %s30, 0
        // Predicated region
        $region57: #{tpu_custom_call.1} parent=47 // pred_check
          %p605 = pneg %p604
        $region58: #{tpu_custom_call.1} parent=47 // pred_check_branch
          %607 = sbr.rel (%p605) target = $region60
        $region59: #{tpu_custom_call.1} parent=47 // pred_region
          %608 = vst.msk [vmem:[#allocation2 + $0x1] sm:$0xff] %vm587, 0.0
          %609 = vst.msk [vmem:[#allocation2 + $0x9] sm:$0xff] %vm587, 0.0
        $region60: #{tpu_custom_call.1} parent=47 // pred_fallthru
          _
        %p610 = scmp.gt.s32.totalorder %s30, 0
        // Predicated region
        $region61: #{tpu_custom_call.1} parent=47 // pred_check
          %p611 = pneg %p610
        $region62: #{tpu_custom_call.1} parent=47 // pred_check_branch
          %613 = sbr.rel (%p611) target = $region64
        $region63: #{tpu_custom_call.1} parent=47 // pred_region
          %s614 = ssub.s32 %s327, 1
          %s615 = smul.u32 %s614, 16
          %s616 = scalar_lea.vmem %s291, %s615 [#allocation3]
          %v617 = vld [vmem:[%s616] sm:$0xff]
          %v618 = vld [vmem:[%s616 + $0x8] sm:$0xff]
          %v620 = vsel %vm376, %v617, 0
          %v623 = vsel %vm376, %v618, 0
          %625 = vmatprep.subr.mxu0 0.0
          %626 = vmatpush1.msra.mxu0 0.0
          %627 = vmatprep.subr.mxu0 0.0
          %628 = vmatpush1.msra.mxu0 0.0
          %629 = vmatprep.subr.mxu0 0.0
          %630 = vmatpush1.msra.mxu0 0.0
          %631 = vmatprep.subr.mxu0 0.0
          %632 = vmatpush1.msra.mxu0 0.0
          %633 = vmatprep.subr.mxu0 0.0
          %634 = vmatpush1.msra.mxu0 0.0
          %635 = vmatprep.subr.mxu0 0.0
          %636 = vmatpush1.msra.mxu0 0.0
          %637 = vmatprep.subr.mxu0 0.0
          %638 = vmatpush1.msra.mxu0 0.0
          %639 = vmatprep.subr.mxu0 0.0
          %640 = vmatpush1.msra.mxu0 0.0
          %641 = vmatprep.subr.mxu0 0.0
          %642 = vmatpush1.msra.mxu0 0.0
          %643 = vmatprep.subr.mxu0 0.0
          %644 = vmatpush1.msra.mxu0 0.0
          %645 = vmatprep.subr.mxu0 0.0
          %646 = vmatpush1.msra.mxu0 0.0
          %647 = vmatprep.subr.mxu0 0.0
          %648 = vmatpush1.msra.mxu0 0.0
          %649 = vmatprep.subr.mxu0 0.0
          %650 = vmatpush1.msra.mxu0 0.0
          %651 = vmatprep.subr.mxu0 0.0
          %652 = vmatpush1.msra.mxu0 0.0
          %653 = vmatprep.subr.mxu0 0.0
          %654 = vmatpush1.msra.mxu0 %v329
          %655 = vmatprep.subr.mxu0 0.0
          %656 = vmatpush1.msra.mxu0 %v328
          %657 = vmatprep.subr.mxu0 0.0
          %658 = vmatpush2.msra.mxu0 0.0
          %659 = vmatprep.subr.mxu0 0.0
          %660 = vmatpush2.msra.mxu0 0.0
          %661 = vmatprep.subr.mxu0 0.0
          %662 = vmatpush2.msra.mxu0 0.0
          %663 = vmatprep.subr.mxu0 0.0
          %664 = vmatpush2.msra.mxu0 0.0
          %665 = vmatprep.subr.mxu0 0.0
          %666 = vmatpush2.msra.mxu0 0.0
          %667 = vmatprep.subr.mxu0 0.0
          %668 = vmatpush2.msra.mxu0 0.0
          %669 = vmatprep.subr.mxu0 0.0
          %670 = vmatpush2.msra.mxu0 0.0
          %671 = vmatprep.subr.mxu0 0.0
          %672 = vmatpush2.msra.mxu0 0.0
          %673 = vmatprep.subr.mxu0 0.0
          %674 = vmatpush2.msra.mxu0 0.0
          %675 = vmatprep.subr.mxu0 0.0
          %676 = vmatpush2.msra.mxu0 0.0
          %677 = vmatprep.subr.mxu0 0.0
          %678 = vmatpush2.msra.mxu0 0.0
          %679 = vmatprep.subr.mxu0 0.0
          %680 = vmatpush2.msra.mxu0 0.0
          %681 = vmatprep.subr.mxu0 0.0
          %682 = vmatpush2.msra.mxu0 0.0
          %683 = vmatprep.subr.mxu0 0.0
          %684 = vmatpush2.msra.mxu0 0.0
          %685 = vmatprep.subr.mxu0 0.0
          %686 = vmatpush2.msra.mxu0 0.0
          %687 = vmatprep.subr.mxu0 0.0
          %688 = vmatpush2.msra.mxu0 0.0
          %689 = vmatprep.mubr.f32.mxu0 0.0
          %690 = vmatmul.mubr.f32.gmra.mxu0 %v620
          %v691 = vpop.f32.mrf.mxu0
          %v692 = vadd.f32 %v374, %v691
          %v693 = vpop.f32.mrf.mxu0
          %694 = vmatprep.mubr.f32.mxu0 0.0
          %695 = vmatmul.mubr.f32.gmra.mxu0 %v623
          %v696 = vpop.f32.mrf.mxu0
          %v697 = vadd.f32 %v374, %v696
          %v698 = vpop.f32.mrf.mxu0
          %699 = vdwg.mxu0
          %v700 = vmax.f32 %v692, 0.0
          %v701 = vmax.f32 %v697, 0.0
          %702 = vst.msk [vmem:[#allocation2 + $0x1] sm:$0xff] %vm587, %v700
          %703 = vst.msk [vmem:[#allocation2 + $0x9] sm:$0xff] %vm587, %v701
        $region64: #{tpu_custom_call.1} parent=47 // pred_fallthru
          _
        %p704 = scmp.eq.s32.totalorder %s30, 1
        // Predicated region
        $region65: #{tpu_custom_call.1} parent=47 // pred_check
          %p705 = pneg %p704
        $region66: #{tpu_custom_call.1} parent=47 // pred_check_branch
          %707 = sbr.rel (%p705) target = $region68
        $region67: #{tpu_custom_call.1} parent=47 // pred_region
          %s708 = scalar_lea.vmem [#allocation2], 216
          %709 = vst.msk [vmem:[%s708 + $0x1] sm:$0xff] %vm587, 0.0
          %710 = vst.msk [vmem:[%s708 + $0x9] sm:$0xff] %vm587, 0.0
        $region68: #{tpu_custom_call.1} parent=47 // pred_fallthru
          _
        %p711 = scmp.lt.s32.totalorder %s30, 1
        // Predicated region
        $region69: #{tpu_custom_call.1} parent=47 // pred_check
          %p712 = pneg %p711
        $region70: #{tpu_custom_call.1} parent=47 // pred_check_branch
          %714 = sbr.rel (%p712) target = $region72
        $region71: #{tpu_custom_call.1} parent=47 // pred_region
          %s715 = sadd.s32 %s327, 8
          %s716 = smul.u32 %s715, 16
          %s717 = scalar_lea.vmem %s291, %s716 [#allocation3]
          %v718 = vld [vmem:[%s717] sm:$0xff]
          %v719 = vld [vmem:[%s717 + $0x8] sm:$0xff]
          %v721 = vsel %vm376, %v718, 0
          %v724 = vsel %vm376, %v719, 0
          %726 = vmatprep.subr.mxu0 0.0
          %727 = vmatpush1.msra.mxu0 0.0
          %728 = vmatprep.subr.mxu0 0.0
          %729 = vmatpush1.msra.mxu0 0.0
          %730 = vmatprep.subr.mxu0 0.0
          %731 = vmatpush1.msra.mxu0 0.0
          %732 = vmatprep.subr.mxu0 0.0
          %733 = vmatpush1.msra.mxu0 0.0
          %734 = vmatprep.subr.mxu0 0.0
          %735 = vmatpush1.msra.mxu0 0.0
          %736 = vmatprep.subr.mxu0 0.0
          %737 = vmatpush1.msra.mxu0 0.0
          %738 = vmatprep.subr.mxu0 0.0
          %739 = vmatpush1.msra.mxu0 0.0
          %740 = vmatprep.subr.mxu0 0.0
          %741 = vmatpush1.msra.mxu0 0.0
          %742 = vmatprep.subr.mxu0 0.0
          %743 = vmatpush1.msra.mxu0 0.0
          %744 = vmatprep.subr.mxu0 0.0
          %745 = vmatpush1.msra.mxu0 0.0
          %746 = vmatprep.subr.mxu0 0.0
          %747 = vmatpush1.msra.mxu0 0.0
          %748 = vmatprep.subr.mxu0 0.0
          %749 = vmatpush1.msra.mxu0 0.0
          %750 = vmatprep.subr.mxu0 0.0
          %751 = vmatpush1.msra.mxu0 0.0
          %752 = vmatprep.subr.mxu0 0.0
          %753 = vmatpush1.msra.mxu0 0.0
          %754 = vmatprep.subr.mxu0 0.0
          %755 = vmatpush1.msra.mxu0 %v329
          %756 = vmatprep.subr.mxu0 0.0
          %757 = vmatpush1.msra.mxu0 %v328
          %758 = vmatprep.subr.mxu0 0.0
          %759 = vmatpush2.msra.mxu0 0.0
          %760 = vmatprep.subr.mxu0 0.0
          %761 = vmatpush2.msra.mxu0 0.0
          %762 = vmatprep.subr.mxu0 0.0
          %763 = vmatpush2.msra.mxu0 0.0
          %764 = vmatprep.subr.mxu0 0.0
          %765 = vmatpush2.msra.mxu0 0.0
          %766 = vmatprep.subr.mxu0 0.0
          %767 = vmatpush2.msra.mxu0 0.0
          %768 = vmatprep.subr.mxu0 0.0
          %769 = vmatpush2.msra.mxu0 0.0
          %770 = vmatprep.subr.mxu0 0.0
          %771 = vmatpush2.msra.mxu0 0.0
          %772 = vmatprep.subr.mxu0 0.0
          %773 = vmatpush2.msra.mxu0 0.0
          %774 = vmatprep.subr.mxu0 0.0
          %775 = vmatpush2.msra.mxu0 0.0
          %776 = vmatprep.subr.mxu0 0.0
          %777 = vmatpush2.msra.mxu0 0.0
          %778 = vmatprep.subr.mxu0 0.0
          %779 = vmatpush2.msra.mxu0 0.0
          %780 = vmatprep.subr.mxu0 0.0
          %781 = vmatpush2.msra.mxu0 0.0
          %782 = vmatprep.subr.mxu0 0.0
          %783 = vmatpush2.msra.mxu0 0.0
          %784 = vmatprep.subr.mxu0 0.0
          %785 = vmatpush2.msra.mxu0 0.0
          %786 = vmatprep.subr.mxu0 0.0
          %787 = vmatpush2.msra.mxu0 0.0
          %788 = vmatprep.subr.mxu0 0.0
          %789 = vmatpush2.msra.mxu0 0.0
          %790 = vmatprep.mubr.f32.mxu0 0.0
          %791 = vmatmul.mubr.f32.gmra.mxu0 %v721
          %v792 = vpop.f32.mrf.mxu0
          %v793 = vadd.f32 %v374, %v792
          %v794 = vpop.f32.mrf.mxu0
          %795 = vmatprep.mubr.f32.mxu0 0.0
          %796 = vmatmul.mubr.f32.gmra.mxu0 %v724
          %v797 = vpop.f32.mrf.mxu0
          %v798 = vadd.f32 %v374, %v797
          %v799 = vpop.f32.mrf.mxu0
          %800 = vdwg.mxu0
          %v801 = vmax.f32 %v793, 0.0
          %v802 = vmax.f32 %v798, 0.0
          %s803 = scalar_lea.vmem [#allocation2], 216
          %804 = vst.msk [vmem:[%s803 + $0x1] sm:$0xff] %vm587, %v801
          %805 = vst.msk [vmem:[%s803 + $0x9] sm:$0xff] %vm587, %v802
        $region72: #{tpu_custom_call.1} parent=47 // pred_fallthru
          _
        %v806 = vld [vmem:[#allocation2] sm:$0xff]
        %v807 = vld [vmem:[#allocation2 + $0x8] sm:$0xff]
        %v808 = vld [vmem:[#allocation2 + $0x18] sm:$0xff]
        %v809 = vld [vmem:[#allocation2 + $0x20] sm:$0xff]
        %v810 = vld [vmem:[#allocation2 + $0x30] sm:$0xff]
        %v811 = vld [vmem:[#allocation2 + $0x38] sm:$0xff]
        %v812 = vld [vmem:[#allocation2 + $0x48] sm:$0xff]
        %v813 = vld [vmem:[#allocation2 + $0x50] sm:$0xff]
        %v814 = vld [vmem:[#allocation2 + $0x60] sm:$0xff]
        %v815 = vld [vmem:[#allocation2 + $0x68] sm:$0xff]
        %v816 = vld [vmem:[#allocation2 + $0x78] sm:$0xff]
        %v817 = vld [vmem:[#allocation2 + $0x80] sm:$0xff]
        %v818 = vld [vmem:[#allocation2 + $0x90] sm:$0xff]
        %v819 = vld [vmem:[#allocation2 + $0x98] sm:$0xff]
        %v820 = vld [vmem:[#allocation2 + $0xa8] sm:$0xff]
        %v821 = vld [vmem:[#allocation2 + $0xb0] sm:$0xff]
        %v822 = vld [vmem:[#allocation2 + $0xc0] sm:$0xff]
        %v823 = vld [vmem:[#allocation2 + $0xc8] sm:$0xff]
        %v824 = vld [vmem:[#allocation2 + $0xd8] sm:$0xff]
        %v825 = vld [vmem:[#allocation2 + $0xe0] sm:$0xff]
        %v826 = vld [vmem:[#allocation2 + $0x1] sm:$0xff]
        %v827 = vld [vmem:[#allocation2 + $0x9] sm:$0xff]
        %v828 = vld [vmem:[#allocation2 + $0x19] sm:$0xff]
        %v829 = vld [vmem:[#allocation2 + $0x21] sm:$0xff]
        %v830 = vld [vmem:[#allocation2 + $0x31] sm:$0xff]
        %v831 = vld [vmem:[#allocation2 + $0x39] sm:$0xff]
        %v832 = vld [vmem:[#allocation2 + $0x49] sm:$0xff]
        %v833 = vld [vmem:[#allocation2 + $0x51] sm:$0xff]
        %v834 = vld [vmem:[#allocation2 + $0x61] sm:$0xff]
        %v835 = vld [vmem:[#allocation2 + $0x69] sm:$0xff]
        %v836 = vld [vmem:[#allocation2 + $0x79] sm:$0xff]
        %v837 = vld [vmem:[#allocation2 + $0x81] sm:$0xff]
        %v838 = vld [vmem:[#allocation2 + $0x91] sm:$0xff]
        %v839 = vld [vmem:[#allocation2 + $0x99] sm:$0xff]
        %v840 = vld [vmem:[#allocation2 + $0xa9] sm:$0xff]
        %v841 = vld [vmem:[#allocation2 + $0xb1] sm:$0xff]
        %v842 = vld [vmem:[#allocation2 + $0xc1] sm:$0xff]
        %v843 = vld [vmem:[#allocation2 + $0xc9] sm:$0xff]
        %v844 = vld [vmem:[#allocation2 + $0xd9] sm:$0xff]
        %v845 = vld [vmem:[#allocation2 + $0xe1] sm:$0xff]
        %v846 = vld [vmem:[#allocation2 + $0x2] sm:$0xff]
        %v847 = vld [vmem:[#allocation2 + $0xa] sm:$0xff]
        %v848 = vld [vmem:[#allocation2 + $0x1a] sm:$0xff]
        %v849 = vld [vmem:[#allocation2 + $0x22] sm:$0xff]
        %v850 = vld [vmem:[#allocation2 + $0x32] sm:$0xff]
        %v851 = vld [vmem:[#allocation2 + $0x3a] sm:$0xff]
        %v852 = vld [vmem:[#allocation2 + $0x4a] sm:$0xff]
        %v853 = vld [vmem:[#allocation2 + $0x52] sm:$0xff]
        %v854 = vld [vmem:[#allocation2 + $0x62] sm:$0xff]
        %v855 = vld [vmem:[#allocation2 + $0x6a] sm:$0xff]
        %v856 = vld [vmem:[#allocation2 + $0x7a] sm:$0xff]
        %v857 = vld [vmem:[#allocation2 + $0x82] sm:$0xff]
        %v858 = vld [vmem:[#allocation2 + $0x92] sm:$0xff]
        %v859 = vld [vmem:[#allocation2 + $0x9a] sm:$0xff]
        %v860 = vld [vmem:[#allocation2 + $0xaa] sm:$0xff]
        %v861 = vld [vmem:[#allocation2 + $0xb2] sm:$0xff]
        %v862 = vld [vmem:[#allocation2 + $0xc2] sm:$0xff]
        %v863 = vld [vmem:[#allocation2 + $0xca] sm:$0xff]
        %v864 = vld [vmem:[#allocation2 + $0xda] sm:$0xff]
        %v865 = vld [vmem:[#allocation2 + $0xe2] sm:$0xff]
        %v866 = vld [vmem:[#allocation6] sm:$0xf]
        %s867 = scalar_lea.vmem [#allocation6], 4
        %v868 = vld [vmem:[%s867] sm:$0xf]
        %v870 = vsel %vm587, %v826, 0
        %v873 = vsel %vm587, %v827, 0
        %v876 = vsel %vm587, %v828, 0
        %v879 = vsel %vm587, %v829, 0
        %v882 = vsel %vm587, %v830, 0
        %v885 = vsel %vm587, %v831, 0
        %v888 = vsel %vm587, %v832, 0
        %v891 = vsel %vm587, %v833, 0
        %v894 = vsel %vm587, %v834, 0
        %v897 = vsel %vm587, %v835, 0
        %v900 = vsel %vm587, %v836, 0
        %v903 = vsel %vm587, %v837, 0
        %v906 = vsel %vm587, %v838, 0
        %v909 = vsel %vm587, %v839, 0
        %v912 = vsel %vm587, %v840, 0
        %v915 = vsel %vm587, %v841, 0
        %vm917 = vcmask 1043456
        %v919 = vsel %vm917, %v868, 0
        %921 = vmatprep.subr.mxu0 0.0
        %922 = vmatpush1.msra.mxu0 0.0
        %923 = vmatprep.subr.mxu0 0.0
        %924 = vmatpush1.msra.mxu0 0.0
        %925 = vmatprep.subr.mxu0 0.0
        %926 = vmatpush1.msra.mxu0 0.0
        %927 = vmatprep.subr.mxu0 0.0
        %928 = vmatpush1.msra.mxu0 0.0
        %929 = vmatprep.subr.mxu0 0.0
        %930 = vmatpush1.msra.mxu0 0.0
        %931 = vmatprep.subr.mxu0 0.0
        %932 = vmatpush1.msra.mxu0 0.0
        %933 = vmatprep.subr.mxu0 0.0
        %934 = vmatpush1.msra.mxu0 0.0
        %935 = vmatprep.subr.mxu0 0.0
        %936 = vmatpush1.msra.mxu0 0.0
        %937 = vmatprep.subr.mxu0 0.0
        %938 = vmatpush1.msra.mxu0 0.0
        %939 = vmatprep.subr.mxu0 0.0
        %940 = vmatpush1.msra.mxu0 0.0
        %941 = vmatprep.subr.mxu0 0.0
        %942 = vmatpush1.msra.mxu0 0.0
        %943 = vmatprep.subr.mxu0 0.0
        %944 = vmatpush1.msra.mxu0 0.0
        %945 = vmatprep.subr.mxu0 0.0
        %946 = vmatpush1.msra.mxu0 0.0
        %947 = vmatprep.subr.mxu0 0.0
        %948 = vmatpush1.msra.mxu0 0.0
        %949 = vmatprep.subr.mxu0 0.0
        %950 = vmatpush1.msra.mxu0 0.0
        %951 = vmatprep.subr.mxu0 0.0
        %952 = vmatpush1.msra.mxu0 %v919
        %953 = vmatprep.subr.mxu0 0.0
        %954 = vmatpush2.msra.mxu0 0.0
        %955 = vmatprep.subr.mxu0 0.0
        %956 = vmatpush2.msra.mxu0 0.0
        %957 = vmatprep.subr.mxu0 0.0
        %958 = vmatpush2.msra.mxu0 0.0
        %959 = vmatprep.subr.mxu0 0.0
        %960 = vmatpush2.msra.mxu0 0.0
        %961 = vmatprep.subr.mxu0 0.0
        %962 = vmatpush2.msra.mxu0 0.0
        %963 = vmatprep.subr.mxu0 0.0
        %964 = vmatpush2.msra.mxu0 0.0
        %965 = vmatprep.subr.mxu0 0.0
        %966 = vmatpush2.msra.mxu0 0.0
        %967 = vmatprep.subr.mxu0 0.0
        %968 = vmatpush2.msra.mxu0 0.0
        %969 = vmatprep.subr.mxu0 0.0
        %970 = vmatpush2.msra.mxu0 0.0
        %971 = vmatprep.subr.mxu0 0.0
        %972 = vmatpush2.msra.mxu0 0.0
        %973 = vmatprep.subr.mxu0 0.0
        %974 = vmatpush2.msra.mxu0 0.0
        %975 = vmatprep.subr.mxu0 0.0
        %976 = vmatpush2.msra.mxu0 0.0
        %977 = vmatprep.subr.mxu0 0.0
        %978 = vmatpush2.msra.mxu0 0.0
        %979 = vmatprep.subr.mxu0 0.0
        %980 = vmatpush2.msra.mxu0 0.0
        %981 = vmatprep.subr.mxu0 0.0
        %982 = vmatpush2.msra.mxu0 0.0
        %983 = vmatprep.subr.mxu0 0.0
        %984 = vmatpush2.msra.mxu0 0.0
        %985 = vmatprep.mubr.f32.mxu0 0.0
        %986 = vmatmul.mubr.f32.gmra.mxu0 %v870
        %v987 = vpop.f32.mrf.mxu0
        %v988 = vadd.f32 0.0, %v987
        %v989 = vpop.f32.mrf.mxu0
        %990 = vmatprep.mubr.f32.mxu0 0.0
        %991 = vmatmul.mubr.f32.gmra.mxu0 %v873
        %v992 = vpop.f32.mrf.mxu0
        %v993 = vadd.f32 0.0, %v992
        %v994 = vpop.f32.mrf.mxu0
        %995 = vmatprep.mubr.f32.mxu0 0.0
        %996 = vmatmul.mubr.f32.gmra.mxu0 %v876
        %v997 = vpop.f32.mrf.mxu0
        %v998 = vadd.f32 0.0, %v997
        %v999 = vpop.f32.mrf.mxu0
        %1000 = vmatprep.mubr.f32.mxu0 0.0
        %1001 = vmatmul.mubr.f32.gmra.mxu0 %v879
        %v1002 = vpop.f32.mrf.mxu0
        %v1003 = vadd.f32 0.0, %v1002
        %v1004 = vpop.f32.mrf.mxu0
        %1005 = vmatprep.mubr.f32.mxu0 0.0
        %1006 = vmatmul.mubr.f32.gmra.mxu0 %v882
        %v1007 = vpop.f32.mrf.mxu0
        %v1008 = vadd.f32 0.0, %v1007
        %v1009 = vpop.f32.mrf.mxu0
        %1010 = vmatprep.mubr.f32.mxu0 0.0
        %1011 = vmatmul.mubr.f32.gmra.mxu0 %v885
        %v1012 = vpop.f32.mrf.mxu0
        %v1013 = vadd.f32 0.0, %v1012
        %v1014 = vpop.f32.mrf.mxu0
        %1015 = vmatprep.mubr.f32.mxu0 0.0
        %1016 = vmatmul.mubr.f32.gmra.mxu0 %v888
        %v1017 = vpop.f32.mrf.mxu0
        %v1018 = vadd.f32 0.0, %v1017
        %v1019 = vpop.f32.mrf.mxu0
        %1020 = vmatprep.mubr.f32.mxu0 0.0
        %1021 = vmatmul.mubr.f32.gmra.mxu0 %v891
        %v1022 = vpop.f32.mrf.mxu0
        %v1023 = vadd.f32 0.0, %v1022
        %v1024 = vpop.f32.mrf.mxu0
        %1025 = vmatprep.mubr.f32.mxu0 0.0
        %1026 = vmatmul.mubr.f32.gmra.mxu0 %v894
        %v1027 = vpop.f32.mrf.mxu0
        %v1028 = vadd.f32 0.0, %v1027
        %v1029 = vpop.f32.mrf.mxu0
        %1030 = vmatprep.mubr.f32.mxu0 0.0
        %1031 = vmatmul.mubr.f32.gmra.mxu0 %v897
        %v1032 = vpop.f32.mrf.mxu0
        %v1033 = vadd.f32 0.0, %v1032
        %v1034 = vpop.f32.mrf.mxu0
        %1035 = vmatprep.mubr.f32.mxu0 0.0
        %1036 = vmatmul.mubr.f32.gmra.mxu0 %v900
        %v1037 = vpop.f32.mrf.mxu0
        %v1038 = vadd.f32 0.0, %v1037
        %v1039 = vpop.f32.mrf.mxu0
        %1040 = vmatprep.mubr.f32.mxu0 0.0
        %1041 = vmatmul.mubr.f32.gmra.mxu0 %v903
        %v1042 = vpop.f32.mrf.mxu0
        %v1043 = vadd.f32 0.0, %v1042
        %v1044 = vpop.f32.mrf.mxu0
        %1045 = vmatprep.mubr.f32.mxu0 0.0
        %1046 = vmatmul.mubr.f32.gmra.mxu0 %v906
        %v1047 = vpop.f32.mrf.mxu0
        %v1048 = vadd.f32 0.0, %v1047
        %v1049 = vpop.f32.mrf.mxu0
        %1050 = vmatprep.mubr.f32.mxu0 0.0
        %1051 = vmatmul.mubr.f32.gmra.mxu0 %v909
        %v1052 = vpop.f32.mrf.mxu0
        %v1053 = vadd.f32 0.0, %v1052
        %v1054 = vpop.f32.mrf.mxu0
        %1055 = vmatprep.mubr.f32.mxu0 0.0
        %1056 = vmatmul.mubr.f32.gmra.mxu0 %v912
        %v1057 = vpop.f32.mrf.mxu0
        %v1058 = vadd.f32 0.0, %v1057
        %v1059 = vpop.f32.mrf.mxu0
        %1060 = vmatprep.mubr.f32.mxu0 0.0
        %1061 = vmatmul.mubr.f32.gmra.mxu0 %v915
        %v1062 = vpop.f32.mrf.mxu0
        %v1063 = vadd.f32 0.0, %v1062
        %v1064 = vpop.f32.mrf.mxu0
        %1065 = vdwg.mxu0
        %v1067 = vsel %vm587, %v806, 0
        %v1070 = vsel %vm587, %v807, 0
        %v1073 = vsel %vm587, %v808, 0
        %v1076 = vsel %vm587, %v809, 0
        %v1079 = vsel %vm587, %v810, 0
        %v1082 = vsel %vm587, %v811, 0
        %v1085 = vsel %vm587, %v812, 0
        %v1088 = vsel %vm587, %v813, 0
        %v1091 = vsel %vm587, %v814, 0
        %v1094 = vsel %vm587, %v815, 0
        %v1097 = vsel %vm587, %v816, 0
        %v1100 = vsel %vm587, %v817, 0
        %v1103 = vsel %vm587, %v818, 0
        %v1106 = vsel %vm587, %v819, 0
        %v1109 = vsel %vm587, %v820, 0
        %v1112 = vsel %vm587, %v821, 0
        %v1115 = vsel %vm917, %v866, 0
        %1117 = vmatprep.subr.mxu0 0.0
        %1118 = vmatpush1.msra.mxu0 0.0
        %1119 = vmatprep.subr.mxu0 0.0
        %1120 = vmatpush1.msra.mxu0 0.0
        %1121 = vmatprep.subr.mxu0 0.0
        %1122 = vmatpush1.msra.mxu0 0.0
        %1123 = vmatprep.subr.mxu0 0.0
        %1124 = vmatpush1.msra.mxu0 0.0
        %1125 = vmatprep.subr.mxu0 0.0
        %1126 = vmatpush1.msra.mxu0 0.0
        %1127 = vmatprep.subr.mxu0 0.0
        %1128 = vmatpush1.msra.mxu0 0.0
        %1129 = vmatprep.subr.mxu0 0.0
        %1130 = vmatpush1.msra.mxu0 0.0
        %1131 = vmatprep.subr.mxu0 0.0
        %1132 = vmatpush1.msra.mxu0 0.0
        %1133 = vmatprep.subr.mxu0 0.0
        %1134 = vmatpush1.msra.mxu0 0.0
        %1135 = vmatprep.subr.mxu0 0.0
        %1136 = vmatpush1.msra.mxu0 0.0
        %1137 = vmatprep.subr.mxu0 0.0
        %1138 = vmatpush1.msra.mxu0 0.0
        %1139 = vmatprep.subr.mxu0 0.0
        %1140 = vmatpush1.msra.mxu0 0.0
        %1141 = vmatprep.subr.mxu0 0.0
        %1142 = vmatpush1.msra.mxu0 0.0
        %1143 = vmatprep.subr.mxu0 0.0
        %1144 = vmatpush1.msra.mxu0 0.0
        %1145 = vmatprep.subr.mxu0 0.0
        %1146 = vmatpush1.msra.mxu0 0.0
        %1147 = vmatprep.subr.mxu0 0.0
        %1148 = vmatpush1.msra.mxu0 %v1115
        %1149 = vmatprep.subr.mxu0 0.0
        %1150 = vmatpush2.msra.mxu0 0.0
        %1151 = vmatprep.subr.mxu0 0.0
        %1152 = vmatpush2.msra.mxu0 0.0
        %1153 = vmatprep.subr.mxu0 0.0
        %1154 = vmatpush2.msra.mxu0 0.0
        %1155 = vmatprep.subr.mxu0 0.0
        %1156 = vmatpush2.msra.mxu0 0.0
        %1157 = vmatprep.subr.mxu0 0.0
        %1158 = vmatpush2.msra.mxu0 0.0
        %1159 = vmatprep.subr.mxu0 0.0
        %1160 = vmatpush2.msra.mxu0 0.0
        %1161 = vmatprep.subr.mxu0 0.0
        %1162 = vmatpush2.msra.mxu0 0.0
        %1163 = vmatprep.subr.mxu0 0.0
        %1164 = vmatpush2.msra.mxu0 0.0
        %1165 = vmatprep.subr.mxu0 0.0
        %1166 = vmatpush2.msra.mxu0 0.0
        %1167 = vmatprep.subr.mxu0 0.0
        %1168 = vmatpush2.msra.mxu0 0.0
        %1169 = vmatprep.subr.mxu0 0.0
        %1170 = vmatpush2.msra.mxu0 0.0
        %1171 = vmatprep.subr.mxu0 0.0
        %1172 = vmatpush2.msra.mxu0 0.0
        %1173 = vmatprep.subr.mxu0 0.0
        %1174 = vmatpush2.msra.mxu0 0.0
        %1175 = vmatprep.subr.mxu0 0.0
        %1176 = vmatpush2.msra.mxu0 0.0
        %1177 = vmatprep.subr.mxu0 0.0
        %1178 = vmatpush2.msra.mxu0 0.0
        %1179 = vmatprep.subr.mxu0 0.0
        %1180 = vmatpush2.msra.mxu0 0.0
        %1181 = vmatprep.mubr.f32.mxu0 0.0
        %1182 = vmatmul.mubr.f32.gmra.mxu0 %v1067
        %v1183 = vpop.f32.mrf.mxu0
        %v1184 = vadd.f32 %v988, %v1183
        %v1185 = vpop.f32.mrf.mxu0
        %1186 = vmatprep.mubr.f32.mxu0 0.0
        %1187 = vmatmul.mubr.f32.gmra.mxu0 %v1070
        %v1188 = vpop.f32.mrf.mxu0
        %v1189 = vadd.f32 %v993, %v1188
        %v1190 = vpop.f32.mrf.mxu0
        %1191 = vmatprep.mubr.f32.mxu0 0.0
        %1192 = vmatmul.mubr.f32.gmra.mxu0 %v1073
        %v1193 = vpop.f32.mrf.mxu0
        %v1194 = vadd.f32 %v998, %v1193
        %v1195 = vpop.f32.mrf.mxu0
        %1196 = vmatprep.mubr.f32.mxu0 0.0
        %1197 = vmatmul.mubr.f32.gmra.mxu0 %v1076
        %v1198 = vpop.f32.mrf.mxu0
        %v1199 = vadd.f32 %v1003, %v1198
        %v1200 = vpop.f32.mrf.mxu0
        %1201 = vmatprep.mubr.f32.mxu0 0.0
        %1202 = vmatmul.mubr.f32.gmra.mxu0 %v1079
        %v1203 = vpop.f32.mrf.mxu0
        %v1204 = vadd.f32 %v1008, %v1203
        %v1205 = vpop.f32.mrf.mxu0
        %1206 = vmatprep.mubr.f32.mxu0 0.0
        %1207 = vmatmul.mubr.f32.gmra.mxu0 %v1082
        %v1208 = vpop.f32.mrf.mxu0
        %v1209 = vadd.f32 %v1013, %v1208
        %v1210 = vpop.f32.mrf.mxu0
        %1211 = vmatprep.mubr.f32.mxu0 0.0
        %1212 = vmatmul.mubr.f32.gmra.mxu0 %v1085
        %v1213 = vpop.f32.mrf.mxu0
        %v1214 = vadd.f32 %v1018, %v1213
        %v1215 = vpop.f32.mrf.mxu0
        %1216 = vmatprep.mubr.f32.mxu0 0.0
        %1217 = vmatmul.mubr.f32.gmra.mxu0 %v1088
        %v1218 = vpop.f32.mrf.mxu0
        %v1219 = vadd.f32 %v1023, %v1218
        %v1220 = vpop.f32.mrf.mxu0
        %1221 = vmatprep.mubr.f32.mxu0 0.0
        %1222 = vmatmul.mubr.f32.gmra.mxu0 %v1091
        %v1223 = vpop.f32.mrf.mxu0
        %v1224 = vadd.f32 %v1028, %v1223
        %v1225 = vpop.f32.mrf.mxu0
        %1226 = vmatprep.mubr.f32.mxu0 0.0
        %1227 = vmatmul.mubr.f32.gmra.mxu0 %v1094
        %v1228 = vpop.f32.mrf.mxu0
        %v1229 = vadd.f32 %v1033, %v1228
        %v1230 = vpop.f32.mrf.mxu0
        %1231 = vmatprep.mubr.f32.mxu0 0.0
        %1232 = vmatmul.mubr.f32.gmra.mxu0 %v1097
        %v1233 = vpop.f32.mrf.mxu0
        %v1234 = vadd.f32 %v1038, %v1233
        %v1235 = vpop.f32.mrf.mxu0
        %1236 = vmatprep.mubr.f32.mxu0 0.0
        %1237 = vmatmul.mubr.f32.gmra.mxu0 %v1100
        %v1238 = vpop.f32.mrf.mxu0
        %v1239 = vadd.f32 %v1043, %v1238
        %v1240 = vpop.f32.mrf.mxu0
        %1241 = vmatprep.mubr.f32.mxu0 0.0
        %1242 = vmatmul.mubr.f32.gmra.mxu0 %v1103
        %v1243 = vpop.f32.mrf.mxu0
        %v1244 = vadd.f32 %v1048, %v1243
        %v1245 = vpop.f32.mrf.mxu0
        %1246 = vmatprep.mubr.f32.mxu0 0.0
        %1247 = vmatmul.mubr.f32.gmra.mxu0 %v1106
        %v1248 = vpop.f32.mrf.mxu0
        %v1249 = vadd.f32 %v1053, %v1248
        %v1250 = vpop.f32.mrf.mxu0
        %1251 = vmatprep.mubr.f32.mxu0 0.0
        %1252 = vmatmul.mubr.f32.gmra.mxu0 %v1109
        %v1253 = vpop.f32.mrf.mxu0
        %v1254 = vadd.f32 %v1058, %v1253
        %v1255 = vpop.f32.mrf.mxu0
        %1256 = vmatprep.mubr.f32.mxu0 0.0
        %1257 = vmatmul.mubr.f32.gmra.mxu0 %v1112
        %v1258 = vpop.f32.mrf.mxu0
        %v1259 = vadd.f32 %v1063, %v1258
        %v1260 = vpop.f32.mrf.mxu0
        %1261 = vdwg.mxu0
        %s1262 = scalar_lea.vmem [#allocation6], 8
        %v1263 = vld [vmem:[%s1262] sm:$0xf]
        %v1265 = vsel %vm587, %v846, 0
        %v1268 = vsel %vm587, %v847, 0
        %v1271 = vsel %vm587, %v848, 0
        %v1274 = vsel %vm587, %v849, 0
        %v1277 = vsel %vm587, %v850, 0
        %v1280 = vsel %vm587, %v851, 0
        %v1283 = vsel %vm587, %v852, 0
        %v1286 = vsel %vm587, %v853, 0
        %v1289 = vsel %vm587, %v854, 0
        %v1292 = vsel %vm587, %v855, 0
        %v1295 = vsel %vm587, %v856, 0
        %v1298 = vsel %vm587, %v857, 0
        %v1301 = vsel %vm587, %v858, 0
        %v1304 = vsel %vm587, %v859, 0
        %v1307 = vsel %vm587, %v860, 0
        %v1310 = vsel %vm587, %v861, 0
        %v1313 = vsel %vm917, %v1263, 0
        %1315 = vmatprep.subr.mxu0 0.0
        %1316 = vmatpush1.msra.mxu0 0.0
        %1317 = vmatprep.subr.mxu0 0.0
        %1318 = vmatpush1.msra.mxu0 0.0
        %1319 = vmatprep.subr.mxu0 0.0
        %1320 = vmatpush1.msra.mxu0 0.0
        %1321 = vmatprep.subr.mxu0 0.0
        %1322 = vmatpush1.msra.mxu0 0.0
        %1323 = vmatprep.subr.mxu0 0.0
        %1324 = vmatpush1.msra.mxu0 0.0
        %1325 = vmatprep.subr.mxu0 0.0
        %1326 = vmatpush1.msra.mxu0 0.0
        %1327 = vmatprep.subr.mxu0 0.0
        %1328 = vmatpush1.msra.mxu0 0.0
        %1329 = vmatprep.subr.mxu0 0.0
        %1330 = vmatpush1.msra.mxu0 0.0
        %1331 = vmatprep.subr.mxu0 0.0
        %1332 = vmatpush1.msra.mxu0 0.0
        %1333 = vmatprep.subr.mxu0 0.0
        %1334 = vmatpush1.msra.mxu0 0.0
        %1335 = vmatprep.subr.mxu0 0.0
        %1336 = vmatpush1.msra.mxu0 0.0
        %1337 = vmatprep.subr.mxu0 0.0
        %1338 = vmatpush1.msra.mxu0 0.0
        %1339 = vmatprep.subr.mxu0 0.0
        %1340 = vmatpush1.msra.mxu0 0.0
        %1341 = vmatprep.subr.mxu0 0.0
        %1342 = vmatpush1.msra.mxu0 0.0
        %1343 = vmatprep.subr.mxu0 0.0
        %1344 = vmatpush1.msra.mxu0 0.0
        %1345 = vmatprep.subr.mxu0 0.0
        %1346 = vmatpush1.msra.mxu0 %v1313
        %1347 = vmatprep.subr.mxu0 0.0
        %1348 = vmatpush2.msra.mxu0 0.0
        %1349 = vmatprep.subr.mxu0 0.0
        %1350 = vmatpush2.msra.mxu0 0.0
        %1351 = vmatprep.subr.mxu0 0.0
        %1352 = vmatpush2.msra.mxu0 0.0
        %1353 = vmatprep.subr.mxu0 0.0
        %1354 = vmatpush2.msra.mxu0 0.0
        %1355 = vmatprep.subr.mxu0 0.0
        %1356 = vmatpush2.msra.mxu0 0.0
        %1357 = vmatprep.subr.mxu0 0.0
        %1358 = vmatpush2.msra.mxu0 0.0
        %1359 = vmatprep.subr.mxu0 0.0
        %1360 = vmatpush2.msra.mxu0 0.0
        %1361 = vmatprep.subr.mxu0 0.0
        %1362 = vmatpush2.msra.mxu0 0.0
        %1363 = vmatprep.subr.mxu0 0.0
        %1364 = vmatpush2.msra.mxu0 0.0
        %1365 = vmatprep.subr.mxu0 0.0
        %1366 = vmatpush2.msra.mxu0 0.0
        %1367 = vmatprep.subr.mxu0 0.0
        %1368 = vmatpush2.msra.mxu0 0.0
        %1369 = vmatprep.subr.mxu0 0.0
        %1370 = vmatpush2.msra.mxu0 0.0
        %1371 = vmatprep.subr.mxu0 0.0
        %1372 = vmatpush2.msra.mxu0 0.0
        %1373 = vmatprep.subr.mxu0 0.0
        %1374 = vmatpush2.msra.mxu0 0.0
        %1375 = vmatprep.subr.mxu0 0.0
        %1376 = vmatpush2.msra.mxu0 0.0
        %1377 = vmatprep.subr.mxu0 0.0
        %1378 = vmatpush2.msra.mxu0 0.0
        %1379 = vmatprep.mubr.f32.mxu0 0.0
        %1380 = vmatmul.mubr.f32.gmra.mxu0 %v1265
        %v1381 = vpop.f32.mrf.mxu0
        %v1382 = vadd.f32 0.0, %v1381
        %v1383 = vpop.f32.mrf.mxu0
        %1384 = vmatprep.mubr.f32.mxu0 0.0
        %1385 = vmatmul.mubr.f32.gmra.mxu0 %v1268
        %v1386 = vpop.f32.mrf.mxu0
        %v1387 = vadd.f32 0.0, %v1386
        %v1388 = vpop.f32.mrf.mxu0
        %1389 = vmatprep.mubr.f32.mxu0 0.0
        %1390 = vmatmul.mubr.f32.gmra.mxu0 %v1271
        %v1391 = vpop.f32.mrf.mxu0
        %v1392 = vadd.f32 0.0, %v1391
        %v1393 = vpop.f32.mrf.mxu0
        %1394 = vmatprep.mubr.f32.mxu0 0.0
        %1395 = vmatmul.mubr.f32.gmra.mxu0 %v1274
        %v1396 = vpop.f32.mrf.mxu0
        %v1397 = vadd.f32 0.0, %v1396
        %v1398 = vpop.f32.mrf.mxu0
        %1399 = vmatprep.mubr.f32.mxu0 0.0
        %1400 = vmatmul.mubr.f32.gmra.mxu0 %v1277
        %v1401 = vpop.f32.mrf.mxu0
        %v1402 = vadd.f32 0.0, %v1401
        %v1403 = vpop.f32.mrf.mxu0
        %1404 = vmatprep.mubr.f32.mxu0 0.0
        %1405 = vmatmul.mubr.f32.gmra.mxu0 %v1280
        %v1406 = vpop.f32.mrf.mxu0
        %v1407 = vadd.f32 0.0, %v1406
        %v1408 = vpop.f32.mrf.mxu0
        %1409 = vmatprep.mubr.f32.mxu0 0.0
        %1410 = vmatmul.mubr.f32.gmra.mxu0 %v1283
        %v1411 = vpop.f32.mrf.mxu0
        %v1412 = vadd.f32 0.0, %v1411
        %v1413 = vpop.f32.mrf.mxu0
        %1414 = vmatprep.mubr.f32.mxu0 0.0
        %1415 = vmatmul.mubr.f32.gmra.mxu0 %v1286
        %v1416 = vpop.f32.mrf.mxu0
        %v1417 = vadd.f32 0.0, %v1416
        %v1418 = vpop.f32.mrf.mxu0
        %1419 = vmatprep.mubr.f32.mxu0 0.0
        %1420 = vmatmul.mubr.f32.gmra.mxu0 %v1289
        %v1421 = vpop.f32.mrf.mxu0
        %v1422 = vadd.f32 0.0, %v1421
        %v1423 = vpop.f32.mrf.mxu0
        %1424 = vmatprep.mubr.f32.mxu0 0.0
        %1425 = vmatmul.mubr.f32.gmra.mxu0 %v1292
        %v1426 = vpop.f32.mrf.mxu0
        %v1427 = vadd.f32 0.0, %v1426
        %v1428 = vpop.f32.mrf.mxu0
        %1429 = vmatprep.mubr.f32.mxu0 0.0
        %1430 = vmatmul.mubr.f32.gmra.mxu0 %v1295
        %v1431 = vpop.f32.mrf.mxu0
        %v1432 = vadd.f32 0.0, %v1431
        %v1433 = vpop.f32.mrf.mxu0
        %1434 = vmatprep.mubr.f32.mxu0 0.0
        %1435 = vmatmul.mubr.f32.gmra.mxu0 %v1298
        %v1436 = vpop.f32.mrf.mxu0
        %v1437 = vadd.f32 0.0, %v1436
        %v1438 = vpop.f32.mrf.mxu0
        %1439 = vmatprep.mubr.f32.mxu0 0.0
        %1440 = vmatmul.mubr.f32.gmra.mxu0 %v1301
        %v1441 = vpop.f32.mrf.mxu0
        %v1442 = vadd.f32 0.0, %v1441
        %v1443 = vpop.f32.mrf.mxu0
        %1444 = vmatprep.mubr.f32.mxu0 0.0
        %1445 = vmatmul.mubr.f32.gmra.mxu0 %v1304
        %v1446 = vpop.f32.mrf.mxu0
        %v1447 = vadd.f32 0.0, %v1446
        %v1448 = vpop.f32.mrf.mxu0
        %1449 = vmatprep.mubr.f32.mxu0 0.0
        %1450 = vmatmul.mubr.f32.gmra.mxu0 %v1307
        %v1451 = vpop.f32.mrf.mxu0
        %v1452 = vadd.f32 0.0, %v1451
        %v1453 = vpop.f32.mrf.mxu0
        %1454 = vmatprep.mubr.f32.mxu0 0.0
        %1455 = vmatmul.mubr.f32.gmra.mxu0 %v1310
        %v1456 = vpop.f32.mrf.mxu0
        %v1457 = vadd.f32 0.0, %v1456
        %v1458 = vpop.f32.mrf.mxu0
        %1459 = vdwg.mxu0
        %v1460 = vadd.f32 %v1184, %v1382
        %v1461 = vadd.f32 %v1189, %v1387
        %v1462 = vadd.f32 %v1194, %v1392
        %v1463 = vadd.f32 %v1199, %v1397
        %v1464 = vadd.f32 %v1204, %v1402
        %v1465 = vadd.f32 %v1209, %v1407
        %v1466 = vadd.f32 %v1214, %v1412
        %v1467 = vadd.f32 %v1219, %v1417
        %v1468 = vadd.f32 %v1224, %v1422
        %v1469 = vadd.f32 %v1229, %v1427
        %v1470 = vadd.f32 %v1234, %v1432
        %v1471 = vadd.f32 %v1239, %v1437
        %v1472 = vadd.f32 %v1244, %v1442
        %v1473 = vadd.f32 %v1249, %v1447
        %v1474 = vadd.f32 %v1254, %v1452
        %v1475 = vadd.f32 %v1259, %v1457
        %s1476 = scalar_lea.vmem [#allocation6], 12
        %v1477 = vld [vmem:[%s1476] sm:$0xf]
        %v1479 = vsel %vm587, %v822, 0
        %v1482 = vsel %vm587, %v823, 0
        %v1485 = vsel %vm917, %v1477, 0
        %1487 = vmatprep.subr.mxu0 0.0
        %1488 = vmatpush1.msra.mxu0 0.0
        %1489 = vmatprep.subr.mxu0 0.0
        %1490 = vmatpush1.msra.mxu0 0.0
        %1491 = vmatprep.subr.mxu0 0.0
        %1492 = vmatpush1.msra.mxu0 0.0
        %1493 = vmatprep.subr.mxu0 0.0
        %1494 = vmatpush1.msra.mxu0 0.0
        %1495 = vmatprep.subr.mxu0 0.0
        %1496 = vmatpush1.msra.mxu0 0.0
        %1497 = vmatprep.subr.mxu0 0.0
        %1498 = vmatpush1.msra.mxu0 0.0
        %1499 = vmatprep.subr.mxu0 0.0
        %1500 = vmatpush1.msra.mxu0 0.0
        %1501 = vmatprep.subr.mxu0 0.0
        %1502 = vmatpush1.msra.mxu0 0.0
        %1503 = vmatprep.subr.mxu0 0.0
        %1504 = vmatpush1.msra.mxu0 0.0
        %1505 = vmatprep.subr.mxu0 0.0
        %1506 = vmatpush1.msra.mxu0 0.0
        %1507 = vmatprep.subr.mxu0 0.0
        %1508 = vmatpush1.msra.mxu0 0.0
        %1509 = vmatprep.subr.mxu0 0.0
        %1510 = vmatpush1.msra.mxu0 0.0
        %1511 = vmatprep.subr.mxu0 0.0
        %1512 = vmatpush1.msra.mxu0 0.0
        %1513 = vmatprep.subr.mxu0 0.0
        %1514 = vmatpush1.msra.mxu0 0.0
        %1515 = vmatprep.subr.mxu0 0.0
        %1516 = vmatpush1.msra.mxu0 0.0
        %1517 = vmatprep.subr.mxu0 0.0
        %1518 = vmatpush1.msra.mxu0 %v1485
        %1519 = vmatprep.subr.mxu0 0.0
        %1520 = vmatpush2.msra.mxu0 0.0
        %1521 = vmatprep.subr.mxu0 0.0
        %1522 = vmatpush2.msra.mxu0 0.0
        %1523 = vmatprep.subr.mxu0 0.0
        %1524 = vmatpush2.msra.mxu0 0.0
        %1525 = vmatprep.subr.mxu0 0.0
        %1526 = vmatpush2.msra.mxu0 0.0
        %1527 = vmatprep.subr.mxu0 0.0
        %1528 = vmatpush2.msra.mxu0 0.0
        %1529 = vmatprep.subr.mxu0 0.0
        %1530 = vmatpush2.msra.mxu0 0.0
        %1531 = vmatprep.subr.mxu0 0.0
        %1532 = vmatpush2.msra.mxu0 0.0
        %1533 = vmatprep.subr.mxu0 0.0
        %1534 = vmatpush2.msra.mxu0 0.0
        %1535 = vmatprep.subr.mxu0 0.0
        %1536 = vmatpush2.msra.mxu0 0.0
        %1537 = vmatprep.subr.mxu0 0.0
        %1538 = vmatpush2.msra.mxu0 0.0
        %1539 = vmatprep.subr.mxu0 0.0
        %1540 = vmatpush2.msra.mxu0 0.0
        %1541 = vmatprep.subr.mxu0 0.0
        %1542 = vmatpush2.msra.mxu0 0.0
        %1543 = vmatprep.subr.mxu0 0.0
        %1544 = vmatpush2.msra.mxu0 0.0
        %1545 = vmatprep.subr.mxu0 0.0
        %1546 = vmatpush2.msra.mxu0 0.0
        %1547 = vmatprep.subr.mxu0 0.0
        %1548 = vmatpush2.msra.mxu0 0.0
        %1549 = vmatprep.subr.mxu0 0.0
        %1550 = vmatpush2.msra.mxu0 0.0
        %1551 = vmatprep.mubr.f32.mxu0 0.0
        %1552 = vmatmul.mubr.f32.gmra.mxu0 %v1073
        %v1553 = vpop.f32.mrf.mxu0
        %v1554 = vadd.f32 0.0, %v1553
        %v1555 = vpop.f32.mrf.mxu0
        %1556 = vmatprep.mubr.f32.mxu0 0.0
        %1557 = vmatmul.mubr.f32.gmra.mxu0 %v1076
        %v1558 = vpop.f32.mrf.mxu0
        %v1559 = vadd.f32 0.0, %v1558
        %v1560 = vpop.f32.mrf.mxu0
        %1561 = vmatprep.mubr.f32.mxu0 0.0
        %1562 = vmatmul.mubr.f32.gmra.mxu0 %v1079
        %v1563 = vpop.f32.mrf.mxu0
        %v1564 = vadd.f32 0.0, %v1563
        %v1565 = vpop.f32.mrf.mxu0
        %1566 = vmatprep.mubr.f32.mxu0 0.0
        %1567 = vmatmul.mubr.f32.gmra.mxu0 %v1082
        %v1568 = vpop.f32.mrf.mxu0
        %v1569 = vadd.f32 0.0, %v1568
        %v1570 = vpop.f32.mrf.mxu0
        %1571 = vmatprep.mubr.f32.mxu0 0.0
        %1572 = vmatmul.mubr.f32.gmra.mxu0 %v1085
        %v1573 = vpop.f32.mrf.mxu0
        %v1574 = vadd.f32 0.0, %v1573
        %v1575 = vpop.f32.mrf.mxu0
        %1576 = vmatprep.mubr.f32.mxu0 0.0
        %1577 = vmatmul.mubr.f32.gmra.mxu0 %v1088
        %v1578 = vpop.f32.mrf.mxu0
        %v1579 = vadd.f32 0.0, %v1578
        %v1580 = vpop.f32.mrf.mxu0
        %1581 = vmatprep.mubr.f32.mxu0 0.0
        %1582 = vmatmul.mubr.f32.gmra.mxu0 %v1091
        %v1583 = vpop.f32.mrf.mxu0
        %v1584 = vadd.f32 0.0, %v1583
        %v1585 = vpop.f32.mrf.mxu0
        %1586 = vmatprep.mubr.f32.mxu0 0.0
        %1587 = vmatmul.mubr.f32.gmra.mxu0 %v1094
        %v1588 = vpop.f32.mrf.mxu0
        %v1589 = vadd.f32 0.0, %v1588
        %v1590 = vpop.f32.mrf.mxu0
        %1591 = vmatprep.mubr.f32.mxu0 0.0
        %1592 = vmatmul.mubr.f32.gmra.mxu0 %v1097
        %v1593 = vpop.f32.mrf.mxu0
        %v1594 = vadd.f32 0.0, %v1593
        %v1595 = vpop.f32.mrf.mxu0
        %1596 = vmatprep.mubr.f32.mxu0 0.0
        %1597 = vmatmul.mubr.f32.gmra.mxu0 %v1100
        %v1598 = vpop.f32.mrf.mxu0
        %v1599 = vadd.f32 0.0, %v1598
        %v1600 = vpop.f32.mrf.mxu0
        %1601 = vmatprep.mubr.f32.mxu0 0.0
        %1602 = vmatmul.mubr.f32.gmra.mxu0 %v1103
        %v1603 = vpop.f32.mrf.mxu0
        %v1604 = vadd.f32 0.0, %v1603
        %v1605 = vpop.f32.mrf.mxu0
        %1606 = vmatprep.mubr.f32.mxu0 0.0
        %1607 = vmatmul.mubr.f32.gmra.mxu0 %v1106
        %v1608 = vpop.f32.mrf.mxu0
        %v1609 = vadd.f32 0.0, %v1608
        %v1610 = vpop.f32.mrf.mxu0
        %1611 = vmatprep.mubr.f32.mxu0 0.0
        %1612 = vmatmul.mubr.f32.gmra.mxu0 %v1109
        %v1613 = vpop.f32.mrf.mxu0
        %v1614 = vadd.f32 0.0, %v1613
        %v1615 = vpop.f32.mrf.mxu0
        %1616 = vmatprep.mubr.f32.mxu0 0.0
        %1617 = vmatmul.mubr.f32.gmra.mxu0 %v1112
        %v1618 = vpop.f32.mrf.mxu0
        %v1619 = vadd.f32 0.0, %v1618
        %v1620 = vpop.f32.mrf.mxu0
        %1621 = vmatprep.mubr.f32.mxu0 0.0
        %1622 = vmatmul.mubr.f32.gmra.mxu0 %v1479
        %v1623 = vpop.f32.mrf.mxu0
        %v1624 = vadd.f32 0.0, %v1623
        %v1625 = vpop.f32.mrf.mxu0
        %1626 = vmatprep.mubr.f32.mxu0 0.0
        %1627 = vmatmul.mubr.f32.gmra.mxu0 %v1482
        %v1628 = vpop.f32.mrf.mxu0
        %v1629 = vadd.f32 0.0, %v1628
        %v1630 = vpop.f32.mrf.mxu0
        %1631 = vdwg.mxu0
        %v1632 = vadd.f32 %v1460, %v1554
        %v1633 = vadd.f32 %v1461, %v1559
        %v1634 = vadd.f32 %v1462, %v1564
        %v1635 = vadd.f32 %v1463, %v1569
        %v1636 = vadd.f32 %v1464, %v1574
        %v1637 = vadd.f32 %v1465, %v1579
        %v1638 = vadd.f32 %v1466, %v1584
        %v1639 = vadd.f32 %v1467, %v1589
        %v1640 = vadd.f32 %v1468, %v1594
        %v1641 = vadd.f32 %v1469, %v1599
        %v1642 = vadd.f32 %v1470, %v1604
        %v1643 = vadd.f32 %v1471, %v1609
        %v1644 = vadd.f32 %v1472, %v1614
        %v1645 = vadd.f32 %v1473, %v1619
        %v1646 = vadd.f32 %v1474, %v1624
        %v1647 = vadd.f32 %v1475, %v1629
        %s1648 = scalar_lea.vmem [#allocation6], 16
        %v1649 = vld [vmem:[%s1648] sm:$0xf]
        %v1651 = vsel %vm587, %v842, 0
        %v1654 = vsel %vm587, %v843, 0
        %v1657 = vsel %vm917, %v1649, 0
        %1659 = vmatprep.subr.mxu0 0.0
        %1660 = vmatpush1.msra.mxu0 0.0
        %1661 = vmatprep.subr.mxu0 0.0
        %1662 = vmatpush1.msra.mxu0 0.0
        %1663 = vmatprep.subr.mxu0 0.0
        %1664 = vmatpush1.msra.mxu0 0.0
        %1665 = vmatprep.subr.mxu0 0.0
        %1666 = vmatpush1.msra.mxu0 0.0
        %1667 = vmatprep.subr.mxu0 0.0
        %1668 = vmatpush1.msra.mxu0 0.0
        %1669 = vmatprep.subr.mxu0 0.0
        %1670 = vmatpush1.msra.mxu0 0.0
        %1671 = vmatprep.subr.mxu0 0.0
        %1672 = vmatpush1.msra.mxu0 0.0
        %1673 = vmatprep.subr.mxu0 0.0
        %1674 = vmatpush1.msra.mxu0 0.0
        %1675 = vmatprep.subr.mxu0 0.0
        %1676 = vmatpush1.msra.mxu0 0.0
        %1677 = vmatprep.subr.mxu0 0.0
        %1678 = vmatpush1.msra.mxu0 0.0
        %1679 = vmatprep.subr.mxu0 0.0
        %1680 = vmatpush1.msra.mxu0 0.0
        %1681 = vmatprep.subr.mxu0 0.0
        %1682 = vmatpush1.msra.mxu0 0.0
        %1683 = vmatprep.subr.mxu0 0.0
        %1684 = vmatpush1.msra.mxu0 0.0
        %1685 = vmatprep.subr.mxu0 0.0
        %1686 = vmatpush1.msra.mxu0 0.0
        %1687 = vmatprep.subr.mxu0 0.0
        %1688 = vmatpush1.msra.mxu0 0.0
        %1689 = vmatprep.subr.mxu0 0.0
        %1690 = vmatpush1.msra.mxu0 %v1657
        %1691 = vmatprep.subr.mxu0 0.0
        %1692 = vmatpush2.msra.mxu0 0.0
        %1693 = vmatprep.subr.mxu0 0.0
        %1694 = vmatpush2.msra.mxu0 0.0
        %1695 = vmatprep.subr.mxu0 0.0
        %1696 = vmatpush2.msra.mxu0 0.0
        %1697 = vmatprep.subr.mxu0 0.0
        %1698 = vmatpush2.msra.mxu0 0.0
        %1699 = vmatprep.subr.mxu0 0.0
        %1700 = vmatpush2.msra.mxu0 0.0
        %1701 = vmatprep.subr.mxu0 0.0
        %1702 = vmatpush2.msra.mxu0 0.0
        %1703 = vmatprep.subr.mxu0 0.0
        %1704 = vmatpush2.msra.mxu0 0.0
        %1705 = vmatprep.subr.mxu0 0.0
        %1706 = vmatpush2.msra.mxu0 0.0
        %1707 = vmatprep.subr.mxu0 0.0
        %1708 = vmatpush2.msra.mxu0 0.0
        %1709 = vmatprep.subr.mxu0 0.0
        %1710 = vmatpush2.msra.mxu0 0.0
        %1711 = vmatprep.subr.mxu0 0.0
        %1712 = vmatpush2.msra.mxu0 0.0
        %1713 = vmatprep.subr.mxu0 0.0
        %1714 = vmatpush2.msra.mxu0 0.0
        %1715 = vmatprep.subr.mxu0 0.0
        %1716 = vmatpush2.msra.mxu0 0.0
        %1717 = vmatprep.subr.mxu0 0.0
        %1718 = vmatpush2.msra.mxu0 0.0
        %1719 = vmatprep.subr.mxu0 0.0
        %1720 = vmatpush2.msra.mxu0 0.0
        %1721 = vmatprep.subr.mxu0 0.0
        %1722 = vmatpush2.msra.mxu0 0.0
        %1723 = vmatprep.mubr.f32.mxu0 0.0
        %1724 = vmatmul.mubr.f32.gmra.mxu0 %v876
        %v1725 = vpop.f32.mrf.mxu0
        %v1726 = vadd.f32 0.0, %v1725
        %v1727 = vpop.f32.mrf.mxu0
        %1728 = vmatprep.mubr.f32.mxu0 0.0
        %1729 = vmatmul.mubr.f32.gmra.mxu0 %v879
        %v1730 = vpop.f32.mrf.mxu0
        %v1731 = vadd.f32 0.0, %v1730
        %v1732 = vpop.f32.mrf.mxu0
        %1733 = vmatprep.mubr.f32.mxu0 0.0
        %1734 = vmatmul.mubr.f32.gmra.mxu0 %v882
        %v1735 = vpop.f32.mrf.mxu0
        %v1736 = vadd.f32 0.0, %v1735
        %v1737 = vpop.f32.mrf.mxu0
        %1738 = vmatprep.mubr.f32.mxu0 0.0
        %1739 = vmatmul.mubr.f32.gmra.mxu0 %v885
        %v1740 = vpop.f32.mrf.mxu0
        %v1741 = vadd.f32 0.0, %v1740
        %v1742 = vpop.f32.mrf.mxu0
        %1743 = vmatprep.mubr.f32.mxu0 0.0
        %1744 = vmatmul.mubr.f32.gmra.mxu0 %v888
        %v1745 = vpop.f32.mrf.mxu0
        %v1746 = vadd.f32 0.0, %v1745
        %v1747 = vpop.f32.mrf.mxu0
        %1748 = vmatprep.mubr.f32.mxu0 0.0
        %1749 = vmatmul.mubr.f32.gmra.mxu0 %v891
        %v1750 = vpop.f32.mrf.mxu0
        %v1751 = vadd.f32 0.0, %v1750
        %v1752 = vpop.f32.mrf.mxu0
        %1753 = vmatprep.mubr.f32.mxu0 0.0
        %1754 = vmatmul.mubr.f32.gmra.mxu0 %v894
        %v1755 = vpop.f32.mrf.mxu0
        %v1756 = vadd.f32 0.0, %v1755
        %v1757 = vpop.f32.mrf.mxu0
        %1758 = vmatprep.mubr.f32.mxu0 0.0
        %1759 = vmatmul.mubr.f32.gmra.mxu0 %v897
        %v1760 = vpop.f32.mrf.mxu0
        %v1761 = vadd.f32 0.0, %v1760
        %v1762 = vpop.f32.mrf.mxu0
        %1763 = vmatprep.mubr.f32.mxu0 0.0
        %1764 = vmatmul.mubr.f32.gmra.mxu0 %v900
        %v1765 = vpop.f32.mrf.mxu0
        %v1766 = vadd.f32 0.0, %v1765
        %v1767 = vpop.f32.mrf.mxu0
        %1768 = vmatprep.mubr.f32.mxu0 0.0
        %1769 = vmatmul.mubr.f32.gmra.mxu0 %v903
        %v1770 = vpop.f32.mrf.mxu0
        %v1771 = vadd.f32 0.0, %v1770
        %v1772 = vpop.f32.mrf.mxu0
        %1773 = vmatprep.mubr.f32.mxu0 0.0
        %1774 = vmatmul.mubr.f32.gmra.mxu0 %v906
        %v1775 = vpop.f32.mrf.mxu0
        %v1776 = vadd.f32 0.0, %v1775
        %v1777 = vpop.f32.mrf.mxu0
        %1778 = vmatprep.mubr.f32.mxu0 0.0
        %1779 = vmatmul.mubr.f32.gmra.mxu0 %v909
        %v1780 = vpop.f32.mrf.mxu0
        %v1781 = vadd.f32 0.0, %v1780
        %v1782 = vpop.f32.mrf.mxu0
        %1783 = vmatprep.mubr.f32.mxu0 0.0
        %1784 = vmatmul.mubr.f32.gmra.mxu0 %v912
        %v1785 = vpop.f32.mrf.mxu0
        %v1786 = vadd.f32 0.0, %v1785
        %v1787 = vpop.f32.mrf.mxu0
        %1788 = vmatprep.mubr.f32.mxu0 0.0
        %1789 = vmatmul.mubr.f32.gmra.mxu0 %v915
        %v1790 = vpop.f32.mrf.mxu0
        %v1791 = vadd.f32 0.0, %v1790
        %v1792 = vpop.f32.mrf.mxu0
        %1793 = vmatprep.mubr.f32.mxu0 0.0
        %1794 = vmatmul.mubr.f32.gmra.mxu0 %v1651
        %v1795 = vpop.f32.mrf.mxu0
        %v1796 = vadd.f32 0.0, %v1795
        %v1797 = vpop.f32.mrf.mxu0
        %1798 = vmatprep.mubr.f32.mxu0 0.0
        %1799 = vmatmul.mubr.f32.gmra.mxu0 %v1654
        %v1800 = vpop.f32.mrf.mxu0
        %v1801 = vadd.f32 0.0, %v1800
        %v1802 = vpop.f32.mrf.mxu0
        %1803 = vdwg.mxu0
        %v1804 = vadd.f32 %v1632, %v1726
        %v1805 = vadd.f32 %v1633, %v1731
        %v1806 = vadd.f32 %v1634, %v1736
        %v1807 = vadd.f32 %v1635, %v1741
        %v1808 = vadd.f32 %v1636, %v1746
        %v1809 = vadd.f32 %v1637, %v1751
        %v1810 = vadd.f32 %v1638, %v1756
        %v1811 = vadd.f32 %v1639, %v1761
        %v1812 = vadd.f32 %v1640, %v1766
        %v1813 = vadd.f32 %v1641, %v1771
        %v1814 = vadd.f32 %v1642, %v1776
        %v1815 = vadd.f32 %v1643, %v1781
        %v1816 = vadd.f32 %v1644, %v1786
        %v1817 = vadd.f32 %v1645, %v1791
        %v1818 = vadd.f32 %v1646, %v1796
        %v1819 = vadd.f32 %v1647, %v1801
        %s1820 = scalar_lea.vmem [#allocation6], 20
        %v1821 = vld [vmem:[%s1820] sm:$0xf]
        %v1823 = vsel %vm587, %v862, 0
        %v1826 = vsel %vm587, %v863, 0
        %v1829 = vsel %vm917, %v1821, 0
        %1831 = vmatprep.subr.mxu0 0.0
        %1832 = vmatpush1.msra.mxu0 0.0
        %1833 = vmatprep.subr.mxu0 0.0
        %1834 = vmatpush1.msra.mxu0 0.0
        %1835 = vmatprep.subr.mxu0 0.0
        %1836 = vmatpush1.msra.mxu0 0.0
        %1837 = vmatprep.subr.mxu0 0.0
        %1838 = vmatpush1.msra.mxu0 0.0
        %1839 = vmatprep.subr.mxu0 0.0
        %1840 = vmatpush1.msra.mxu0 0.0
        %1841 = vmatprep.subr.mxu0 0.0
        %1842 = vmatpush1.msra.mxu0 0.0
        %1843 = vmatprep.subr.mxu0 0.0
        %1844 = vmatpush1.msra.mxu0 0.0
        %1845 = vmatprep.subr.mxu0 0.0
        %1846 = vmatpush1.msra.mxu0 0.0
        %1847 = vmatprep.subr.mxu0 0.0
        %1848 = vmatpush1.msra.mxu0 0.0
        %1849 = vmatprep.subr.mxu0 0.0
        %1850 = vmatpush1.msra.mxu0 0.0
        %1851 = vmatprep.subr.mxu0 0.0
        %1852 = vmatpush1.msra.mxu0 0.0
        %1853 = vmatprep.subr.mxu0 0.0
        %1854 = vmatpush1.msra.mxu0 0.0
        %1855 = vmatprep.subr.mxu0 0.0
        %1856 = vmatpush1.msra.mxu0 0.0
        %1857 = vmatprep.subr.mxu0 0.0
        %1858 = vmatpush1.msra.mxu0 0.0
        %1859 = vmatprep.subr.mxu0 0.0
        %1860 = vmatpush1.msra.mxu0 0.0
        %1861 = vmatprep.subr.mxu0 0.0
        %1862 = vmatpush1.msra.mxu0 %v1829
        %1863 = vmatprep.subr.mxu0 0.0
        %1864 = vmatpush2.msra.mxu0 0.0
        %1865 = vmatprep.subr.mxu0 0.0
        %1866 = vmatpush2.msra.mxu0 0.0
        %1867 = vmatprep.subr.mxu0 0.0
        %1868 = vmatpush2.msra.mxu0 0.0
        %1869 = vmatprep.subr.mxu0 0.0
        %1870 = vmatpush2.msra.mxu0 0.0
        %1871 = vmatprep.subr.mxu0 0.0
        %1872 = vmatpush2.msra.mxu0 0.0
        %1873 = vmatprep.subr.mxu0 0.0
        %1874 = vmatpush2.msra.mxu0 0.0
        %1875 = vmatprep.subr.mxu0 0.0
        %1876 = vmatpush2.msra.mxu0 0.0
        %1877 = vmatprep.subr.mxu0 0.0
        %1878 = vmatpush2.msra.mxu0 0.0
        %1879 = vmatprep.subr.mxu0 0.0
        %1880 = vmatpush2.msra.mxu0 0.0
        %1881 = vmatprep.subr.mxu0 0.0
        %1882 = vmatpush2.msra.mxu0 0.0
        %1883 = vmatprep.subr.mxu0 0.0
        %1884 = vmatpush2.msra.mxu0 0.0
        %1885 = vmatprep.subr.mxu0 0.0
        %1886 = vmatpush2.msra.mxu0 0.0
        %1887 = vmatprep.subr.mxu0 0.0
        %1888 = vmatpush2.msra.mxu0 0.0
        %1889 = vmatprep.subr.mxu0 0.0
        %1890 = vmatpush2.msra.mxu0 0.0
        %1891 = vmatprep.subr.mxu0 0.0
        %1892 = vmatpush2.msra.mxu0 0.0
        %1893 = vmatprep.subr.mxu0 0.0
        %1894 = vmatpush2.msra.mxu0 0.0
        %1895 = vmatprep.mubr.f32.mxu0 0.0
        %1896 = vmatmul.mubr.f32.gmra.mxu0 %v1271
        %v1897 = vpop.f32.mrf.mxu0
        %v1898 = vadd.f32 0.0, %v1897
        %v1899 = vpop.f32.mrf.mxu0
        %1900 = vmatprep.mubr.f32.mxu0 0.0
        %1901 = vmatmul.mubr.f32.gmra.mxu0 %v1274
        %v1902 = vpop.f32.mrf.mxu0
        %v1903 = vadd.f32 0.0, %v1902
        %v1904 = vpop.f32.mrf.mxu0
        %1905 = vmatprep.mubr.f32.mxu0 0.0
        %1906 = vmatmul.mubr.f32.gmra.mxu0 %v1277
        %v1907 = vpop.f32.mrf.mxu0
        %v1908 = vadd.f32 0.0, %v1907
        %v1909 = vpop.f32.mrf.mxu0
        %1910 = vmatprep.mubr.f32.mxu0 0.0
        %1911 = vmatmul.mubr.f32.gmra.mxu0 %v1280
        %v1912 = vpop.f32.mrf.mxu0
        %v1913 = vadd.f32 0.0, %v1912
        %v1914 = vpop.f32.mrf.mxu0
        %1915 = vmatprep.mubr.f32.mxu0 0.0
        %1916 = vmatmul.mubr.f32.gmra.mxu0 %v1283
        %v1917 = vpop.f32.mrf.mxu0
        %v1918 = vadd.f32 0.0, %v1917
        %v1919 = vpop.f32.mrf.mxu0
        %1920 = vmatprep.mubr.f32.mxu0 0.0
        %1921 = vmatmul.mubr.f32.gmra.mxu0 %v1286
        %v1922 = vpop.f32.mrf.mxu0
        %v1923 = vadd.f32 0.0, %v1922
        %v1924 = vpop.f32.mrf.mxu0
        %1925 = vmatprep.mubr.f32.mxu0 0.0
        %1926 = vmatmul.mubr.f32.gmra.mxu0 %v1289
        %v1927 = vpop.f32.mrf.mxu0
        %v1928 = vadd.f32 0.0, %v1927
        %v1929 = vpop.f32.mrf.mxu0
        %1930 = vmatprep.mubr.f32.mxu0 0.0
        %1931 = vmatmul.mubr.f32.gmra.mxu0 %v1292
        %v1932 = vpop.f32.mrf.mxu0
        %v1933 = vadd.f32 0.0, %v1932
        %v1934 = vpop.f32.mrf.mxu0
        %1935 = vmatprep.mubr.f32.mxu0 0.0
        %1936 = vmatmul.mubr.f32.gmra.mxu0 %v1295
        %v1937 = vpop.f32.mrf.mxu0
        %v1938 = vadd.f32 0.0, %v1937
        %v1939 = vpop.f32.mrf.mxu0
        %1940 = vmatprep.mubr.f32.mxu0 0.0
        %1941 = vmatmul.mubr.f32.gmra.mxu0 %v1298
        %v1942 = vpop.f32.mrf.mxu0
        %v1943 = vadd.f32 0.0, %v1942
        %v1944 = vpop.f32.mrf.mxu0
        %1945 = vmatprep.mubr.f32.mxu0 0.0
        %1946 = vmatmul.mubr.f32.gmra.mxu0 %v1301
        %v1947 = vpop.f32.mrf.mxu0
        %v1948 = vadd.f32 0.0, %v1947
        %v1949 = vpop.f32.mrf.mxu0
        %1950 = vmatprep.mubr.f32.mxu0 0.0
        %1951 = vmatmul.mubr.f32.gmra.mxu0 %v1304
        %v1952 = vpop.f32.mrf.mxu0
        %v1953 = vadd.f32 0.0, %v1952
        %v1954 = vpop.f32.mrf.mxu0
        %1955 = vmatprep.mubr.f32.mxu0 0.0
        %1956 = vmatmul.mubr.f32.gmra.mxu0 %v1307
        %v1957 = vpop.f32.mrf.mxu0
        %v1958 = vadd.f32 0.0, %v1957
        %v1959 = vpop.f32.mrf.mxu0
        %1960 = vmatprep.mubr.f32.mxu0 0.0
        %1961 = vmatmul.mubr.f32.gmra.mxu0 %v1310
        %v1962 = vpop.f32.mrf.mxu0
        %v1963 = vadd.f32 0.0, %v1962
        %v1964 = vpop.f32.mrf.mxu0
        %1965 = vmatprep.mubr.f32.mxu0 0.0
        %1966 = vmatmul.mubr.f32.gmra.mxu0 %v1823
        %v1967 = vpop.f32.mrf.mxu0
        %v1968 = vadd.f32 0.0, %v1967
        %v1969 = vpop.f32.mrf.mxu0
        %1970 = vmatprep.mubr.f32.mxu0 0.0
        %1971 = vmatmul.mubr.f32.gmra.mxu0 %v1826
        %v1972 = vpop.f32.mrf.mxu0
        %v1973 = vadd.f32 0.0, %v1972
        %v1974 = vpop.f32.mrf.mxu0
        %1975 = vdwg.mxu0
        %v1976 = vadd.f32 %v1804, %v1898
        %v1977 = vadd.f32 %v1805, %v1903
        %v1978 = vadd.f32 %v1806, %v1908
        %v1979 = vadd.f32 %v1807, %v1913
        %v1980 = vadd.f32 %v1808, %v1918
        %v1981 = vadd.f32 %v1809, %v1923
        %v1982 = vadd.f32 %v1810, %v1928
        %v1983 = vadd.f32 %v1811, %v1933
        %v1984 = vadd.f32 %v1812, %v1938
        %v1985 = vadd.f32 %v1813, %v1943
        %v1986 = vadd.f32 %v1814, %v1948
        %v1987 = vadd.f32 %v1815, %v1953
        %v1988 = vadd.f32 %v1816, %v1958
        %v1989 = vadd.f32 %v1817, %v1963
        %v1990 = vadd.f32 %v1818, %v1968
        %v1991 = vadd.f32 %v1819, %v1973
        %s1992 = scalar_lea.vmem [#allocation6], 24
        %v1993 = vld [vmem:[%s1992] sm:$0xf]
        %v1995 = vsel %vm587, %v824, 0
        %v1998 = vsel %vm587, %v825, 0
        %v2001 = vsel %vm917, %v1993, 0
        %2003 = vmatprep.subr.mxu0 0.0
        %2004 = vmatpush1.msra.mxu0 0.0
        %2005 = vmatprep.subr.mxu0 0.0
        %2006 = vmatpush1.msra.mxu0 0.0
        %2007 = vmatprep.subr.mxu0 0.0
        %2008 = vmatpush1.msra.mxu0 0.0
        %2009 = vmatprep.subr.mxu0 0.0
        %2010 = vmatpush1.msra.mxu0 0.0
        %2011 = vmatprep.subr.mxu0 0.0
        %2012 = vmatpush1.msra.mxu0 0.0
        %2013 = vmatprep.subr.mxu0 0.0
        %2014 = vmatpush1.msra.mxu0 0.0
        %2015 = vmatprep.subr.mxu0 0.0
        %2016 = vmatpush1.msra.mxu0 0.0
        %2017 = vmatprep.subr.mxu0 0.0
        %2018 = vmatpush1.msra.mxu0 0.0
        %2019 = vmatprep.subr.mxu0 0.0
        %2020 = vmatpush1.msra.mxu0 0.0
        %2021 = vmatprep.subr.mxu0 0.0
        %2022 = vmatpush1.msra.mxu0 0.0
        %2023 = vmatprep.subr.mxu0 0.0
        %2024 = vmatpush1.msra.mxu0 0.0
        %2025 = vmatprep.subr.mxu0 0.0
        %2026 = vmatpush1.msra.mxu0 0.0
        %2027 = vmatprep.subr.mxu0 0.0
        %2028 = vmatpush1.msra.mxu0 0.0
        %2029 = vmatprep.subr.mxu0 0.0
        %2030 = vmatpush1.msra.mxu0 0.0
        %2031 = vmatprep.subr.mxu0 0.0
        %2032 = vmatpush1.msra.mxu0 0.0
        %2033 = vmatprep.subr.mxu0 0.0
        %2034 = vmatpush1.msra.mxu0 %v2001
        %2035 = vmatprep.subr.mxu0 0.0
        %2036 = vmatpush2.msra.mxu0 0.0
        %2037 = vmatprep.subr.mxu0 0.0
        %2038 = vmatpush2.msra.mxu0 0.0
        %2039 = vmatprep.subr.mxu0 0.0
        %2040 = vmatpush2.msra.mxu0 0.0
        %2041 = vmatprep.subr.mxu0 0.0
        %2042 = vmatpush2.msra.mxu0 0.0
        %2043 = vmatprep.subr.mxu0 0.0
        %2044 = vmatpush2.msra.mxu0 0.0
        %2045 = vmatprep.subr.mxu0 0.0
        %2046 = vmatpush2.msra.mxu0 0.0
        %2047 = vmatprep.subr.mxu0 0.0
        %2048 = vmatpush2.msra.mxu0 0.0
        %2049 = vmatprep.subr.mxu0 0.0
        %2050 = vmatpush2.msra.mxu0 0.0
        %2051 = vmatprep.subr.mxu0 0.0
        %2052 = vmatpush2.msra.mxu0 0.0
        %2053 = vmatprep.subr.mxu0 0.0
        %2054 = vmatpush2.msra.mxu0 0.0
        %2055 = vmatprep.subr.mxu0 0.0
        %2056 = vmatpush2.msra.mxu0 0.0
        %2057 = vmatprep.subr.mxu0 0.0
        %2058 = vmatpush2.msra.mxu0 0.0
        %2059 = vmatprep.subr.mxu0 0.0
        %2060 = vmatpush2.msra.mxu0 0.0
        %2061 = vmatprep.subr.mxu0 0.0
        %2062 = vmatpush2.msra.mxu0 0.0
        %2063 = vmatprep.subr.mxu0 0.0
        %2064 = vmatpush2.msra.mxu0 0.0
        %2065 = vmatprep.subr.mxu0 0.0
        %2066 = vmatpush2.msra.mxu0 0.0
        %2067 = vmatprep.mubr.f32.mxu0 0.0
        %2068 = vmatmul.mubr.f32.gmra.mxu0 %v1079
        %v2069 = vpop.f32.mrf.mxu0
        %v2070 = vadd.f32 0.0, %v2069
        %v2071 = vpop.f32.mrf.mxu0
        %2072 = vmatprep.mubr.f32.mxu0 0.0
        %2073 = vmatmul.mubr.f32.gmra.mxu0 %v1082
        %v2074 = vpop.f32.mrf.mxu0
        %v2075 = vadd.f32 0.0, %v2074
        %v2076 = vpop.f32.mrf.mxu0
        %2077 = vmatprep.mubr.f32.mxu0 0.0
        %2078 = vmatmul.mubr.f32.gmra.mxu0 %v1085
        %v2079 = vpop.f32.mrf.mxu0
        %v2080 = vadd.f32 0.0, %v2079
        %v2081 = vpop.f32.mrf.mxu0
        %2082 = vmatprep.mubr.f32.mxu0 0.0
        %2083 = vmatmul.mubr.f32.gmra.mxu0 %v1088
        %v2084 = vpop.f32.mrf.mxu0
        %v2085 = vadd.f32 0.0, %v2084
        %v2086 = vpop.f32.mrf.mxu0
        %2087 = vmatprep.mubr.f32.mxu0 0.0
        %2088 = vmatmul.mubr.f32.gmra.mxu0 %v1091
        %v2089 = vpop.f32.mrf.mxu0
        %v2090 = vadd.f32 0.0, %v2089
        %v2091 = vpop.f32.mrf.mxu0
        %2092 = vmatprep.mubr.f32.mxu0 0.0
        %2093 = vmatmul.mubr.f32.gmra.mxu0 %v1094
        %v2094 = vpop.f32.mrf.mxu0
        %v2095 = vadd.f32 0.0, %v2094
        %v2096 = vpop.f32.mrf.mxu0
        %2097 = vmatprep.mubr.f32.mxu0 0.0
        %2098 = vmatmul.mubr.f32.gmra.mxu0 %v1097
        %v2099 = vpop.f32.mrf.mxu0
        %v2100 = vadd.f32 0.0, %v2099
        %v2101 = vpop.f32.mrf.mxu0
        %2102 = vmatprep.mubr.f32.mxu0 0.0
        %2103 = vmatmul.mubr.f32.gmra.mxu0 %v1100
        %v2104 = vpop.f32.mrf.mxu0
        %v2105 = vadd.f32 0.0, %v2104
        %v2106 = vpop.f32.mrf.mxu0
        %2107 = vmatprep.mubr.f32.mxu0 0.0
        %2108 = vmatmul.mubr.f32.gmra.mxu0 %v1103
        %v2109 = vpop.f32.mrf.mxu0
        %v2110 = vadd.f32 0.0, %v2109
        %v2111 = vpop.f32.mrf.mxu0
        %2112 = vmatprep.mubr.f32.mxu0 0.0
        %2113 = vmatmul.mubr.f32.gmra.mxu0 %v1106
        %v2114 = vpop.f32.mrf.mxu0
        %v2115 = vadd.f32 0.0, %v2114
        %v2116 = vpop.f32.mrf.mxu0
        %2117 = vmatprep.mubr.f32.mxu0 0.0
        %2118 = vmatmul.mubr.f32.gmra.mxu0 %v1109
        %v2119 = vpop.f32.mrf.mxu0
        %v2120 = vadd.f32 0.0, %v2119
        %v2121 = vpop.f32.mrf.mxu0
        %2122 = vmatprep.mubr.f32.mxu0 0.0
        %2123 = vmatmul.mubr.f32.gmra.mxu0 %v1112
        %v2124 = vpop.f32.mrf.mxu0
        %v2125 = vadd.f32 0.0, %v2124
        %v2126 = vpop.f32.mrf.mxu0
        %2127 = vmatprep.mubr.f32.mxu0 0.0
        %2128 = vmatmul.mubr.f32.gmra.mxu0 %v1479
        %v2129 = vpop.f32.mrf.mxu0
        %v2130 = vadd.f32 0.0, %v2129
        %v2131 = vpop.f32.mrf.mxu0
        %2132 = vmatprep.mubr.f32.mxu0 0.0
        %2133 = vmatmul.mubr.f32.gmra.mxu0 %v1482
        %v2134 = vpop.f32.mrf.mxu0
        %v2135 = vadd.f32 0.0, %v2134
        %v2136 = vpop.f32.mrf.mxu0
        %2137 = vmatprep.mubr.f32.mxu0 0.0
        %2138 = vmatmul.mubr.f32.gmra.mxu0 %v1995
        %v2139 = vpop.f32.mrf.mxu0
        %v2140 = vadd.f32 0.0, %v2139
        %v2141 = vpop.f32.mrf.mxu0
        %2142 = vmatprep.mubr.f32.mxu0 0.0
        %2143 = vmatmul.mubr.f32.gmra.mxu0 %v1998
        %v2144 = vpop.f32.mrf.mxu0
        %v2145 = vadd.f32 0.0, %v2144
        %v2146 = vpop.f32.mrf.mxu0
        %2147 = vdwg.mxu0
        %v2148 = vadd.f32 %v1976, %v2070
        %v2149 = vadd.f32 %v1977, %v2075
        %v2150 = vadd.f32 %v1978, %v2080
        %v2151 = vadd.f32 %v1979, %v2085
        %v2152 = vadd.f32 %v1980, %v2090
        %v2153 = vadd.f32 %v1981, %v2095
        %v2154 = vadd.f32 %v1982, %v2100
        %v2155 = vadd.f32 %v1983, %v2105
        %v2156 = vadd.f32 %v1984, %v2110
        %v2157 = vadd.f32 %v1985, %v2115
        %v2158 = vadd.f32 %v1986, %v2120
        %v2159 = vadd.f32 %v1987, %v2125
        %v2160 = vadd.f32 %v1988, %v2130
        %v2161 = vadd.f32 %v1989, %v2135
        %v2162 = vadd.f32 %v1990, %v2140
        %v2163 = vadd.f32 %v1991, %v2145
        %s2164 = scalar_lea.vmem [#allocation6], 28
        %v2165 = vld [vmem:[%s2164] sm:$0xf]
        %v2167 = vsel %vm587, %v844, 0
        %v2170 = vsel %vm587, %v845, 0
        %v2173 = vsel %vm917, %v2165, 0
        %2175 = vmatprep.subr.mxu0 0.0
        %2176 = vmatpush1.msra.mxu0 0.0
        %2177 = vmatprep.subr.mxu0 0.0
        %2178 = vmatpush1.msra.mxu0 0.0
        %2179 = vmatprep.subr.mxu0 0.0
        %2180 = vmatpush1.msra.mxu0 0.0
        %2181 = vmatprep.subr.mxu0 0.0
        %2182 = vmatpush1.msra.mxu0 0.0
        %2183 = vmatprep.subr.mxu0 0.0
        %2184 = vmatpush1.msra.mxu0 0.0
        %2185 = vmatprep.subr.mxu0 0.0
        %2186 = vmatpush1.msra.mxu0 0.0
        %2187 = vmatprep.subr.mxu0 0.0
        %2188 = vmatpush1.msra.mxu0 0.0
        %2189 = vmatprep.subr.mxu0 0.0
        %2190 = vmatpush1.msra.mxu0 0.0
        %2191 = vmatprep.subr.mxu0 0.0
        %2192 = vmatpush1.msra.mxu0 0.0
        %2193 = vmatprep.subr.mxu0 0.0
        %2194 = vmatpush1.msra.mxu0 0.0
        %2195 = vmatprep.subr.mxu0 0.0
        %2196 = vmatpush1.msra.mxu0 0.0
        %2197 = vmatprep.subr.mxu0 0.0
        %2198 = vmatpush1.msra.mxu0 0.0
        %2199 = vmatprep.subr.mxu0 0.0
        %2200 = vmatpush1.msra.mxu0 0.0
        %2201 = vmatprep.subr.mxu0 0.0
        %2202 = vmatpush1.msra.mxu0 0.0
        %2203 = vmatprep.subr.mxu0 0.0
        %2204 = vmatpush1.msra.mxu0 0.0
        %2205 = vmatprep.subr.mxu0 0.0
        %2206 = vmatpush1.msra.mxu0 %v2173
        %2207 = vmatprep.subr.mxu0 0.0
        %2208 = vmatpush2.msra.mxu0 0.0
        %2209 = vmatprep.subr.mxu0 0.0
        %2210 = vmatpush2.msra.mxu0 0.0
        %2211 = vmatprep.subr.mxu0 0.0
        %2212 = vmatpush2.msra.mxu0 0.0
        %2213 = vmatprep.subr.mxu0 0.0
        %2214 = vmatpush2.msra.mxu0 0.0
        %2215 = vmatprep.subr.mxu0 0.0
        %2216 = vmatpush2.msra.mxu0 0.0
        %2217 = vmatprep.subr.mxu0 0.0
        %2218 = vmatpush2.msra.mxu0 0.0
        %2219 = vmatprep.subr.mxu0 0.0
        %2220 = vmatpush2.msra.mxu0 0.0
        %2221 = vmatprep.subr.mxu0 0.0
        %2222 = vmatpush2.msra.mxu0 0.0
        %2223 = vmatprep.subr.mxu0 0.0
        %2224 = vmatpush2.msra.mxu0 0.0
        %2225 = vmatprep.subr.mxu0 0.0
        %2226 = vmatpush2.msra.mxu0 0.0
        %2227 = vmatprep.subr.mxu0 0.0
        %2228 = vmatpush2.msra.mxu0 0.0
        %2229 = vmatprep.subr.mxu0 0.0
        %2230 = vmatpush2.msra.mxu0 0.0
        %2231 = vmatprep.subr.mxu0 0.0
        %2232 = vmatpush2.msra.mxu0 0.0
        %2233 = vmatprep.subr.mxu0 0.0
        %2234 = vmatpush2.msra.mxu0 0.0
        %2235 = vmatprep.subr.mxu0 0.0
        %2236 = vmatpush2.msra.mxu0 0.0
        %2237 = vmatprep.subr.mxu0 0.0
        %2238 = vmatpush2.msra.mxu0 0.0
        %2239 = vmatprep.mubr.f32.mxu0 0.0
        %2240 = vmatmul.mubr.f32.gmra.mxu0 %v882
        %v2241 = vpop.f32.mrf.mxu0
        %v2242 = vadd.f32 0.0, %v2241
        %v2243 = vpop.f32.mrf.mxu0
        %2244 = vmatprep.mubr.f32.mxu0 0.0
        %2245 = vmatmul.mubr.f32.gmra.mxu0 %v885
        %v2246 = vpop.f32.mrf.mxu0
        %v2247 = vadd.f32 0.0, %v2246
        %v2248 = vpop.f32.mrf.mxu0
        %2249 = vmatprep.mubr.f32.mxu0 0.0
        %2250 = vmatmul.mubr.f32.gmra.mxu0 %v888
        %v2251 = vpop.f32.mrf.mxu0
        %v2252 = vadd.f32 0.0, %v2251
        %v2253 = vpop.f32.mrf.mxu0
        %2254 = vmatprep.mubr.f32.mxu0 0.0
        %2255 = vmatmul.mubr.f32.gmra.mxu0 %v891
        %v2256 = vpop.f32.mrf.mxu0
        %v2257 = vadd.f32 0.0, %v2256
        %v2258 = vpop.f32.mrf.mxu0
        %2259 = vmatprep.mubr.f32.mxu0 0.0
        %2260 = vmatmul.mubr.f32.gmra.mxu0 %v894
        %v2261 = vpop.f32.mrf.mxu0
        %v2262 = vadd.f32 0.0, %v2261
        %v2263 = vpop.f32.mrf.mxu0
        %2264 = vmatprep.mubr.f32.mxu0 0.0
        %2265 = vmatmul.mubr.f32.gmra.mxu0 %v897
        %v2266 = vpop.f32.mrf.mxu0
        %v2267 = vadd.f32 0.0, %v2266
        %v2268 = vpop.f32.mrf.mxu0
        %2269 = vmatprep.mubr.f32.mxu0 0.0
        %2270 = vmatmul.mubr.f32.gmra.mxu0 %v900
        %v2271 = vpop.f32.mrf.mxu0
        %v2272 = vadd.f32 0.0, %v2271
        %v2273 = vpop.f32.mrf.mxu0
        %2274 = vmatprep.mubr.f32.mxu0 0.0
        %2275 = vmatmul.mubr.f32.gmra.mxu0 %v903
        %v2276 = vpop.f32.mrf.mxu0
        %v2277 = vadd.f32 0.0, %v2276
        %v2278 = vpop.f32.mrf.mxu0
        %2279 = vmatprep.mubr.f32.mxu0 0.0
        %2280 = vmatmul.mubr.f32.gmra.mxu0 %v906
        %v2281 = vpop.f32.mrf.mxu0
        %v2282 = vadd.f32 0.0, %v2281
        %v2283 = vpop.f32.mrf.mxu0
        %2284 = vmatprep.mubr.f32.mxu0 0.0
        %2285 = vmatmul.mubr.f32.gmra.mxu0 %v909
        %v2286 = vpop.f32.mrf.mxu0
        %v2287 = vadd.f32 0.0, %v2286
        %v2288 = vpop.f32.mrf.mxu0
        %2289 = vmatprep.mubr.f32.mxu0 0.0
        %2290 = vmatmul.mubr.f32.gmra.mxu0 %v912
        %v2291 = vpop.f32.mrf.mxu0
        %v2292 = vadd.f32 0.0, %v2291
        %v2293 = vpop.f32.mrf.mxu0
        %2294 = vmatprep.mubr.f32.mxu0 0.0
        %2295 = vmatmul.mubr.f32.gmra.mxu0 %v915
        %v2296 = vpop.f32.mrf.mxu0
        %v2297 = vadd.f32 0.0, %v2296
        %v2298 = vpop.f32.mrf.mxu0
        %2299 = vmatprep.mubr.f32.mxu0 0.0
        %2300 = vmatmul.mubr.f32.gmra.mxu0 %v1651
        %v2301 = vpop.f32.mrf.mxu0
        %v2302 = vadd.f32 0.0, %v2301
        %v2303 = vpop.f32.mrf.mxu0
        %2304 = vmatprep.mubr.f32.mxu0 0.0
        %2305 = vmatmul.mubr.f32.gmra.mxu0 %v1654
        %v2306 = vpop.f32.mrf.mxu0
        %v2307 = vadd.f32 0.0, %v2306
        %v2308 = vpop.f32.mrf.mxu0
        %2309 = vmatprep.mubr.f32.mxu0 0.0
        %2310 = vmatmul.mubr.f32.gmra.mxu0 %v2167
        %v2311 = vpop.f32.mrf.mxu0
        %v2312 = vadd.f32 0.0, %v2311
        %v2313 = vpop.f32.mrf.mxu0
        %2314 = vmatprep.mubr.f32.mxu0 0.0
        %2315 = vmatmul.mubr.f32.gmra.mxu0 %v2170
        %v2316 = vpop.f32.mrf.mxu0
        %v2317 = vadd.f32 0.0, %v2316
        %v2318 = vpop.f32.mrf.mxu0
        %2319 = vdwg.mxu0
        %v2320 = vadd.f32 %v2148, %v2242
        %v2321 = vadd.f32 %v2149, %v2247
        %v2322 = vadd.f32 %v2150, %v2252
        %v2323 = vadd.f32 %v2151, %v2257
        %v2324 = vadd.f32 %v2152, %v2262
        %v2325 = vadd.f32 %v2153, %v2267
        %v2326 = vadd.f32 %v2154, %v2272
        %v2327 = vadd.f32 %v2155, %v2277
        %v2328 = vadd.f32 %v2156, %v2282
        %v2329 = vadd.f32 %v2157, %v2287
        %v2330 = vadd.f32 %v2158, %v2292
        %v2331 = vadd.f32 %v2159, %v2297
        %v2332 = vadd.f32 %v2160, %v2302
        %v2333 = vadd.f32 %v2161, %v2307
        %v2334 = vadd.f32 %v2162, %v2312
        %v2335 = vadd.f32 %v2163, %v2317
        %s2336 = scalar_lea.vmem [#allocation6], 32
        %v2337 = vld [vmem:[%s2336] sm:$0xf]
        %v2339 = vsel %vm587, %v864, 0
        %v2342 = vsel %vm587, %v865, 0
        %v2345 = vsel %vm917, %v2337, 0
        %2347 = vmatprep.subr.mxu0 0.0
        %2348 = vmatpush1.msra.mxu0 0.0
        %2349 = vmatprep.subr.mxu0 0.0
        %2350 = vmatpush1.msra.mxu0 0.0
        %2351 = vmatprep.subr.mxu0 0.0
        %2352 = vmatpush1.msra.mxu0 0.0
        %2353 = vmatprep.subr.mxu0 0.0
        %2354 = vmatpush1.msra.mxu0 0.0
        %2355 = vmatprep.subr.mxu0 0.0
        %2356 = vmatpush1.msra.mxu0 0.0
        %2357 = vmatprep.subr.mxu0 0.0
        %2358 = vmatpush1.msra.mxu0 0.0
        %2359 = vmatprep.subr.mxu0 0.0
        %2360 = vmatpush1.msra.mxu0 0.0
        %2361 = vmatprep.subr.mxu0 0.0
        %2362 = vmatpush1.msra.mxu0 0.0
        %2363 = vmatprep.subr.mxu0 0.0
        %2364 = vmatpush1.msra.mxu0 0.0
        %2365 = vmatprep.subr.mxu0 0.0
        %2366 = vmatpush1.msra.mxu0 0.0
        %2367 = vmatprep.subr.mxu0 0.0
        %2368 = vmatpush1.msra.mxu0 0.0
        %2369 = vmatprep.subr.mxu0 0.0
        %2370 = vmatpush1.msra.mxu0 0.0
        %2371 = vmatprep.subr.mxu0 0.0
        %2372 = vmatpush1.msra.mxu0 0.0
        %2373 = vmatprep.subr.mxu0 0.0
        %2374 = vmatpush1.msra.mxu0 0.0
        %2375 = vmatprep.subr.mxu0 0.0
        %2376 = vmatpush1.msra.mxu0 0.0
        %2377 = vmatprep.subr.mxu0 0.0
        %2378 = vmatpush1.msra.mxu0 %v2345
        %2379 = vmatprep.subr.mxu0 0.0
        %2380 = vmatpush2.msra.mxu0 0.0
        %2381 = vmatprep.subr.mxu0 0.0
        %2382 = vmatpush2.msra.mxu0 0.0
        %2383 = vmatprep.subr.mxu0 0.0
        %2384 = vmatpush2.msra.mxu0 0.0
        %2385 = vmatprep.subr.mxu0 0.0
        %2386 = vmatpush2.msra.mxu0 0.0
        %2387 = vmatprep.subr.mxu0 0.0
        %2388 = vmatpush2.msra.mxu0 0.0
        %2389 = vmatprep.subr.mxu0 0.0
        %2390 = vmatpush2.msra.mxu0 0.0
        %2391 = vmatprep.subr.mxu0 0.0
        %2392 = vmatpush2.msra.mxu0 0.0
        %2393 = vmatprep.subr.mxu0 0.0
        %2394 = vmatpush2.msra.mxu0 0.0
        %2395 = vmatprep.subr.mxu0 0.0
        %2396 = vmatpush2.msra.mxu0 0.0
        %2397 = vmatprep.subr.mxu0 0.0
        %2398 = vmatpush2.msra.mxu0 0.0
        %2399 = vmatprep.subr.mxu0 0.0
        %2400 = vmatpush2.msra.mxu0 0.0
        %2401 = vmatprep.subr.mxu0 0.0
        %2402 = vmatpush2.msra.mxu0 0.0
        %2403 = vmatprep.subr.mxu0 0.0
        %2404 = vmatpush2.msra.mxu0 0.0
        %2405 = vmatprep.subr.mxu0 0.0
        %2406 = vmatpush2.msra.mxu0 0.0
        %2407 = vmatprep.subr.mxu0 0.0
        %2408 = vmatpush2.msra.mxu0 0.0
        %2409 = vmatprep.subr.mxu0 0.0
        %2410 = vmatpush2.msra.mxu0 0.0
        %2411 = vmatprep.mubr.f32.mxu0 0.0
        %2412 = vmatmul.mubr.f32.gmra.mxu0 %v1277
        %v2413 = vpop.f32.mrf.mxu0
        %v2414 = vadd.f32 0.0, %v2413
        %v2415 = vpop.f32.mrf.mxu0
        %2416 = vmatprep.mubr.f32.mxu0 0.0
        %2417 = vmatmul.mubr.f32.gmra.mxu0 %v1280
        %v2418 = vpop.f32.mrf.mxu0
        %v2419 = vadd.f32 0.0, %v2418
        %v2420 = vpop.f32.mrf.mxu0
        %2421 = vmatprep.mubr.f32.mxu0 0.0
        %2422 = vmatmul.mubr.f32.gmra.mxu0 %v1283
        %v2423 = vpop.f32.mrf.mxu0
        %v2424 = vadd.f32 0.0, %v2423
        %v2425 = vpop.f32.mrf.mxu0
        %2426 = vmatprep.mubr.f32.mxu0 0.0
        %2427 = vmatmul.mubr.f32.gmra.mxu0 %v1286
        %v2428 = vpop.f32.mrf.mxu0
        %v2429 = vadd.f32 0.0, %v2428
        %v2430 = vpop.f32.mrf.mxu0
        %2431 = vmatprep.mubr.f32.mxu0 0.0
        %2432 = vmatmul.mubr.f32.gmra.mxu0 %v1289
        %v2433 = vpop.f32.mrf.mxu0
        %v2434 = vadd.f32 0.0, %v2433
        %v2435 = vpop.f32.mrf.mxu0
        %2436 = vmatprep.mubr.f32.mxu0 0.0
        %2437 = vmatmul.mubr.f32.gmra.mxu0 %v1292
        %v2438 = vpop.f32.mrf.mxu0
        %v2439 = vadd.f32 0.0, %v2438
        %v2440 = vpop.f32.mrf.mxu0
        %2441 = vmatprep.mubr.f32.mxu0 0.0
        %2442 = vmatmul.mubr.f32.gmra.mxu0 %v1295
        %v2443 = vpop.f32.mrf.mxu0
        %v2444 = vadd.f32 0.0, %v2443
        %v2445 = vpop.f32.mrf.mxu0
        %2446 = vmatprep.mubr.f32.mxu0 0.0
        %2447 = vmatmul.mubr.f32.gmra.mxu0 %v1298
        %v2448 = vpop.f32.mrf.mxu0
        %v2449 = vadd.f32 0.0, %v2448
        %v2450 = vpop.f32.mrf.mxu0
        %2451 = vmatprep.mubr.f32.mxu0 0.0
        %2452 = vmatmul.mubr.f32.gmra.mxu0 %v1301
        %v2453 = vpop.f32.mrf.mxu0
        %v2454 = vadd.f32 0.0, %v2453
        %v2455 = vpop.f32.mrf.mxu0
        %2456 = vmatprep.mubr.f32.mxu0 0.0
        %2457 = vmatmul.mubr.f32.gmra.mxu0 %v1304
        %v2458 = vpop.f32.mrf.mxu0
        %v2459 = vadd.f32 0.0, %v2458
        %v2460 = vpop.f32.mrf.mxu0
        %2461 = vmatprep.mubr.f32.mxu0 0.0
        %2462 = vmatmul.mubr.f32.gmra.mxu0 %v1307
        %v2463 = vpop.f32.mrf.mxu0
        %v2464 = vadd.f32 0.0, %v2463
        %v2465 = vpop.f32.mrf.mxu0
        %2466 = vmatprep.mubr.f32.mxu0 0.0
        %2467 = vmatmul.mubr.f32.gmra.mxu0 %v1310
        %v2468 = vpop.f32.mrf.mxu0
        %v2469 = vadd.f32 0.0, %v2468
        %v2470 = vpop.f32.mrf.mxu0
        %2471 = vmatprep.mubr.f32.mxu0 0.0
        %2472 = vmatmul.mubr.f32.gmra.mxu0 %v1823
        %v2473 = vpop.f32.mrf.mxu0
        %v2474 = vadd.f32 0.0, %v2473
        %v2475 = vpop.f32.mrf.mxu0
        %2476 = vmatprep.mubr.f32.mxu0 0.0
        %2477 = vmatmul.mubr.f32.gmra.mxu0 %v1826
        %v2478 = vpop.f32.mrf.mxu0
        %v2479 = vadd.f32 0.0, %v2478
        %v2480 = vpop.f32.mrf.mxu0
        %2481 = vmatprep.mubr.f32.mxu0 0.0
        %2482 = vmatmul.mubr.f32.gmra.mxu0 %v2339
        %v2483 = vpop.f32.mrf.mxu0
        %v2484 = vadd.f32 0.0, %v2483
        %v2485 = vpop.f32.mrf.mxu0
        %2486 = vmatprep.mubr.f32.mxu0 0.0
        %2487 = vmatmul.mubr.f32.gmra.mxu0 %v2342
        %v2488 = vpop.f32.mrf.mxu0
        %v2489 = vadd.f32 0.0, %v2488
        %v2490 = vpop.f32.mrf.mxu0
        %2491 = vdwg.mxu0
        %v2492 = vadd.f32 %v2320, %v2414
        %v2493 = vadd.f32 %v2321, %v2419
        %v2494 = vadd.f32 %v2322, %v2424
        %v2495 = vadd.f32 %v2323, %v2429
        %v2496 = vadd.f32 %v2324, %v2434
        %v2497 = vadd.f32 %v2325, %v2439
        %v2498 = vadd.f32 %v2326, %v2444
        %v2499 = vadd.f32 %v2327, %v2449
        %v2500 = vadd.f32 %v2328, %v2454
        %v2501 = vadd.f32 %v2329, %v2459
        %v2502 = vadd.f32 %v2330, %v2464
        %v2503 = vadd.f32 %v2331, %v2469
        %v2504 = vadd.f32 %v2332, %v2474
        %v2505 = vadd.f32 %v2333, %v2479
        %v2506 = vadd.f32 %v2334, %v2484
        %v2507 = vadd.f32 %v2335, %v2489
        %v2508 = vld [vmem:[%s4] sm:$0x1]
        %v2510 = vlaneseq
        %v2511 = vshrl.u32 %v2510, 7
        %v2512 = vsub.s32 0, %v2511
        %v2513 = vrot.slane %v2508, %v2512
        %v2515 = vadd.f32 %v2492, %v2513
        %v2516 = vadd.f32 %v2493, %v2513
        %v2517 = vadd.f32 %v2494, %v2513
        %v2518 = vadd.f32 %v2495, %v2513
        %v2519 = vadd.f32 %v2496, %v2513
        %v2520 = vadd.f32 %v2497, %v2513
        %v2521 = vadd.f32 %v2498, %v2513
        %v2522 = vadd.f32 %v2499, %v2513
        %v2523 = vadd.f32 %v2500, %v2513
        %v2524 = vadd.f32 %v2501, %v2513
        %v2525 = vadd.f32 %v2502, %v2513
        %v2526 = vadd.f32 %v2503, %v2513
        %v2527 = vadd.f32 %v2504, %v2513
        %v2528 = vadd.f32 %v2505, %v2513
        %v2529 = vadd.f32 %v2506, %v2513
        %v2530 = vadd.f32 %v2507, %v2513
        %v2531 = vmax.f32 %v2515, 0.0
        %v2532 = vmax.f32 %v2516, 0.0
        %v2533 = vmax.f32 %v2517, 0.0
        %v2534 = vmax.f32 %v2518, 0.0
        %v2535 = vmax.f32 %v2519, 0.0
        %v2536 = vmax.f32 %v2520, 0.0
        %v2537 = vmax.f32 %v2521, 0.0
        %v2538 = vmax.f32 %v2522, 0.0
        %v2539 = vmax.f32 %v2523, 0.0
        %v2540 = vmax.f32 %v2524, 0.0
        %v2541 = vmax.f32 %v2525, 0.0
        %v2542 = vmax.f32 %v2526, 0.0
        %v2543 = vmax.f32 %v2527, 0.0
        %v2544 = vmax.f32 %v2528, 0.0
        %v2545 = vmax.f32 %v2529, 0.0
        %v2546 = vmax.f32 %v2530, 0.0
        %v2547 = vld [vmem:[%s5] sm:$0xf]
        %v2548 = vld [vmem:[%s6] sm:$0x1]
        %v2550 = vlaneseq
        %v2551 = vshrl.u32 %v2550, 7
        %v2552 = vsub.s32 0, %v2551
        %v2553 = vrot.slane %v2548, %v2552
        %v2556 = vsel %vm587, %v2531, 0
        %v2559 = vsel %vm587, %v2532, 0
        %v2562 = vsel %vm587, %v2533, 0
        %v2565 = vsel %vm587, %v2534, 0
        %v2568 = vsel %vm587, %v2535, 0
        %v2571 = vsel %vm587, %v2536, 0
        %v2574 = vsel %vm587, %v2537, 0
        %v2577 = vsel %vm587, %v2538, 0
        %v2580 = vsel %vm587, %v2539, 0
        %v2583 = vsel %vm587, %v2540, 0
        %v2586 = vsel %vm587, %v2541, 0
        %v2589 = vsel %vm587, %v2542, 0
        %v2592 = vsel %vm587, %v2543, 0
        %v2595 = vsel %vm587, %v2544, 0
        %v2598 = vsel %vm587, %v2545, 0
        %v2601 = vsel %vm587, %v2546, 0
        %v2604 = vsel %vm917, %v2547, 0
        %2606 = vmatprep.subr.mxu0 0.0
        %2607 = vmatpush1.msra.mxu0 0.0
        %2608 = vmatprep.subr.mxu0 0.0
        %2609 = vmatpush1.msra.mxu0 0.0
        %2610 = vmatprep.subr.mxu0 0.0
        %2611 = vmatpush1.msra.mxu0 0.0
        %2612 = vmatprep.subr.mxu0 0.0
        %2613 = vmatpush1.msra.mxu0 0.0
        %2614 = vmatprep.subr.mxu0 0.0
        %2615 = vmatpush1.msra.mxu0 0.0
        %2616 = vmatprep.subr.mxu0 0.0
        %2617 = vmatpush1.msra.mxu0 0.0
        %2618 = vmatprep.subr.mxu0 0.0
        %2619 = vmatpush1.msra.mxu0 0.0
        %2620 = vmatprep.subr.mxu0 0.0
        %2621 = vmatpush1.msra.mxu0 0.0
        %2622 = vmatprep.subr.mxu0 0.0
        %2623 = vmatpush1.msra.mxu0 0.0
        %2624 = vmatprep.subr.mxu0 0.0
        %2625 = vmatpush1.msra.mxu0 0.0
        %2626 = vmatprep.subr.mxu0 0.0
        %2627 = vmatpush1.msra.mxu0 0.0
        %2628 = vmatprep.subr.mxu0 0.0
        %2629 = vmatpush1.msra.mxu0 0.0
        %2630 = vmatprep.subr.mxu0 0.0
        %2631 = vmatpush1.msra.mxu0 0.0
        %2632 = vmatprep.subr.mxu0 0.0
        %2633 = vmatpush1.msra.mxu0 0.0
        %2634 = vmatprep.subr.mxu0 0.0
        %2635 = vmatpush1.msra.mxu0 0.0
        %2636 = vmatprep.subr.mxu0 0.0
        %2637 = vmatpush1.msra.mxu0 %v2604
        %2638 = vmatprep.subr.mxu0 0.0
        %2639 = vmatpush2.msra.mxu0 0.0
        %2640 = vmatprep.subr.mxu0 0.0
        %2641 = vmatpush2.msra.mxu0 0.0
        %2642 = vmatprep.subr.mxu0 0.0
        %2643 = vmatpush2.msra.mxu0 0.0
        %2644 = vmatprep.subr.mxu0 0.0
        %2645 = vmatpush2.msra.mxu0 0.0
        %2646 = vmatprep.subr.mxu0 0.0
        %2647 = vmatpush2.msra.mxu0 0.0
        %2648 = vmatprep.subr.mxu0 0.0
        %2649 = vmatpush2.msra.mxu0 0.0
        %2650 = vmatprep.subr.mxu0 0.0
        %2651 = vmatpush2.msra.mxu0 0.0
        %2652 = vmatprep.subr.mxu0 0.0
        %2653 = vmatpush2.msra.mxu0 0.0
        %2654 = vmatprep.subr.mxu0 0.0
        %2655 = vmatpush2.msra.mxu0 0.0
        %2656 = vmatprep.subr.mxu0 0.0
        %2657 = vmatpush2.msra.mxu0 0.0
        %2658 = vmatprep.subr.mxu0 0.0
        %2659 = vmatpush2.msra.mxu0 0.0
        %2660 = vmatprep.subr.mxu0 0.0
        %2661 = vmatpush2.msra.mxu0 0.0
        %2662 = vmatprep.subr.mxu0 0.0
        %2663 = vmatpush2.msra.mxu0 0.0
        %2664 = vmatprep.subr.mxu0 0.0
        %2665 = vmatpush2.msra.mxu0 0.0
        %2666 = vmatprep.subr.mxu0 0.0
        %2667 = vmatpush2.msra.mxu0 0.0
        %2668 = vmatprep.subr.mxu0 0.0
        %2669 = vmatpush2.msra.mxu0 0.0
        %2670 = vmatprep.mubr.f32.mxu0 0.0
        %2671 = vmatmul.mubr.f32.gmra.mxu0 %v2556
        %v2672 = vpop.f32.mrf.mxu0
        %v2673 = vadd.f32 %v2553, %v2672
        %v2674 = vpop.f32.mrf.mxu0
        %2675 = vmatprep.mubr.f32.mxu0 0.0
        %2676 = vmatmul.mubr.f32.gmra.mxu0 %v2559
        %v2677 = vpop.f32.mrf.mxu0
        %v2678 = vadd.f32 %v2553, %v2677
        %v2679 = vpop.f32.mrf.mxu0
        %2680 = vmatprep.mubr.f32.mxu0 0.0
        %2681 = vmatmul.mubr.f32.gmra.mxu0 %v2562
        %v2682 = vpop.f32.mrf.mxu0
        %v2683 = vadd.f32 %v2553, %v2682
        %v2684 = vpop.f32.mrf.mxu0
        %2685 = vmatprep.mubr.f32.mxu0 0.0
        %2686 = vmatmul.mubr.f32.gmra.mxu0 %v2565
        %v2687 = vpop.f32.mrf.mxu0
        %v2688 = vadd.f32 %v2553, %v2687
        %v2689 = vpop.f32.mrf.mxu0
        %2690 = vmatprep.mubr.f32.mxu0 0.0
        %2691 = vmatmul.mubr.f32.gmra.mxu0 %v2568
        %v2692 = vpop.f32.mrf.mxu0
        %v2693 = vadd.f32 %v2553, %v2692
        %v2694 = vpop.f32.mrf.mxu0
        %2695 = vmatprep.mubr.f32.mxu0 0.0
        %2696 = vmatmul.mubr.f32.gmra.mxu0 %v2571
        %v2697 = vpop.f32.mrf.mxu0
        %v2698 = vadd.f32 %v2553, %v2697
        %v2699 = vpop.f32.mrf.mxu0
        %2700 = vmatprep.mubr.f32.mxu0 0.0
        %2701 = vmatmul.mubr.f32.gmra.mxu0 %v2574
        %v2702 = vpop.f32.mrf.mxu0
        %v2703 = vadd.f32 %v2553, %v2702
        %v2704 = vpop.f32.mrf.mxu0
        %2705 = vmatprep.mubr.f32.mxu0 0.0
        %2706 = vmatmul.mubr.f32.gmra.mxu0 %v2577
        %v2707 = vpop.f32.mrf.mxu0
        %v2708 = vadd.f32 %v2553, %v2707
        %v2709 = vpop.f32.mrf.mxu0
        %2710 = vmatprep.mubr.f32.mxu0 0.0
        %2711 = vmatmul.mubr.f32.gmra.mxu0 %v2580
        %v2712 = vpop.f32.mrf.mxu0
        %v2713 = vadd.f32 %v2553, %v2712
        %v2714 = vpop.f32.mrf.mxu0
        %2715 = vmatprep.mubr.f32.mxu0 0.0
        %2716 = vmatmul.mubr.f32.gmra.mxu0 %v2583
        %v2717 = vpop.f32.mrf.mxu0
        %v2718 = vadd.f32 %v2553, %v2717
        %v2719 = vpop.f32.mrf.mxu0
        %2720 = vmatprep.mubr.f32.mxu0 0.0
        %2721 = vmatmul.mubr.f32.gmra.mxu0 %v2586
        %v2722 = vpop.f32.mrf.mxu0
        %v2723 = vadd.f32 %v2553, %v2722
        %v2724 = vpop.f32.mrf.mxu0
        %2725 = vmatprep.mubr.f32.mxu0 0.0
        %2726 = vmatmul.mubr.f32.gmra.mxu0 %v2589
        %v2727 = vpop.f32.mrf.mxu0
        %v2728 = vadd.f32 %v2553, %v2727
        %v2729 = vpop.f32.mrf.mxu0
        %2730 = vmatprep.mubr.f32.mxu0 0.0
        %2731 = vmatmul.mubr.f32.gmra.mxu0 %v2592
        %v2732 = vpop.f32.mrf.mxu0
        %v2733 = vadd.f32 %v2553, %v2732
        %v2734 = vpop.f32.mrf.mxu0
        %2735 = vmatprep.mubr.f32.mxu0 0.0
        %2736 = vmatmul.mubr.f32.gmra.mxu0 %v2595
        %v2737 = vpop.f32.mrf.mxu0
        %v2738 = vadd.f32 %v2553, %v2737
        %v2739 = vpop.f32.mrf.mxu0
        %2740 = vmatprep.mubr.f32.mxu0 0.0
        %2741 = vmatmul.mubr.f32.gmra.mxu0 %v2598
        %v2742 = vpop.f32.mrf.mxu0
        %v2743 = vadd.f32 %v2553, %v2742
        %v2744 = vpop.f32.mrf.mxu0
        %2745 = vmatprep.mubr.f32.mxu0 0.0
        %2746 = vmatmul.mubr.f32.gmra.mxu0 %v2601
        %v2747 = vpop.f32.mrf.mxu0
        %v2748 = vadd.f32 %v2553, %v2747
        %v2749 = vpop.f32.mrf.mxu0
        %2750 = vdwg.mxu0
        %v2751 = vadd.f32 %v2673, %v354
        %v2752 = vadd.f32 %v2678, %v355
        %v2753 = vadd.f32 %v2683, %v356
        %v2754 = vadd.f32 %v2688, %v357
        %v2755 = vadd.f32 %v2693, %v358
        %v2756 = vadd.f32 %v2698, %v359
        %v2757 = vadd.f32 %v2703, %v360
        %v2758 = vadd.f32 %v2708, %v361
        %v2759 = vadd.f32 %v2713, %v362
        %v2760 = vadd.f32 %v2718, %v363
        %v2761 = vadd.f32 %v2723, %v364
        %v2762 = vadd.f32 %v2728, %v365
        %v2763 = vadd.f32 %v2733, %v366
        %v2764 = vadd.f32 %v2738, %v367
        %v2765 = vadd.f32 %v2743, %v368
        %v2766 = vadd.f32 %v2748, %v369
        %v2767 = vmax.f32 %v2751, 0.0
        %v2768 = vmax.f32 %v2752, 0.0
        %v2769 = vmax.f32 %v2753, 0.0
        %v2770 = vmax.f32 %v2754, 0.0
        %v2771 = vmax.f32 %v2755, 0.0
        %v2772 = vmax.f32 %v2756, 0.0
        %v2773 = vmax.f32 %v2757, 0.0
        %v2774 = vmax.f32 %v2758, 0.0
        %v2775 = vmax.f32 %v2759, 0.0
        %v2776 = vmax.f32 %v2760, 0.0
        %v2777 = vmax.f32 %v2761, 0.0
        %v2778 = vmax.f32 %v2762, 0.0
        %v2779 = vmax.f32 %v2763, 0.0
        %v2780 = vmax.f32 %v2764, 0.0
        %v2781 = vmax.f32 %v2765, 0.0
        %v2782 = vmax.f32 %v2766, 0.0
        %2783 = vst.msk [vmem:[%s325] sm:$0xff] %vm376, %v2767
        %2784 = vst.msk [vmem:[%s325 + $0x8] sm:$0xff] %vm376, %v2768
        %2785 = vst.msk [vmem:[%s325 + $0x10] sm:$0xff] %vm376, %v2769
        %2786 = vst.msk [vmem:[%s325 + $0x18] sm:$0xff] %vm376, %v2770
        %2787 = vst.msk [vmem:[%s325 + $0x20] sm:$0xff] %vm376, %v2771
        %2788 = vst.msk [vmem:[%s325 + $0x28] sm:$0xff] %vm376, %v2772
        %2789 = vst.msk [vmem:[%s325 + $0x30] sm:$0xff] %vm376, %v2773
        %2790 = vst.msk [vmem:[%s325 + $0x38] sm:$0xff] %vm376, %v2774
        %2791 = vst.msk [vmem:[%s325 + $0x40] sm:$0xff] %vm376, %v2775
        %2792 = vst.msk [vmem:[%s325 + $0x48] sm:$0xff] %vm376, %v2776
        %2793 = vst.msk [vmem:[%s325 + $0x50] sm:$0xff] %vm376, %v2777
        %2794 = vst.msk [vmem:[%s325 + $0x58] sm:$0xff] %vm376, %v2778
        %2795 = vst.msk [vmem:[%s325 + $0x60] sm:$0xff] %vm376, %v2779
        %2796 = vst.msk [vmem:[%s325 + $0x68] sm:$0xff] %vm376, %v2780
        %2797 = vst.msk [vmem:[%s325 + $0x70] sm:$0xff] %vm376, %v2781
        %2798 = vst.msk [vmem:[%s325 + $0x78] sm:$0xff] %vm376, %v2782
        %s2799 = sand.u32 %s199, 1
        %s2800 = scalar_lea.sflag [#allocation5], %s2799
        %s2801 = sand.u32 %s199, 1
        %s2802 = smul.addr %s2801, 128
        %s2803 = scalar_lea.vmem [#allocation8], %s2802
        // Predicated region
        $region73: #{tpu_custom_call.1} parent=47 // pred_check
          %p2804 = pneg %p209
        $region74: #{tpu_custom_call.1} parent=47 // pred_check_branch
          %2806 = sbr.rel (%p2804) target = $region76
        $region75: #{tpu_custom_call.1} parent=47 // pred_region
          %s2807 = smul.u32 8, %s30
          %s2809 = ssub.s32 2048, 2048
          %2810 = vsyncadd %s2800, %s2809
          %s2811 = smul.addr %s2807, 2
          %s2812 = smul.addr %s29, 32
          %s2813 = sadd.s32 %s2811, %s2812
          %s2814 = smul.addr %s2813, 128
          %s2815 = scalar_lea.hbm %s7, %s2814
          %s2816 = sshll.u32 %s2803, 4
          %s2817 = int_to_ptr.vmem [resolvable:$true] %s2816
          %2822 = dma.vmem_to_hbm [thread:$0]  %s2817, 2048, %s2815, %s2800, 128, 128, 8
        $region76: #{tpu_custom_call.1} parent=47 // pred_fallthru
          _
      $region48: #{tpu_custom_call.1} parent=5 // pred_fallthru
        _
      %p2823 = scmp.le.s32.totalorder 2, %s20
      // Predicated region
      $region77: #{tpu_custom_call.1} parent=5 // pred_check
        %p2824 = pneg %p2823
      $region78: #{tpu_custom_call.1} parent=5 // pred_check_branch
        %2826 = sbr.rel (%p2824) target = $region80
      $region79: #{tpu_custom_call.1} parent=5 // pred_region
        %s2827 = ssub.s32 %s20, 2
        // Predicated region
        $region81: #{tpu_custom_call.1} parent=79 // pred_check
          %p2828 = pneg %p215
        $region82: #{tpu_custom_call.1} parent=79 // pred_check_branch
          %2830 = sbr.rel (%p2828) target = $region84
        $region83: #{tpu_custom_call.1} parent=79 // pred_region
          %s2831 = sand.u32 %s200, 1
          %s2832 = scalar_lea.sflag [#allocation5], %s2831
          %s2833 = sand.u32 %s200, 1
          %s2834 = smul.addr %s2833, 128
          %s2835 = scalar_lea.vmem [#allocation8], %s2834
          %2836 = dma.done %s2832, 2048
        $region84: #{tpu_custom_call.1} parent=79 // pred_fallthru
          _
      $region80: #{tpu_custom_call.1} parent=5 // pred_fallthru
        _
    $region6: #{tpu_custom_call.1} parent=1 // loop_footer
      %s24 = sadd.s32 1, %s20
    $region7: #{tpu_custom_call.1} parent=1 // loop_footer_branch
      %19 = sbr.rel target = $region3
    $region8: #{tpu_custom_call.1} parent=1 // loop_exit
      _
    %2837 = vsyncpa [#allocation4], 1
    %s2838 = scalar_lea.sflag [#allocation4], 1
    %2839 = vsyncpa %s2838, 1
    %2840 = vsyncpa [#allocation7], 1
    %2841 = vsyncpa [#allocation5], 1
    %s2842 = scalar_lea.sflag [#allocation5], 1
    %2843 = vsyncpa %s2842, 1

</llo_original>
